<compile_context>
chip_gen: v6e
topology: v6e:2x2x1
jax: 0.10.0
libtpu: 0.0.40
codegen_flags: <defaults>
</compile_context>

<pallas_src>
import numpy as np
import jax
import jax.numpy as jnp
from jax import lax
from jax.experimental import pallas as pl
from jax.experimental.pallas import tpu as pltpu

HIGHEST = lax.Precision.HIGHEST  # used only by the pure-JAX reference

TAPS = [(dy, dx) for dy in (-1, 0, 1) for dx in (-1, 0, 1)]


def _apply_act(y, act):
    if act == "relu":
        return jnp.maximum(y, 0.0)
    if act == "sigmoid":
        return jax.nn.sigmoid(y)
    return y


def _rup8(c):
    return ((c + 7) // 8) * 8


# --------------------------- host-side constants ---------------------------- #

def interp_matrix(n_in, n_out):
    """Row/col interpolation matrix for bilinear upsample, align_corners=True."""
    pos = np.arange(n_out, dtype=np.float64) * (n_in - 1) / (n_out - 1)
    i0 = np.minimum(np.floor(pos).astype(np.int64), n_in - 1)
    i1 = np.minimum(i0 + 1, n_in - 1)
    w = (pos - i0).astype(np.float32)
    m = np.zeros((n_out, n_in), np.float32)
    m[np.arange(n_out), i0] += 1.0 - w
    m[np.arange(n_out), i1] += w
    return m


def upsample_operator(h, w):
    """Per-image (h*w, 2h*2w) operator: x2 bilinear, align_corners=True."""
    ry = interp_matrix(h, 2 * h)                          # (2h, h)
    cx = interp_matrix(w, 2 * w)                          # (2w, w)
    return np.einsum("oh,pw->hwop", ry, cx).reshape(h * w, 4 * h * w)


def pool_select_operator(h, w):
    """Per-image (h*w, (h//2)*(w//2)) 0/1 matrix selecting the even (y,x) lanes."""
    hs, ws = h // 2, w // 2
    op = np.zeros((h * w, hs * ws), np.float32)
    for oy in range(hs):
        for ox in range(ws):
            op[(2 * oy) * w + 2 * ox, oy * ws + ox] = 1.0
    return op


def tap_masks(n, h, w):
    """(9, n*h*w) 0/1 f32: mask[t, lane]==1 iff that lane's tap-t neighbour lies
    inside the same image.  Shared by the maxpool (mask-to-0 is exact since its
    input is post-ReLU) and the 3x3 convs (zero padding)."""
    out = np.zeros((9, n * h * w), np.float32)
    ys = np.arange(h)[:, None]
    xs = np.arange(w)[None, :]
    for t, (dy, dx) in enumerate(TAPS):
        m = ((ys + dy >= 0) & (ys + dy < h) &
             (xs + dx >= 0) & (xs + dx < w)).astype(np.float32)
        out[t] = np.tile(m.reshape(-1), n)
    return out


# ------------------------------ fused kernel -------------------------------- #

def make_fused_kernel(N, H, W, mid2, mid, cout):
    assert H % 2 == 0 and W % 2 == 0, "maxpool/upsample path assumes even H, W"
    HW = H * W
    Ws = W // 2
    M = N * HW
    f32 = jnp.float32
    bf16 = jnp.bfloat16
    off_b1 = _rup8(mid2)            # sublane offset of body.conv1 rows
    off_id = off_b1 + _rup8(mid)    # sublane offset of identity rows

    def roll_lanes(z, off):
        # shifted[:, m] = z[:, m + off] (circular).  Every lane that wraps is
        # zeroed by the precomputed tap mask -- valid for the 3x3 tap radius;
        # a larger radius would break this assumption.
        if off == 0:
            return z
        return pltpu.roll(z, shift=(-off) % z.shape[1], axis=1)

    def kernel(x_ref, stkw, stkb, a2w, a2b, a3w, a3b,
               b2w, b2b, b3w, b3b, up_ref, sel_ref, mf_ref, mh_ref, o_ref):
        relu = lambda v: jnp.maximum(v, 0.0)

        # (N, Cin, HW) -> channels-first-flattened (Cin, M); lane concats at
        # multiples of HW (>=128) are cheap vreg placement, no HBM round trip.
        x = jnp.concatenate([x_ref[n] for n in range(N)], axis=1)

        mf = mf_ref[...]            # (9, M)  full-res tap masks
        mh = mh_ref[...]            # (9, Ms) half-res tap masks

        def conv3x3(z, w9_ref, b_ref, mask, w_img):
            # 3x3, stride 1, pad 1: 9 masked-roll dots with f32 accumulation.
            acc = None
            for t, (dy, dx) in enumerate(TAPS):
                sh = roll_lanes(z, dy * w_img + dx)
                if not (dy == 0 and dx == 0):
                    sh = sh * mask[t:t + 1, :]
                d = jnp.dot(w9_ref[t], sh, preferred_element_type=f32)
                acc = d if acc is None else acc + d
            return acc + b_ref[...]

        def per_image_dot(z, op_ref):
            # Contract each image's spatial lane block with the shared per-image
            # bf16 operator (bf16 x bf16 MXU, f32 accumulate); static lane slices.
            kin = op_ref.shape[0]
            op = op_ref[...]
            zb = z.astype(bf16)
            parts = [jnp.dot(zb[:, n * kin:(n + 1) * kin], op,
                             preferred_element_type=f32) for n in range(N)]
            return parts[0] if N == 1 else jnp.concatenate(parts, axis=1)

        # ----- fused 1x1 convs reading x: air.conv1 | body.conv1 | identity ---
        head = jnp.dot(stkw[...], x, preferred_element_type=f32) + stkb[...]
        a = relu(head[0:mid2, :])                     # air.conv1   (mid2, M)
        y = relu(head[off_b1:off_b1 + mid, :])        # body.conv1  (mid,  M)
        identity = head[off_id:off_id + cout, :]      # identity    (cout, M)

        # ---------------- AirBlock attention ----------------
        # MaxPool2d(3, s=2, p=1): dense 3x3 max over masked rolls (a >= 0 so
        # masking to 0 is exact), then even-lane selection matmul per image.
        dense = a
        for t, (dy, dx) in enumerate(TAPS):
            if dy == 0 and dx == 0:
                continue
            sh = roll_lanes(a, dy * W + dx)
            dense = jnp.maximum(dense, sh * mf[t:t + 1, :])
        pooled = per_image_dot(dense, sel_ref)                     # (mid2, Ms)

        a2 = relu(conv3x3(pooled, a2w, a2b, mh, Ws))               # (mid2, Ms)
        a2u = per_image_dot(a2, up_ref)                            # (mid2, M)
        att = jax.nn.sigmoid(
            jnp.dot(a3w[...], a2u, preferred_element_type=f32) + a3b[...])

        # ---------------- bottleneck body + residual ----------------
        y = relu(conv3x3(y, b2w, b2b, mf, W))                      # (mid, M)
        y = jnp.dot(b3w[...], y * att, preferred_element_type=f32) + b3b[...]
        out = relu(y + identity)                                   # (cout, M)

        # Lane-dense per-image output slabs (HW >= 128 multiple of 128).
        for n in range(N):
            o_ref[n] = out[:, n * HW:(n + 1) * HW].astype(o_ref.dtype)

    return kernel


# ------------------------------ model wrappers ------------------------------ #

def init_params(key, in_channels, out_channels, ratio):
    mid = out_channels // 4          # AirBottleneck mid_channels
    mid2 = mid // ratio              # AirBlock mid_channels
    keys = jax.random.split(key, 7)

    def block(k, wshape):
        kw, ks, kb = jax.random.split(k, 3)
        c = wshape[-1]
        return dict(
            w=0.1 * jax.random.normal(kw, wshape, jnp.float32),
            s=1.0 + 0.1 * jax.random.normal(ks, (c,), jnp.float32),   # BN scale
            b=0.05 * jax.random.normal(kb, (c,), jnp.float32),        # BN bias
        )

    return {
        "air_conv1": block(keys[0], (in_channels, mid2)),        # 1x1 + BN + ReLU
        "air_conv2": block(keys[1], (3, 3, mid2, mid2)),         # 3x3 + BN + ReLU
        "air_conv3": block(keys[2], (mid2, mid)),                # 1x1 + BN (no act)
        "body_conv1": block(keys[3], (in_channels, mid)),        # 1x1 + BN + ReLU
        "body_conv2": block(keys[4], (3, 3, mid, mid)),          # 3x3 + BN + ReLU
        "body_conv3": block(keys[5], (mid, out_channels)),       # 1x1 + BN (no act)
        "identity_conv": block(keys[6], (in_channels, out_channels)),  # 1x1 + BN
    }


def prepare_kernel_params(p, N, H, W):
    """One-time weight prep: fold BN scale, stack the x-consuming 1x1 convs at
    8-aligned rows, build per-image bf16 pool-select / upsample operators and
    the precomputed tap masks."""
    in_channels, mid2 = p["air_conv1"]["w"].shape
    mid = p["body_conv1"]["w"].shape[1]
    out_channels = p["body_conv3"]["w"].shape[1]

    def fold1(pp):
        w = (pp["w"] * pp["s"][None, :]).T.astype(jnp.float32)         # (Cout, Cin)
        return w, pp["b"].reshape(-1, 1).astype(jnp.float32)

    def fold3(pp):
        w = pp["w"] * pp["s"][None, None, None, :]                     # (3,3,Cin,Cout)
        cin, c = w.shape[2], w.shape[3]
        w9 = w.reshape(9, cin, c).transpose(0, 2, 1).astype(jnp.float32)   # (9,Cout,Cin)
        return w9, pp["b"].reshape(-1, 1).astype(jnp.float32)

    a1w, a1b = fold1(p["air_conv1"])
    b1w, b1b = fold1(p["body_conv1"])
    idw, idb = fold1(p["identity_conv"])

    off_b1 = _rup8(mid2)
    off_id = off_b1 + _rup8(mid)
    rows = off_id + _rup8(out_channels)
    stkw = jnp.zeros((rows, in_channels), jnp.float32)
    stkw = stkw.at[0:mid2].set(a1w).at[off_b1:off_b1 + mid].set(b1w)
    stkw = stkw.at[off_id:off_id + out_channels].set(idw)
    stkb = jnp.zeros((rows, 1), jnp.float32)
    stkb = stkb.at[0:mid2].set(a1b).at[off_b1:off_b1 + mid].set(b1b)
    stkb = stkb.at[off_id:off_id + out_channels].set(idb)

    kp = {"stkw": stkw, "stkb": stkb}
    kp["a2w"], kp["a2b"] = fold3(p["air_conv2"])
    kp["a3w"], kp["a3b"] = fold1(p["air_conv3"])
    kp["b2w"], kp["b2b"] = fold3(p["body_conv2"])
    kp["b3w"], kp["b3b"] = fold1(p["body_conv3"])

    # Per-image spatial operators, stored bf16 (MXU default precision truncates
    # to bf16 anyway, so numerics are unchanged).  No O((N*H*W)^2) constants.
    kp["up"] = jnp.asarray(upsample_operator(H // 2, W // 2), jnp.bfloat16)
    kp["sel"] = jnp.asarray(pool_select_operator(H, W), jnp.bfloat16)

    # Precomputed tap masks shared by the maxpool and both 3x3 convs.
    kp["maskF"] = jnp.asarray(tap_masks(N, H, W), jnp.float32)
    kp["maskH"] = jnp.asarray(tap_masks(N, H // 2, W // 2), jnp.float32)
    return kp


def air_unit_forward(x, kp):
    """x: (N, Cin, H, W) NCHW  ->  (N, Cout, H, W).  stride == 1 path only."""
    N, Cin, H, W = x.shape
    mid2 = kp["a2b"].shape[0]
    mid = kp["b2b"].shape[0]
    cout = kp["b3b"].shape[0]

    # Only free reshapes at the boundary (no transposes): the kernel consumes
    # (N, Cin, H*W) and writes (N, Cout, H*W) directly.
    x3 = x.reshape(N, Cin, H * W)
    inputs = [x3, kp["stkw"], kp["stkb"], kp["a2w"], kp["a2b"], kp["a3w"],
              kp["a3b"], kp["b2w"], kp["b2b"], kp["b3w"], kp["b3b"],
              kp["up"], kp["sel"], kp["maskF"], kp["maskH"]]

    out = pl.pallas_call(
        make_fused_kernel(N, H, W, mid2, mid, cout),
        out_shape=jax.ShapeDtypeStruct((N, cout, H * W), jnp.float32),
        in_specs=[pl.BlockSpec(memory_space=pltpu.MemorySpace.VMEM)
                  for _ in inputs],
        out_specs=pl.BlockSpec(memory_space=pltpu.MemorySpace.VMEM),
        compiler_params=pltpu.CompilerParams(vmem_limit_bytes=32 * 1024 * 1024),
    )(*inputs)
    return out.reshape(N, cout, H, W)


# ------------------------- pure-JAX reference model ------------------------- #

def ref_forward(x, p):
    def c1(xx, pp, act):
        y = jnp.einsum("nchw,co->nohw", xx, pp["w"], precision=HIGHEST)
        y = y * pp["s"][None, :, None, None] + pp["b"][None, :, None, None]
        return _apply_act(y, act)

    def c3(xx, pp, act):
        y = lax.conv_general_dilated(xx, pp["w"], (1, 1), [(1, 1), (1, 1)],
                                     dimension_numbers=("NCHW", "HWIO", "NCHW"),
                                     precision=HIGHEST)
        y = y * pp["s"][None, :, None, None] + pp["b"][None, :, None, None]
        return _apply_act(y, act)

    def pool(xx):
        return lax.reduce_window(xx, -jnp.inf, lax.max, (1, 1, 3, 3), (1, 1, 2, 2),
                                 [(0, 0), (0, 0), (1, 1), (1, 1)])

    def up(xx):
        _, _, h, w = xx.shape
        ry = jnp.asarray(interp_matrix(h, 2 * h))
        cx = jnp.asarray(interp_matrix(w, 2 * w))
        y = jnp.einsum("oh,nchw->ncow", ry, xx, precision=HIGHEST)
        return jnp.einsum("xw,ncow->ncox", cx, y, precision=HIGHEST)

    a = c1(x, p["air_conv1"], "relu")
    a = pool(a)
    a = c3(a, p["air_conv2"], "relu")
    a = up(a)
    att = c1(a, p["air_conv3"], "sigmoid")

    identity = c1(x, p["identity_conv"], "none")
    y = c1(x, p["body_conv1"], "relu")
    y = c3(y, p["body_conv2"], "relu")
    y = y * att
    y = c1(y, p["body_conv3"], "none")
    return jnp.maximum(y + identity, 0.0)


# ----------------------------------- main ------------------------------------ #

if __name__ == "__main__":
    N, H, W = 2, 16, 16
    in_channels, out_channels, stride, ratio = 8, 16, 1, 2
    assert stride == 1  # TODO(synk): stride > 1 variant not implemented

    key = jax.random.PRNGKey(0)
    kx, kprm = jax.random.split(key)
    x = jax.random.normal(kx, (N, in_channels, H, W), jnp.float32)   # NCHW
    params = init_params(kprm, in_channels, out_channels, ratio)
    kparams = prepare_kernel_params(params, N, H, W)

    out = jax.jit(air_unit_forward)(x, kparams)
    out = jax.block_until_ready(out)
    assert out.shape == (N, out_channels, H, W)

    ref = ref_forward(x, params)
    np.testing.assert_allclose(np.asarray(out), np.asarray(ref), rtol=1e-2, atol=1e-2)

    print("KERNEL_OK")
</pallas_src>

<mosaic_0001>
module attributes {stable_mosaic.version = 11 : i64} {
  func.func @kernel(%arg0: memref<2x8x256xf32, #tpu.memory_space<vmem>>, %arg1: memref<32x8xf32, #tpu.memory_space<vmem>>, %arg2: memref<32x1xf32, #tpu.memory_space<vmem>>, %arg3: memref<9x2x2xf32, #tpu.memory_space<vmem>>, %arg4: memref<2x1xf32, #tpu.memory_space<vmem>>, %arg5: memref<4x2xf32, #tpu.memory_space<vmem>>, %arg6: memref<4x1xf32, #tpu.memory_space<vmem>>, %arg7: memref<9x4x4xf32, #tpu.memory_space<vmem>>, %arg8: memref<4x1xf32, #tpu.memory_space<vmem>>, %arg9: memref<16x4xf32, #tpu.memory_space<vmem>>, %arg10: memref<16x1xf32, #tpu.memory_space<vmem>>, %arg11: memref<64x256xbf16, #tpu.memory_space<vmem>>, %arg12: memref<256x64xbf16, #tpu.memory_space<vmem>>, %arg13: memref<9x512xf32, #tpu.memory_space<vmem>>, %arg14: memref<9x128xf32, #tpu.memory_space<vmem>>, %arg15: memref<2x16x256xf32, #tpu.memory_space<vmem>>) attributes {dimension_semantics = [], scalar_prefetch = 0 : i64, scratch_operands = 0 : i64, tpu.core_type = #tpu.core_type<tc>} {
    %c0 = arith.constant 0 : index
    %c0_0 = arith.constant 0 : index
    %c0_1 = arith.constant 0 : index
    %0 = vector.load %arg0[%c0, %c0_0, %c0_1] : memref<2x8x256xf32, #tpu.memory_space<vmem>>, vector<1x8x256xf32>
    %1 = vector.shape_cast %0 : vector<1x8x256xf32> to vector<8x256xf32>
    %c1 = arith.constant 1 : index
    %c0_2 = arith.constant 0 : index
    %c0_3 = arith.constant 0 : index
    %2 = vector.load %arg0[%c1, %c0_2, %c0_3] : memref<2x8x256xf32, #tpu.memory_space<vmem>>, vector<1x8x256xf32>
    %3 = vector.shape_cast %2 : vector<1x8x256xf32> to vector<8x256xf32>
    %4 = tpu.concatenate %1, %3 in 1 : vector<8x256xf32>, vector<8x256xf32> -> vector<8x512xf32>
    %c0_4 = arith.constant 0 : index
    %c0_5 = arith.constant 0 : index
    %5 = vector.load %arg13[%c0_4, %c0_5] : memref<9x512xf32, #tpu.memory_space<vmem>>, vector<9x512xf32>
    %c0_6 = arith.constant 0 : index
    %c0_7 = arith.constant 0 : index
    %6 = vector.load %arg14[%c0_6, %c0_7] : memref<9x128xf32, #tpu.memory_space<vmem>>, vector<9x128xf32>
    %c0_8 = arith.constant 0 : index
    %c0_9 = arith.constant 0 : index
    %7 = vector.load %arg1[%c0_8, %c0_9] : memref<32x8xf32, #tpu.memory_space<vmem>>, vector<32x8xf32>
    %cst = arith.constant dense<0.000000e+00> : vector<32x512xf32>
    %8 = tpu.matmul %7, %4, %cst {dimension_numbers = #tpu.dot_dimension_numbers<[1], [0], [0], [1], [0, 0, 1, 1], [], []>} : vector<32x8xf32>, vector<8x512xf32>, vector<32x512xf32> -> vector<32x512xf32>
    %c0_10 = arith.constant 0 : index
    %c0_11 = arith.constant 0 : index
    %9 = vector.load %arg2[%c0_10, %c0_11] : memref<32x1xf32, #tpu.memory_space<vmem>>, vector<32x1xf32>
    %10 = vector.broadcast %9 : vector<32x1xf32> to vector<32x512xf32>
    %11 = arith.addf %8, %10 : vector<32x512xf32>
    %12 = vector.extract_strided_slice %11 {offsets = [0, 0], sizes = [2, 512], strides = [1, 1]} : vector<32x512xf32> to vector<2x512xf32>
    %cst_12 = arith.constant 0.000000e+00 : f32
    %13 = vector.broadcast %cst_12 : f32 to vector<2x512xf32>
    %14 = arith.maximumf %12, %13 : vector<2x512xf32>
    %15 = vector.extract_strided_slice %11 {offsets = [8, 0], sizes = [4, 512], strides = [1, 1]} : vector<32x512xf32> to vector<4x512xf32>
    %cst_13 = arith.constant 0.000000e+00 : f32
    %16 = vector.broadcast %cst_13 : f32 to vector<4x512xf32>
    %17 = arith.maximumf %15, %16 : vector<4x512xf32>
    %18 = vector.extract_strided_slice %11 {offsets = [16, 0], sizes = [16, 512], strides = [1, 1]} : vector<32x512xf32> to vector<16x512xf32>
    %c17_i32 = arith.constant 17 : i32
    %19 = tpu.dynamic_rotate %14 by %c17_i32 dim 1 : vector<2x512xf32>, i32 -> vector<2x512xf32>
    %20 = vector.extract_strided_slice %5 {offsets = [0, 0], sizes = [1, 512], strides = [1, 1]} : vector<9x512xf32> to vector<1x512xf32>
    %21 = vector.broadcast %20 : vector<1x512xf32> to vector<2x512xf32>
    %22 = arith.mulf %19, %21 : vector<2x512xf32>
    %23 = arith.maximumf %14, %22 : vector<2x512xf32>
    %c16_i32 = arith.constant 16 : i32
    %24 = tpu.dynamic_rotate %14 by %c16_i32 dim 1 : vector<2x512xf32>, i32 -> vector<2x512xf32>
    %25 = vector.extract_strided_slice %5 {offsets = [1, 0], sizes = [1, 512], strides = [1, 1]} : vector<9x512xf32> to vector<1x512xf32>
    %26 = vector.broadcast %25 : vector<1x512xf32> to vector<2x512xf32>
    %27 = arith.mulf %24, %26 : vector<2x512xf32>
    %28 = arith.maximumf %23, %27 : vector<2x512xf32>
    %c15_i32 = arith.constant 15 : i32
    %29 = tpu.dynamic_rotate %14 by %c15_i32 dim 1 : vector<2x512xf32>, i32 -> vector<2x512xf32>
    %30 = vector.extract_strided_slice %5 {offsets = [2, 0], sizes = [1, 512], strides = [1, 1]} : vector<9x512xf32> to vector<1x512xf32>
    %31 = vector.broadcast %30 : vector<1x512xf32> to vector<2x512xf32>
    %32 = arith.mulf %29, %31 : vector<2x512xf32>
    %33 = arith.maximumf %28, %32 : vector<2x512xf32>
    %c1_i32 = arith.constant 1 : i32
    %34 = tpu.dynamic_rotate %14 by %c1_i32 dim 1 : vector<2x512xf32>, i32 -> vector<2x512xf32>
    %35 = vector.extract_strided_slice %5 {offsets = [3, 0], sizes = [1, 512], strides = [1, 1]} : vector<9x512xf32> to vector<1x512xf32>
    %36 = vector.broadcast %35 : vector<1x512xf32> to vector<2x512xf32>
    %37 = arith.mulf %34, %36 : vector<2x512xf32>
    %38 = arith.maximumf %33, %37 : vector<2x512xf32>
    %c511_i32 = arith.constant 511 : i32
    %39 = tpu.dynamic_rotate %14 by %c511_i32 dim 1 : vector<2x512xf32>, i32 -> vector<2x512xf32>
    %40 = vector.extract_strided_slice %5 {offsets = [5, 0], sizes = [1, 512], strides = [1, 1]} : vector<9x512xf32> to vector<1x512xf32>
    %41 = vector.broadcast %40 : vector<1x512xf32> to vector<2x512xf32>
    %42 = arith.mulf %39, %41 : vector<2x512xf32>
    %43 = arith.maximumf %38, %42 : vector<2x512xf32>
    %c497_i32 = arith.constant 497 : i32
    %44 = tpu.dynamic_rotate %14 by %c497_i32 dim 1 : vector<2x512xf32>, i32 -> vector<2x512xf32>
    %45 = vector.extract_strided_slice %5 {offsets = [6, 0], sizes = [1, 512], strides = [1, 1]} : vector<9x512xf32> to vector<1x512xf32>
    %46 = vector.broadcast %45 : vector<1x512xf32> to vector<2x512xf32>
    %47 = arith.mulf %44, %46 : vector<2x512xf32>
    %48 = arith.maximumf %43, %47 : vector<2x512xf32>
    %c496_i32 = arith.constant 496 : i32
    %49 = tpu.dynamic_rotate %14 by %c496_i32 dim 1 : vector<2x512xf32>, i32 -> vector<2x512xf32>
    %50 = vector.extract_strided_slice %5 {offsets = [7, 0], sizes = [1, 512], strides = [1, 1]} : vector<9x512xf32> to vector<1x512xf32>
    %51 = vector.broadcast %50 : vector<1x512xf32> to vector<2x512xf32>
    %52 = arith.mulf %49, %51 : vector<2x512xf32>
    %53 = arith.maximumf %48, %52 : vector<2x512xf32>
    %c495_i32 = arith.constant 495 : i32
    %54 = tpu.dynamic_rotate %14 by %c495_i32 dim 1 : vector<2x512xf32>, i32 -> vector<2x512xf32>
    %55 = vector.extract_strided_slice %5 {offsets = [8, 0], sizes = [1, 512], strides = [1, 1]} : vector<9x512xf32> to vector<1x512xf32>
    %56 = vector.broadcast %55 : vector<1x512xf32> to vector<2x512xf32>
    %57 = arith.mulf %54, %56 : vector<2x512xf32>
    %58 = arith.maximumf %53, %57 : vector<2x512xf32>
    %c0_14 = arith.constant 0 : index
    %c0_15 = arith.constant 0 : index
    %59 = vector.load %arg12[%c0_14, %c0_15] : memref<256x64xbf16, #tpu.memory_space<vmem>>, vector<256x64xbf16>
    %60 = arith.truncf %58 : vector<2x512xf32> to vector<2x512xbf16>
    %61 = vector.extract_strided_slice %60 {offsets = [0, 0], sizes = [2, 256], strides = [1, 1]} : vector<2x512xbf16> to vector<2x256xbf16>
    %cst_16 = arith.constant dense<0.000000e+00> : vector<2x64xf32>
    %62 = tpu.matmul %61, %59, %cst_16 {dimension_numbers = #tpu.dot_dimension_numbers<[1], [0], [0], [1], [0, 0, 1, 1], [], []>} : vector<2x256xbf16>, vector<256x64xbf16>, vector<2x64xf32> -> vector<2x64xf32>
    %63 = vector.extract_strided_slice %60 {offsets = [0, 256], sizes = [2, 256], strides = [1, 1]} : vector<2x512xbf16> to vector<2x256xbf16>
    %cst_17 = arith.constant dense<0.000000e+00> : vector<2x64xf32>
    %64 = tpu.matmul %63, %59, %cst_17 {dimension_numbers = #tpu.dot_dimension_numbers<[1], [0], [0], [1], [0, 0, 1, 1], [], []>} : vector<2x256xbf16>, vector<256x64xbf16>, vector<2x64xf32> -> vector<2x64xf32>
    %65 = tpu.concatenate %62, %64 in 1 : vector<2x64xf32>, vector<2x64xf32> -> vector<2x128xf32>
    %c9_i32 = arith.constant 9 : i32
    %66 = tpu.dynamic_rotate %65 by %c9_i32 dim 1 : vector<2x128xf32>, i32 -> vector<2x128xf32>
    %67 = vector.extract_strided_slice %6 {offsets = [0, 0], sizes = [1, 128], strides = [1, 1]} : vector<9x128xf32> to vector<1x128xf32>
    %68 = vector.broadcast %67 : vector<1x128xf32> to vector<2x128xf32>
    %69 = arith.mulf %66, %68 : vector<2x128xf32>
    %c0_18 = arith.constant 0 : index
    %c0_19 = arith.constant 0 : index
    %c0_20 = arith.constant 0 : index
    %70 = vector.load %arg3[%c0_18, %c0_19, %c0_20] : memref<9x2x2xf32, #tpu.memory_space<vmem>>, vector<1x2x2xf32>
    %71 = vector.shape_cast %70 : vector<1x2x2xf32> to vector<2x2xf32>
    %cst_21 = arith.constant dense<0.000000e+00> : vector<2x128xf32>
    %72 = tpu.matmul %71, %69, %cst_21 {dimension_numbers = #tpu.dot_dimension_numbers<[1], [0], [0], [1], [0, 0, 1, 1], [], []>} : vector<2x2xf32>, vector<2x128xf32>, vector<2x128xf32> -> vector<2x128xf32>
    %c8_i32 = arith.constant 8 : i32
    %73 = tpu.dynamic_rotate %65 by %c8_i32 dim 1 : vector<2x128xf32>, i32 -> vector<2x128xf32>
    %74 = vector.extract_strided_slice %6 {offsets = [1, 0], sizes = [1, 128], strides = [1, 1]} : vector<9x128xf32> to vector<1x128xf32>
    %75 = vector.broadcast %74 : vector<1x128xf32> to vector<2x128xf32>
    %76 = arith.mulf %73, %75 : vector<2x128xf32>
    %c1_22 = arith.constant 1 : index
    %c0_23 = arith.constant 0 : index
    %c0_24 = arith.constant 0 : index
    %77 = vector.load %arg3[%c1_22, %c0_23, %c0_24] : memref<9x2x2xf32, #tpu.memory_space<vmem>>, vector<1x2x2xf32>
    %78 = vector.shape_cast %77 : vector<1x2x2xf32> to vector<2x2xf32>
    %cst_25 = arith.constant dense<0.000000e+00> : vector<2x128xf32>
    %79 = tpu.matmul %78, %76, %cst_25 {dimension_numbers = #tpu.dot_dimension_numbers<[1], [0], [0], [1], [0, 0, 1, 1], [], []>} : vector<2x2xf32>, vector<2x128xf32>, vector<2x128xf32> -> vector<2x128xf32>
    %80 = arith.addf %72, %79 : vector<2x128xf32>
    %c7_i32 = arith.constant 7 : i32
    %81 = tpu.dynamic_rotate %65 by %c7_i32 dim 1 : vector<2x128xf32>, i32 -> vector<2x128xf32>
    %82 = vector.extract_strided_slice %6 {offsets = [2, 0], sizes = [1, 128], strides = [1, 1]} : vector<9x128xf32> to vector<1x128xf32>
    %83 = vector.broadcast %82 : vector<1x128xf32> to vector<2x128xf32>
    %84 = arith.mulf %81, %83 : vector<2x128xf32>
    %c2 = arith.constant 2 : index
    %c0_26 = arith.constant 0 : index
    %c0_27 = arith.constant 0 : index
    %85 = vector.load %arg3[%c2, %c0_26, %c0_27] : memref<9x2x2xf32, #tpu.memory_space<vmem>>, vector<1x2x2xf32>
    %86 = vector.shape_cast %85 : vector<1x2x2xf32> to vector<2x2xf32>
    %cst_28 = arith.constant dense<0.000000e+00> : vector<2x128xf32>
    %87 = tpu.matmul %86, %84, %cst_28 {dimension_numbers = #tpu.dot_dimension_numbers<[1], [0], [0], [1], [0, 0, 1, 1], [], []>} : vector<2x2xf32>, vector<2x128xf32>, vector<2x128xf32> -> vector<2x128xf32>
    %88 = arith.addf %80, %87 : vector<2x128xf32>
    %c1_i32_29 = arith.constant 1 : i32
    %89 = tpu.dynamic_rotate %65 by %c1_i32_29 dim 1 : vector<2x128xf32>, i32 -> vector<2x128xf32>
    %90 = vector.extract_strided_slice %6 {offsets = [3, 0], sizes = [1, 128], strides = [1, 1]} : vector<9x128xf32> to vector<1x128xf32>
    %91 = vector.broadcast %90 : vector<1x128xf32> to vector<2x128xf32>
    %92 = arith.mulf %89, %91 : vector<2x128xf32>
    %c3 = arith.constant 3 : index
    %c0_30 = arith.constant 0 : index
    %c0_31 = arith.constant 0 : index
    %93 = vector.load %arg3[%c3, %c0_30, %c0_31] : memref<9x2x2xf32, #tpu.memory_space<vmem>>, vector<1x2x2xf32>
    %94 = vector.shape_cast %93 : vector<1x2x2xf32> to vector<2x2xf32>
    %cst_32 = arith.constant dense<0.000000e+00> : vector<2x128xf32>
    %95 = tpu.matmul %94, %92, %cst_32 {dimension_numbers = #tpu.dot_dimension_numbers<[1], [0], [0], [1], [0, 0, 1, 1], [], []>} : vector<2x2xf32>, vector<2x128xf32>, vector<2x128xf32> -> vector<2x128xf32>
    %96 = arith.addf %88, %95 : vector<2x128xf32>
    %c4 = arith.constant 4 : index
    %c0_33 = arith.constant 0 : index
    %c0_34 = arith.constant 0 : index
    %97 = vector.load %arg3[%c4, %c0_33, %c0_34] : memref<9x2x2xf32, #tpu.memory_space<vmem>>, vector<1x2x2xf32>
    %98 = vector.shape_cast %97 : vector<1x2x2xf32> to vector<2x2xf32>
    %cst_35 = arith.constant dense<0.000000e+00> : vector<2x128xf32>
    %99 = tpu.matmul %98, %65, %cst_35 {dimension_numbers = #tpu.dot_dimension_numbers<[1], [0], [0], [1], [0, 0, 1, 1], [], []>} : vector<2x2xf32>, vector<2x128xf32>, vector<2x128xf32> -> vector<2x128xf32>
    %100 = arith.addf %96, %99 : vector<2x128xf32>
    %c127_i32 = arith.constant 127 : i32
    %101 = tpu.dynamic_rotate %65 by %c127_i32 dim 1 : vector<2x128xf32>, i32 -> vector<2x128xf32>
    %102 = vector.extract_strided_slice %6 {offsets = [5, 0], sizes = [1, 128], strides = [1, 1]} : vector<9x128xf32> to vector<1x128xf32>
    %103 = vector.broadcast %102 : vector<1x128xf32> to vector<2x128xf32>
    %104 = arith.mulf %101, %103 : vector<2x128xf32>
    %c5 = arith.constant 5 : index
    %c0_36 = arith.constant 0 : index
    %c0_37 = arith.constant 0 : index
    %105 = vector.load %arg3[%c5, %c0_36, %c0_37] : memref<9x2x2xf32, #tpu.memory_space<vmem>>, vector<1x2x2xf32>
    %106 = vector.shape_cast %105 : vector<1x2x2xf32> to vector<2x2xf32>
    %cst_38 = arith.constant dense<0.000000e+00> : vector<2x128xf32>
    %107 = tpu.matmul %106, %104, %cst_38 {dimension_numbers = #tpu.dot_dimension_numbers<[1], [0], [0], [1], [0, 0, 1, 1], [], []>} : vector<2x2xf32>, vector<2x128xf32>, vector<2x128xf32> -> vector<2x128xf32>
    %108 = arith.addf %100, %107 : vector<2x128xf32>
    %c121_i32 = arith.constant 121 : i32
    %109 = tpu.dynamic_rotate %65 by %c121_i32 dim 1 : vector<2x128xf32>, i32 -> vector<2x128xf32>
    %110 = vector.extract_strided_slice %6 {offsets = [6, 0], sizes = [1, 128], strides = [1, 1]} : vector<9x128xf32> to vector<1x128xf32>
    %111 = vector.broadcast %110 : vector<1x128xf32> to vector<2x128xf32>
    %112 = arith.mulf %109, %111 : vector<2x128xf32>
    %c6 = arith.constant 6 : index
    %c0_39 = arith.constant 0 : index
    %c0_40 = arith.constant 0 : index
    %113 = vector.load %arg3[%c6, %c0_39, %c0_40] : memref<9x2x2xf32, #tpu.memory_space<vmem>>, vector<1x2x2xf32>
    %114 = vector.shape_cast %113 : vector<1x2x2xf32> to vector<2x2xf32>
    %cst_41 = arith.constant dense<0.000000e+00> : vector<2x128xf32>
    %115 = tpu.matmul %114, %112, %cst_41 {dimension_numbers = #tpu.dot_dimension_numbers<[1], [0], [0], [1], [0, 0, 1, 1], [], []>} : vector<2x2xf32>, vector<2x128xf32>, vector<2x128xf32> -> vector<2x128xf32>
    %116 = arith.addf %108, %115 : vector<2x128xf32>
    %c120_i32 = arith.constant 120 : i32
    %117 = tpu.dynamic_rotate %65 by %c120_i32 dim 1 : vector<2x128xf32>, i32 -> vector<2x128xf32>
    %118 = vector.extract_strided_slice %6 {offsets = [7, 0], sizes = [1, 128], strides = [1, 1]} : vector<9x128xf32> to vector<1x128xf32>
    %119 = vector.broadcast %118 : vector<1x128xf32> to vector<2x128xf32>
    %120 = arith.mulf %117, %119 : vector<2x128xf32>
    %c7 = arith.constant 7 : index
    %c0_42 = arith.constant 0 : index
    %c0_43 = arith.constant 0 : index
    %121 = vector.load %arg3[%c7, %c0_42, %c0_43] : memref<9x2x2xf32, #tpu.memory_space<vmem>>, vector<1x2x2xf32>
    %122 = vector.shape_cast %121 : vector<1x2x2xf32> to vector<2x2xf32>
    %cst_44 = arith.constant dense<0.000000e+00> : vector<2x128xf32>
    %123 = tpu.matmul %122, %120, %cst_44 {dimension_numbers = #tpu.dot_dimension_numbers<[1], [0], [0], [1], [0, 0, 1, 1], [], []>} : vector<2x2xf32>, vector<2x128xf32>, vector<2x128xf32> -> vector<2x128xf32>
    %124 = arith.addf %116, %123 : vector<2x128xf32>
    %c119_i32 = arith.constant 119 : i32
    %125 = tpu.dynamic_rotate %65 by %c119_i32 dim 1 : vector<2x128xf32>, i32 -> vector<2x128xf32>
    %126 = vector.extract_strided_slice %6 {offsets = [8, 0], sizes = [1, 128], strides = [1, 1]} : vector<9x128xf32> to vector<1x128xf32>
    %127 = vector.broadcast %126 : vector<1x128xf32> to vector<2x128xf32>
    %128 = arith.mulf %125, %127 : vector<2x128xf32>
    %c8 = arith.constant 8 : index
    %c0_45 = arith.constant 0 : index
    %c0_46 = arith.constant 0 : index
    %129 = vector.load %arg3[%c8, %c0_45, %c0_46] : memref<9x2x2xf32, #tpu.memory_space<vmem>>, vector<1x2x2xf32>
    %130 = vector.shape_cast %129 : vector<1x2x2xf32> to vector<2x2xf32>
    %cst_47 = arith.constant dense<0.000000e+00> : vector<2x128xf32>
    %131 = tpu.matmul %130, %128, %cst_47 {dimension_numbers = #tpu.dot_dimension_numbers<[1], [0], [0], [1], [0, 0, 1, 1], [], []>} : vector<2x2xf32>, vector<2x128xf32>, vector<2x128xf32> -> vector<2x128xf32>
    %132 = arith.addf %124, %131 : vector<2x128xf32>
    %c0_48 = arith.constant 0 : index
    %c0_49 = arith.constant 0 : index
    %133 = vector.load %arg4[%c0_48, %c0_49] : memref<2x1xf32, #tpu.memory_space<vmem>>, vector<2x1xf32>
    %134 = vector.broadcast %133 : vector<2x1xf32> to vector<2x128xf32>
    %135 = arith.addf %132, %134 : vector<2x128xf32>
    %cst_50 = arith.constant 0.000000e+00 : f32
    %136 = vector.broadcast %cst_50 : f32 to vector<2x128xf32>
    %137 = arith.maximumf %135, %136 : vector<2x128xf32>
    %c0_51 = arith.constant 0 : index
    %c0_52 = arith.constant 0 : index
    %138 = vector.load %arg11[%c0_51, %c0_52] : memref<64x256xbf16, #tpu.memory_space<vmem>>, vector<64x256xbf16>
    %139 = arith.truncf %137 : vector<2x128xf32> to vector<2x128xbf16>
    %140 = vector.extract_strided_slice %139 {offsets = [0, 0], sizes = [2, 64], strides = [1, 1]} : vector<2x128xbf16> to vector<2x64xbf16>
    %cst_53 = arith.constant dense<0.000000e+00> : vector<2x256xf32>
    %141 = tpu.matmul %140, %138, %cst_53 {dimension_numbers = #tpu.dot_dimension_numbers<[1], [0], [0], [1], [0, 0, 1, 1], [], []>} : vector<2x64xbf16>, vector<64x256xbf16>, vector<2x256xf32> -> vector<2x256xf32>
    %142 = vector.extract_strided_slice %139 {offsets = [0, 64], sizes = [2, 64], strides = [1, 1]} : vector<2x128xbf16> to vector<2x64xbf16>
    %cst_54 = arith.constant dense<0.000000e+00> : vector<2x256xf32>
    %143 = tpu.matmul %142, %138, %cst_54 {dimension_numbers = #tpu.dot_dimension_numbers<[1], [0], [0], [1], [0, 0, 1, 1], [], []>} : vector<2x64xbf16>, vector<64x256xbf16>, vector<2x256xf32> -> vector<2x256xf32>
    %144 = tpu.concatenate %141, %143 in 1 : vector<2x256xf32>, vector<2x256xf32> -> vector<2x512xf32>
    %c0_55 = arith.constant 0 : index
    %c0_56 = arith.constant 0 : index
    %145 = vector.load %arg5[%c0_55, %c0_56] : memref<4x2xf32, #tpu.memory_space<vmem>>, vector<4x2xf32>
    %cst_57 = arith.constant dense<0.000000e+00> : vector<4x512xf32>
    %146 = tpu.matmul %145, %144, %cst_57 {dimension_numbers = #tpu.dot_dimension_numbers<[1], [0], [0], [1], [0, 0, 1, 1], [], []>} : vector<4x2xf32>, vector<2x512xf32>, vector<4x512xf32> -> vector<4x512xf32>
    %c0_58 = arith.constant 0 : index
    %c0_59 = arith.constant 0 : index
    %147 = vector.load %arg6[%c0_58, %c0_59] : memref<4x1xf32, #tpu.memory_space<vmem>>, vector<4x1xf32>
    %148 = vector.broadcast %147 : vector<4x1xf32> to vector<4x512xf32>
    %149 = arith.addf %146, %148 : vector<4x512xf32>
    %150 = arith.negf %149 : vector<4x512xf32>
    %151 = math.exp %150 : vector<4x512xf32>
    %cst_60 = arith.constant 1.000000e+00 : f32
    %152 = vector.broadcast %cst_60 : f32 to vector<4x512xf32>
    %153 = arith.addf %152, %151 : vector<4x512xf32>
    %154 = arith.divf %152, %153 : vector<4x512xf32>
    %c17_i32_61 = arith.constant 17 : i32
    %155 = tpu.dynamic_rotate %17 by %c17_i32_61 dim 1 : vector<4x512xf32>, i32 -> vector<4x512xf32>
    %156 = vector.extract_strided_slice %5 {offsets = [0, 0], sizes = [1, 512], strides = [1, 1]} : vector<9x512xf32> to vector<1x512xf32>
    %157 = vector.broadcast %156 : vector<1x512xf32> to vector<4x512xf32>
    %158 = arith.mulf %155, %157 : vector<4x512xf32>
    %c0_62 = arith.constant 0 : index
    %c0_63 = arith.constant 0 : index
    %c0_64 = arith.constant 0 : index
    %159 = vector.load %arg7[%c0_62, %c0_63, %c0_64] : memref<9x4x4xf32, #tpu.memory_space<vmem>>, vector<1x4x4xf32>
    %160 = vector.shape_cast %159 : vector<1x4x4xf32> to vector<4x4xf32>
    %cst_65 = arith.constant dense<0.000000e+00> : vector<4x512xf32>
    %161 = tpu.matmul %160, %158, %cst_65 {dimension_numbers = #tpu.dot_dimension_numbers<[1], [0], [0], [1], [0, 0, 1, 1], [], []>} : vector<4x4xf32>, vector<4x512xf32>, vector<4x512xf32> -> vector<4x512xf32>
    %c16_i32_66 = arith.constant 16 : i32
    %162 = tpu.dynamic_rotate %17 by %c16_i32_66 dim 1 : vector<4x512xf32>, i32 -> vector<4x512xf32>
    %163 = vector.extract_strided_slice %5 {offsets = [1, 0], sizes = [1, 512], strides = [1, 1]} : vector<9x512xf32> to vector<1x512xf32>
    %164 = vector.broadcast %163 : vector<1x512xf32> to vector<4x512xf32>
    %165 = arith.mulf %162, %164 : vector<4x512xf32>
    %c1_67 = arith.constant 1 : index
    %c0_68 = arith.constant 0 : index
    %c0_69 = arith.constant 0 : index
    %166 = vector.load %arg7[%c1_67, %c0_68, %c0_69] : memref<9x4x4xf32, #tpu.memory_space<vmem>>, vector<1x4x4xf32>
    %167 = vector.shape_cast %166 : vector<1x4x4xf32> to vector<4x4xf32>
    %cst_70 = arith.constant dense<0.000000e+00> : vector<4x512xf32>
    %168 = tpu.matmul %167, %165, %cst_70 {dimension_numbers = #tpu.dot_dimension_numbers<[1], [0], [0], [1], [0, 0, 1, 1], [], []>} : vector<4x4xf32>, vector<4x512xf32>, vector<4x512xf32> -> vector<4x512xf32>
    %169 = arith.addf %161, %168 : vector<4x512xf32>
    %c15_i32_71 = arith.constant 15 : i32
    %170 = tpu.dynamic_rotate %17 by %c15_i32_71 dim 1 : vector<4x512xf32>, i32 -> vector<4x512xf32>
    %171 = vector.extract_strided_slice %5 {offsets = [2, 0], sizes = [1, 512], strides = [1, 1]} : vector<9x512xf32> to vector<1x512xf32>
    %172 = vector.broadcast %171 : vector<1x512xf32> to vector<4x512xf32>
    %173 = arith.mulf %170, %172 : vector<4x512xf32>
    %c2_72 = arith.constant 2 : index
    %c0_73 = arith.constant 0 : index
    %c0_74 = arith.constant 0 : index
    %174 = vector.load %arg7[%c2_72, %c0_73, %c0_74] : memref<9x4x4xf32, #tpu.memory_space<vmem>>, vector<1x4x4xf32>
    %175 = vector.shape_cast %174 : vector<1x4x4xf32> to vector<4x4xf32>
    %cst_75 = arith.constant dense<0.000000e+00> : vector<4x512xf32>
    %176 = tpu.matmul %175, %173, %cst_75 {dimension_numbers = #tpu.dot_dimension_numbers<[1], [0], [0], [1], [0, 0, 1, 1], [], []>} : vector<4x4xf32>, vector<4x512xf32>, vector<4x512xf32> -> vector<4x512xf32>
    %177 = arith.addf %169, %176 : vector<4x512xf32>
    %c1_i32_76 = arith.constant 1 : i32
    %178 = tpu.dynamic_rotate %17 by %c1_i32_76 dim 1 : vector<4x512xf32>, i32 -> vector<4x512xf32>
    %179 = vector.extract_strided_slice %5 {offsets = [3, 0], sizes = [1, 512], strides = [1, 1]} : vector<9x512xf32> to vector<1x512xf32>
    %180 = vector.broadcast %179 : vector<1x512xf32> to vector<4x512xf32>
    %181 = arith.mulf %178, %180 : vector<4x512xf32>
    %c3_77 = arith.constant 3 : index
    %c0_78 = arith.constant 0 : index
    %c0_79 = arith.constant 0 : index
    %182 = vector.load %arg7[%c3_77, %c0_78, %c0_79] : memref<9x4x4xf32, #tpu.memory_space<vmem>>, vector<1x4x4xf32>
    %183 = vector.shape_cast %182 : vector<1x4x4xf32> to vector<4x4xf32>
    %cst_80 = arith.constant dense<0.000000e+00> : vector<4x512xf32>
    %184 = tpu.matmul %183, %181, %cst_80 {dimension_numbers = #tpu.dot_dimension_numbers<[1], [0], [0], [1], [0, 0, 1, 1], [], []>} : vector<4x4xf32>, vector<4x512xf32>, vector<4x512xf32> -> vector<4x512xf32>
    %185 = arith.addf %177, %184 : vector<4x512xf32>
    %c4_81 = arith.constant 4 : index
    %c0_82 = arith.constant 0 : index
    %c0_83 = arith.constant 0 : index
    %186 = vector.load %arg7[%c4_81, %c0_82, %c0_83] : memref<9x4x4xf32, #tpu.memory_space<vmem>>, vector<1x4x4xf32>
    %187 = vector.shape_cast %186 : vector<1x4x4xf32> to vector<4x4xf32>
    %cst_84 = arith.constant dense<0.000000e+00> : vector<4x512xf32>
    %188 = tpu.matmul %187, %17, %cst_84 {dimension_numbers = #tpu.dot_dimension_numbers<[1], [0], [0], [1], [0, 0, 1, 1], [], []>} : vector<4x4xf32>, vector<4x512xf32>, vector<4x512xf32> -> vector<4x512xf32>
    %189 = arith.addf %185, %188 : vector<4x512xf32>
    %c511_i32_85 = arith.constant 511 : i32
    %190 = tpu.dynamic_rotate %17 by %c511_i32_85 dim 1 : vector<4x512xf32>, i32 -> vector<4x512xf32>
    %191 = vector.extract_strided_slice %5 {offsets = [5, 0], sizes = [1, 512], strides = [1, 1]} : vector<9x512xf32> to vector<1x512xf32>
    %192 = vector.broadcast %191 : vector<1x512xf32> to vector<4x512xf32>
    %193 = arith.mulf %190, %192 : vector<4x512xf32>
    %c5_86 = arith.constant 5 : index
    %c0_87 = arith.constant 0 : index
    %c0_88 = arith.constant 0 : index
    %194 = vector.load %arg7[%c5_86, %c0_87, %c0_88] : memref<9x4x4xf32, #tpu.memory_space<vmem>>, vector<1x4x4xf32>
    %195 = vector.shape_cast %194 : vector<1x4x4xf32> to vector<4x4xf32>
    %cst_89 = arith.constant dense<0.000000e+00> : vector<4x512xf32>
    %196 = tpu.matmul %195, %193, %cst_89 {dimension_numbers = #tpu.dot_dimension_numbers<[1], [0], [0], [1], [0, 0, 1, 1], [], []>} : vector<4x4xf32>, vector<4x512xf32>, vector<4x512xf32> -> vector<4x512xf32>
    %197 = arith.addf %189, %196 : vector<4x512xf32>
    %c497_i32_90 = arith.constant 497 : i32
    %198 = tpu.dynamic_rotate %17 by %c497_i32_90 dim 1 : vector<4x512xf32>, i32 -> vector<4x512xf32>
    %199 = vector.extract_strided_slice %5 {offsets = [6, 0], sizes = [1, 512], strides = [1, 1]} : vector<9x512xf32> to vector<1x512xf32>
    %200 = vector.broadcast %199 : vector<1x512xf32> to vector<4x512xf32>
    %201 = arith.mulf %198, %200 : vector<4x512xf32>
    %c6_91 = arith.constant 6 : index
    %c0_92 = arith.constant 0 : index
    %c0_93 = arith.constant 0 : index
    %202 = vector.load %arg7[%c6_91, %c0_92, %c0_93] : memref<9x4x4xf32, #tpu.memory_space<vmem>>, vector<1x4x4xf32>
    %203 = vector.shape_cast %202 : vector<1x4x4xf32> to vector<4x4xf32>
    %cst_94 = arith.constant dense<0.000000e+00> : vector<4x512xf32>
    %204 = tpu.matmul %203, %201, %cst_94 {dimension_numbers = #tpu.dot_dimension_numbers<[1], [0], [0], [1], [0, 0, 1, 1], [], []>} : vector<4x4xf32>, vector<4x512xf32>, vector<4x512xf32> -> vector<4x512xf32>
    %205 = arith.addf %197, %204 : vector<4x512xf32>
    %c496_i32_95 = arith.constant 496 : i32
    %206 = tpu.dynamic_rotate %17 by %c496_i32_95 dim 1 : vector<4x512xf32>, i32 -> vector<4x512xf32>
    %207 = vector.extract_strided_slice %5 {offsets = [7, 0], sizes = [1, 512], strides = [1, 1]} : vector<9x512xf32> to vector<1x512xf32>
    %208 = vector.broadcast %207 : vector<1x512xf32> to vector<4x512xf32>
    %209 = arith.mulf %206, %208 : vector<4x512xf32>
    %c7_96 = arith.constant 7 : index
    %c0_97 = arith.constant 0 : index
    %c0_98 = arith.constant 0 : index
    %210 = vector.load %arg7[%c7_96, %c0_97, %c0_98] : memref<9x4x4xf32, #tpu.memory_space<vmem>>, vector<1x4x4xf32>
    %211 = vector.shape_cast %210 : vector<1x4x4xf32> to vector<4x4xf32>
    %cst_99 = arith.constant dense<0.000000e+00> : vector<4x512xf32>
    %212 = tpu.matmul %211, %209, %cst_99 {dimension_numbers = #tpu.dot_dimension_numbers<[1], [0], [0], [1], [0, 0, 1, 1], [], []>} : vector<4x4xf32>, vector<4x512xf32>, vector<4x512xf32> -> vector<4x512xf32>
    %213 = arith.addf %205, %212 : vector<4x512xf32>
    %c495_i32_100 = arith.constant 495 : i32
    %214 = tpu.dynamic_rotate %17 by %c495_i32_100 dim 1 : vector<4x512xf32>, i32 -> vector<4x512xf32>
    %215 = vector.extract_strided_slice %5 {offsets = [8, 0], sizes = [1, 512], strides = [1, 1]} : vector<9x512xf32> to vector<1x512xf32>
    %216 = vector.broadcast %215 : vector<1x512xf32> to vector<4x512xf32>
    %217 = arith.mulf %214, %216 : vector<4x512xf32>
    %c8_101 = arith.constant 8 : index
    %c0_102 = arith.constant 0 : index
    %c0_103 = arith.constant 0 : index
    %218 = vector.load %arg7[%c8_101, %c0_102, %c0_103] : memref<9x4x4xf32, #tpu.memory_space<vmem>>, vector<1x4x4xf32>
    %219 = vector.shape_cast %218 : vector<1x4x4xf32> to vector<4x4xf32>
    %cst_104 = arith.constant dense<0.000000e+00> : vector<4x512xf32>
    %220 = tpu.matmul %219, %217, %cst_104 {dimension_numbers = #tpu.dot_dimension_numbers<[1], [0], [0], [1], [0, 0, 1, 1], [], []>} : vector<4x4xf32>, vector<4x512xf32>, vector<4x512xf32> -> vector<4x512xf32>
    %221 = arith.addf %213, %220 : vector<4x512xf32>
    %c0_105 = arith.constant 0 : index
    %c0_106 = arith.constant 0 : index
    %222 = vector.load %arg8[%c0_105, %c0_106] : memref<4x1xf32, #tpu.memory_space<vmem>>, vector<4x1xf32>
    %223 = vector.broadcast %222 : vector<4x1xf32> to vector<4x512xf32>
    %224 = arith.addf %221, %223 : vector<4x512xf32>
    %cst_107 = arith.constant 0.000000e+00 : f32
    %225 = vector.broadcast %cst_107 : f32 to vector<4x512xf32>
    %226 = arith.maximumf %224, %225 : vector<4x512xf32>
    %c0_108 = arith.constant 0 : index
    %c0_109 = arith.constant 0 : index
    %227 = vector.load %arg9[%c0_108, %c0_109] : memref<16x4xf32, #tpu.memory_space<vmem>>, vector<16x4xf32>
    %228 = arith.mulf %226, %154 : vector<4x512xf32>
    %cst_110 = arith.constant dense<0.000000e+00> : vector<16x512xf32>
    %229 = tpu.matmul %227, %228, %cst_110 {dimension_numbers = #tpu.dot_dimension_numbers<[1], [0], [0], [1], [0, 0, 1, 1], [], []>} : vector<16x4xf32>, vector<4x512xf32>, vector<16x512xf32> -> vector<16x512xf32>
    %c0_111 = arith.constant 0 : index
    %c0_112 = arith.constant 0 : index
    %230 = vector.load %arg10[%c0_111, %c0_112] : memref<16x1xf32, #tpu.memory_space<vmem>>, vector<16x1xf32>
    %231 = vector.broadcast %230 : vector<16x1xf32> to vector<16x512xf32>
    %232 = arith.addf %229, %231 : vector<16x512xf32>
    %233 = arith.addf %232, %18 : vector<16x512xf32>
    %cst_113 = arith.constant 0.000000e+00 : f32
    %234 = vector.broadcast %cst_113 : f32 to vector<16x512xf32>
    %235 = arith.maximumf %233, %234 : vector<16x512xf32>
    %236 = vector.extract_strided_slice %235 {offsets = [0, 0], sizes = [16, 256], strides = [1, 1]} : vector<16x512xf32> to vector<16x256xf32>
    %c0_114 = arith.constant 0 : index
    %c0_115 = arith.constant 0 : index
    %c0_116 = arith.constant 0 : index
    %237 = vector.load %arg15[%c0_114, %c0_115, %c0_116] : memref<2x16x256xf32, #tpu.memory_space<vmem>>, vector<1x16x256xf32>
    %238 = vector.shape_cast %237 : vector<1x16x256xf32> to vector<16x256xf32>
    %239 = vector.shape_cast %236 : vector<16x256xf32> to vector<1x16x256xf32>
    tpu.vector_store %arg15[%c0_114, %c0_115, %c0_116], %239 {strides = array<i32>} : memref<2x16x256xf32, #tpu.memory_space<vmem>>, vector<1x16x256xf32>,
    %240 = vector.extract_strided_slice %235 {offsets = [0, 256], sizes = [16, 256], strides = [1, 1]} : vector<16x512xf32> to vector<16x256xf32>
    %c1_117 = arith.constant 1 : index
    %c0_118 = arith.constant 0 : index
    %c0_119 = arith.constant 0 : index
    %241 = vector.load %arg15[%c1_117, %c0_118, %c0_119] : memref<2x16x256xf32, #tpu.memory_space<vmem>>, vector<1x16x256xf32>
    %242 = vector.shape_cast %241 : vector<1x16x256xf32> to vector<16x256xf32>
    %243 = vector.shape_cast %240 : vector<16x256xf32> to vector<1x16x256xf32>
    tpu.vector_store %arg15[%c1_117, %c0_118, %c0_119], %243 {strides = array<i32>} : memref<2x16x256xf32, #tpu.memory_space<vmem>>, vector<1x16x256xf32>,
    return
  }
}

</mosaic_0001>

<llo_original>
// kernel: air_unit_forward.1
$region0: #{air_unit_forward.1}
  #allocation0 [shape = 'u32[]', space=smem, size = 0x4, offset = 0x4, fixed_abs, tag = 'smem constant byte address 0x4 - core index']
  #allocation1 [shape = 'u32[144,128]{1,0:T(1,128)}', space=vmem, size = 0x12000, scoped, tag = 'internal scratch']
  %s0 = inlined_call_operand.vmem [shape: f32[2,8,256], index: 0, kind: input, shape index: {}]
  %s1 = inlined_call_operand.vmem [shape: f32[32,8], index: 1, kind: input, shape index: {}]
  %s2 = inlined_call_operand.vmem [shape: f32[32,1], index: 2, kind: input, shape index: {}]
  %s3 = inlined_call_operand.vmem [shape: f32[9,2,2], index: 3, kind: input, shape index: {}]
  %s4 = inlined_call_operand.vmem [shape: f32[2,1], index: 4, kind: input, shape index: {}]
  %s5 = inlined_call_operand.vmem [shape: f32[4,2], index: 5, kind: input, shape index: {}]
  %s6 = inlined_call_operand.vmem [shape: f32[4,1], index: 6, kind: input, shape index: {}]
  %s7 = inlined_call_operand.vmem [shape: f32[9,4,4], index: 7, kind: input, shape index: {}]
  %s8 = inlined_call_operand.vmem [shape: f32[4,1], index: 8, kind: input, shape index: {}]
  %s9 = inlined_call_operand.vmem [shape: f32[16,4], index: 9, kind: input, shape index: {}]
  %s10 = inlined_call_operand.vmem [shape: f32[16,1], index: 10, kind: input, shape index: {}]
  %s11 = inlined_call_operand.vmem [shape: bf16[64,256], index: 11, kind: input, shape index: {}]
  %s12 = inlined_call_operand.vmem [shape: bf16[256,64], index: 12, kind: input, shape index: {}]
  %s13 = inlined_call_operand.vmem [shape: f32[9,512], index: 13, kind: input, shape index: {}]
  %s14 = inlined_call_operand.vmem [shape: f32[9,128], index: 14, kind: input, shape index: {}]
  %s15 = inlined_call_operand.vmem [shape: f32[2,16,256], index: 15, kind: output, shape index: {}]
  %s16 = sld [smem:[#allocation0]]
  $region70: #{air_unit_forward.1} parent=0
    _
  %s18 = ssub.s32 1, %s16
  %s19 = scalar_select 0, %s18, %s16
  // Predicated region
  $region2: #{air_unit_forward.1} parent=0 // pred_check
    _
  $region3: #{air_unit_forward.1} parent=0 // pred_check_branch
    %21 = sbr.rel (0) target = $region5
  $region4: #{air_unit_forward.1} parent=0 // pred_region
    _
  $region5: #{air_unit_forward.1} parent=0 // pred_fallthru
    _
  // Predicated region
  $region6: #{air_unit_forward.1} parent=0 // pred_check
    _
  $region7: #{air_unit_forward.1} parent=0 // pred_check_branch
    %23 = sbr.rel (0) target = $region9
  $region8: #{air_unit_forward.1} parent=0 // pred_region
    _
  $region9: #{air_unit_forward.1} parent=0 // pred_fallthru
    _
  // Predicated region
  $region10: #{air_unit_forward.1} parent=0 // pred_check
    _
  $region11: #{air_unit_forward.1} parent=0 // pred_check_branch
    %25 = sbr.rel (0) target = $region13
  $region12: #{air_unit_forward.1} parent=0 // pred_region
    _
  $region13: #{air_unit_forward.1} parent=0 // pred_fallthru
    _
  // Predicated region
  $region14: #{air_unit_forward.1} parent=0 // pred_check
    _
  $region15: #{air_unit_forward.1} parent=0 // pred_check_branch
    %27 = sbr.rel (0) target = $region17
  $region16: #{air_unit_forward.1} parent=0 // pred_region
    _
  $region17: #{air_unit_forward.1} parent=0 // pred_fallthru
    _
  // Predicated region
  $region18: #{air_unit_forward.1} parent=0 // pred_check
    _
  $region19: #{air_unit_forward.1} parent=0 // pred_check_branch
    %29 = sbr.rel (0) target = $region21
  $region20: #{air_unit_forward.1} parent=0 // pred_region
    _
  $region21: #{air_unit_forward.1} parent=0 // pred_fallthru
    _
  // Predicated region
  $region22: #{air_unit_forward.1} parent=0 // pred_check
    _
  $region23: #{air_unit_forward.1} parent=0 // pred_check_branch
    %31 = sbr.rel (0) target = $region25
  $region24: #{air_unit_forward.1} parent=0 // pred_region
    _
  $region25: #{air_unit_forward.1} parent=0 // pred_fallthru
    _
  // Predicated region
  $region26: #{air_unit_forward.1} parent=0 // pred_check
    _
  $region27: #{air_unit_forward.1} parent=0 // pred_check_branch
    %33 = sbr.rel (0) target = $region29
  $region28: #{air_unit_forward.1} parent=0 // pred_region
    _
  $region29: #{air_unit_forward.1} parent=0 // pred_fallthru
    _
  // Predicated region
  $region30: #{air_unit_forward.1} parent=0 // pred_check
    _
  $region31: #{air_unit_forward.1} parent=0 // pred_check_branch
    %35 = sbr.rel (0) target = $region33
  $region32: #{air_unit_forward.1} parent=0 // pred_region
    _
  $region33: #{air_unit_forward.1} parent=0 // pred_fallthru
    _
  // Predicated region
  $region34: #{air_unit_forward.1} parent=0 // pred_check
    _
  $region35: #{air_unit_forward.1} parent=0 // pred_check_branch
    %37 = sbr.rel (0) target = $region37
  $region36: #{air_unit_forward.1} parent=0 // pred_region
    _
  $region37: #{air_unit_forward.1} parent=0 // pred_fallthru
    _
  // Predicated region
  $region38: #{air_unit_forward.1} parent=0 // pred_check
    _
  $region39: #{air_unit_forward.1} parent=0 // pred_check_branch
    %39 = sbr.rel (0) target = $region41
  $region40: #{air_unit_forward.1} parent=0 // pred_region
    _
  $region41: #{air_unit_forward.1} parent=0 // pred_fallthru
    _
  // Predicated region
  $region42: #{air_unit_forward.1} parent=0 // pred_check
    _
  $region43: #{air_unit_forward.1} parent=0 // pred_check_branch
    %41 = sbr.rel (0) target = $region45
  $region44: #{air_unit_forward.1} parent=0 // pred_region
    _
  $region45: #{air_unit_forward.1} parent=0 // pred_fallthru
    _
  // Predicated region
  $region46: #{air_unit_forward.1} parent=0 // pred_check
    _
  $region47: #{air_unit_forward.1} parent=0 // pred_check_branch
    %43 = sbr.rel (0) target = $region49
  $region48: #{air_unit_forward.1} parent=0 // pred_region
    _
  $region49: #{air_unit_forward.1} parent=0 // pred_fallthru
    _
  // Predicated region
  $region50: #{air_unit_forward.1} parent=0 // pred_check
    _
  $region51: #{air_unit_forward.1} parent=0 // pred_check_branch
    %45 = sbr.rel (0) target = $region53
  $region52: #{air_unit_forward.1} parent=0 // pred_region
    _
  $region53: #{air_unit_forward.1} parent=0 // pred_fallthru
    _
  // Predicated region
  $region54: #{air_unit_forward.1} parent=0 // pred_check
    _
  $region55: #{air_unit_forward.1} parent=0 // pred_check_branch
    %47 = sbr.rel (0) target = $region57
  $region56: #{air_unit_forward.1} parent=0 // pred_region
    _
  $region57: #{air_unit_forward.1} parent=0 // pred_fallthru
    _
  // Predicated region
  $region58: #{air_unit_forward.1} parent=0 // pred_check
    _
  $region59: #{air_unit_forward.1} parent=0 // pred_check_branch
    %49 = sbr.rel (0) target = $region61
  $region60: #{air_unit_forward.1} parent=0 // pred_region
    _
  $region61: #{air_unit_forward.1} parent=0 // pred_fallthru
    _
  %v51 = vld [vmem:[%s0] sm:$0xff]
  %v52 = vld [vmem:[%s0 + $0x8] sm:$0xff]
  %s53 = scalar_lea.vmem %s0, 16
  %v54 = vld [vmem:[%s53] sm:$0xff]
  %v55 = vld [vmem:[%s53 + $0x8] sm:$0xff]
  %v56 = vld [vmem:[%s13] sm:$0xff]
  %v57 = vld [vmem:[%s13 + $0x8] sm:$0xff]
  %v58 = vld [vmem:[%s13 + $0x10] sm:$0xff]
  %v59 = vld [vmem:[%s13 + $0x18] sm:$0xff]
  %v60 = vld [vmem:[%s13 + $0x20] sm:$0x1]
  %v61 = vld [vmem:[%s13 + $0x28] sm:$0x1]
  %v62 = vld [vmem:[%s13 + $0x30] sm:$0x1]
  %v63 = vld [vmem:[%s13 + $0x38] sm:$0x1]
  %v64 = vld [vmem:[%s14] sm:$0xff]
  %v65 = vld [vmem:[%s14 + $0x8] sm:$0x1]
  %v66 = vld [vmem:[%s1] sm:$0xff]
  %v67 = vld [vmem:[%s1 + $0x8] sm:$0xff]
  %v68 = vld [vmem:[%s1 + $0x10] sm:$0xff]
  %v69 = vld [vmem:[%s1 + $0x18] sm:$0xff]
  %v70 = vld [vmem:[%s2] sm:$0xff]
  %v71 = vld [vmem:[%s2 + $0x8] sm:$0xff]
  %v72 = vld [vmem:[%s2 + $0x10] sm:$0xff]
  %v73 = vld [vmem:[%s2 + $0x18] sm:$0xff]
  %75 = vset.pattern.permute.xlu0 0
  %76 = vperm.xlu0 %75, %v70
  %v77 = vpop.permute.xlu0 %76
  %80 = vset.pattern.permute.xlu0 0
  %81 = vperm.xlu0 %80, %v71
  %v82 = vpop.permute.xlu0 %81
  %85 = vset.pattern.permute.xlu0 0
  %86 = vperm.xlu0 %85, %v72
  %v87 = vpop.permute.xlu0 %86
  %90 = vset.pattern.permute.xlu0 0
  %91 = vperm.xlu0 %90, %v73
  %v92 = vpop.permute.xlu0 %91
  %vm94 = vcmask 64512
  %v96 = vsel %vm94, %v66, 0
  %v99 = vsel %vm94, %v67, 0
  %v102 = vsel %vm94, %v68, 0
  %v105 = vsel %vm94, %v69, 0
  %107 = vmatprep.subr.mxu0 0.0
  %108 = vmatpush1.msra.mxu0 0.0
  %109 = vmatprep.subr.mxu0 0.0
  %110 = vmatpush1.msra.mxu0 0.0
  %111 = vmatprep.subr.mxu0 0.0
  %112 = vmatpush1.msra.mxu0 0.0
  %113 = vmatprep.subr.mxu0 0.0
  %114 = vmatpush1.msra.mxu0 0.0
  %115 = vmatprep.subr.mxu0 0.0
  %116 = vmatpush1.msra.mxu0 0.0
  %117 = vmatprep.subr.mxu0 0.0
  %118 = vmatpush1.msra.mxu0 0.0
  %119 = vmatprep.subr.mxu0 0.0
  %120 = vmatpush1.msra.mxu0 0.0
  %121 = vmatprep.subr.mxu0 0.0
  %122 = vmatpush1.msra.mxu0 0.0
  %123 = vmatprep.subr.mxu0 0.0
  %124 = vmatpush1.msra.mxu0 0.0
  %125 = vmatprep.subr.mxu0 0.0
  %126 = vmatpush1.msra.mxu0 0.0
  %127 = vmatprep.subr.mxu0 0.0
  %128 = vmatpush1.msra.mxu0 0.0
  %129 = vmatprep.subr.mxu0 0.0
  %130 = vmatpush1.msra.mxu0 0.0
  %131 = vmatprep.subr.mxu0 0.0
  %132 = vmatpush1.msra.mxu0 0.0
  %133 = vmatprep.subr.mxu0 0.0
  %134 = vmatpush1.msra.mxu0 0.0
  %135 = vmatprep.subr.mxu0 0.0
  %136 = vmatpush1.msra.mxu0 0.0
  %137 = vmatprep.subr.mxu0 %v52
  %138 = vmatpush1.msra.mxu0 %v51
  %139 = vmatprep.subr.mxu0 0.0
  %140 = vmatpush2.msra.mxu0 0.0
  %141 = vmatprep.subr.mxu0 0.0
  %142 = vmatpush2.msra.mxu0 0.0
  %143 = vmatprep.subr.mxu0 0.0
  %144 = vmatpush2.msra.mxu0 0.0
  %145 = vmatprep.subr.mxu0 0.0
  %146 = vmatpush2.msra.mxu0 0.0
  %147 = vmatprep.subr.mxu0 0.0
  %148 = vmatpush2.msra.mxu0 0.0
  %149 = vmatprep.subr.mxu0 0.0
  %150 = vmatpush2.msra.mxu0 0.0
  %151 = vmatprep.subr.mxu0 0.0
  %152 = vmatpush2.msra.mxu0 0.0
  %153 = vmatprep.subr.mxu0 0.0
  %154 = vmatpush2.msra.mxu0 0.0
  %155 = vmatprep.subr.mxu0 0.0
  %156 = vmatpush2.msra.mxu0 0.0
  %157 = vmatprep.subr.mxu0 0.0
  %158 = vmatpush2.msra.mxu0 0.0
  %159 = vmatprep.subr.mxu0 0.0
  %160 = vmatpush2.msra.mxu0 0.0
  %161 = vmatprep.subr.mxu0 0.0
  %162 = vmatpush2.msra.mxu0 0.0
  %163 = vmatprep.subr.mxu0 0.0
  %164 = vmatpush2.msra.mxu0 0.0
  %165 = vmatprep.subr.mxu0 0.0
  %166 = vmatpush2.msra.mxu0 0.0
  %167 = vmatprep.subr.mxu0 0.0
  %168 = vmatpush2.msra.mxu0 0.0
  %169 = vmatprep.subr.mxu0 0.0
  %170 = vmatpush2.msra.mxu0 0.0
  %171 = vmatprep.mubr.f32.mxu0 0.0
  %172 = vmatmul.mubr.f32.gmra.mxu0 %v96
  %v173 = vpop.f32.mrf.mxu0
  %v174 = vadd.f32 %v77, %v173
  %v175 = vpop.f32.mrf.mxu0
  %v176 = vadd.f32 %v77, %v175
  %177 = vmatprep.mubr.f32.mxu0 0.0
  %178 = vmatmul.mubr.f32.gmra.mxu0 %v99
  %v179 = vpop.f32.mrf.mxu0
  %v180 = vadd.f32 %v82, %v179
  %v181 = vpop.f32.mrf.mxu0
  %v182 = vadd.f32 %v82, %v181
  %183 = vmatprep.mubr.f32.mxu0 0.0
  %184 = vmatmul.mubr.f32.gmra.mxu0 %v102
  %v185 = vpop.f32.mrf.mxu0
  %v186 = vadd.f32 %v87, %v185
  %v187 = vpop.f32.mrf.mxu0
  %v188 = vadd.f32 %v87, %v187
  %189 = vmatprep.mubr.f32.mxu0 0.0
  %190 = vmatmul.mubr.f32.gmra.mxu0 %v105
  %v191 = vpop.f32.mrf.mxu0
  %v192 = vadd.f32 %v92, %v191
  %v193 = vpop.f32.mrf.mxu0
  %v194 = vadd.f32 %v92, %v193
  %195 = vdwg.mxu0
  %196 = vmatprep.subr.mxu0 0.0
  %197 = vmatpush1.msra.mxu0 0.0
  %198 = vmatprep.subr.mxu0 0.0
  %199 = vmatpush1.msra.mxu0 0.0
  %200 = vmatprep.subr.mxu0 0.0
  %201 = vmatpush1.msra.mxu0 0.0
  %202 = vmatprep.subr.mxu0 0.0
  %203 = vmatpush1.msra.mxu0 0.0
  %204 = vmatprep.subr.mxu0 0.0
  %205 = vmatpush1.msra.mxu0 0.0
  %206 = vmatprep.subr.mxu0 0.0
  %207 = vmatpush1.msra.mxu0 0.0
  %208 = vmatprep.subr.mxu0 0.0
  %209 = vmatpush1.msra.mxu0 0.0
  %210 = vmatprep.subr.mxu0 0.0
  %211 = vmatpush1.msra.mxu0 0.0
  %212 = vmatprep.subr.mxu0 0.0
  %213 = vmatpush1.msra.mxu0 0.0
  %214 = vmatprep.subr.mxu0 0.0
  %215 = vmatpush1.msra.mxu0 0.0
  %216 = vmatprep.subr.mxu0 0.0
  %217 = vmatpush1.msra.mxu0 0.0
  %218 = vmatprep.subr.mxu0 0.0
  %219 = vmatpush1.msra.mxu0 0.0
  %220 = vmatprep.subr.mxu0 0.0
  %221 = vmatpush1.msra.mxu0 0.0
  %222 = vmatprep.subr.mxu0 0.0
  %223 = vmatpush1.msra.mxu0 0.0
  %224 = vmatprep.subr.mxu0 0.0
  %225 = vmatpush1.msra.mxu0 0.0
  %226 = vmatprep.subr.mxu0 %v55
  %227 = vmatpush1.msra.mxu0 %v54
  %228 = vmatprep.subr.mxu0 0.0
  %229 = vmatpush2.msra.mxu0 0.0
  %230 = vmatprep.subr.mxu0 0.0
  %231 = vmatpush2.msra.mxu0 0.0
  %232 = vmatprep.subr.mxu0 0.0
  %233 = vmatpush2.msra.mxu0 0.0
  %234 = vmatprep.subr.mxu0 0.0
  %235 = vmatpush2.msra.mxu0 0.0
  %236 = vmatprep.subr.mxu0 0.0
  %237 = vmatpush2.msra.mxu0 0.0
  %238 = vmatprep.subr.mxu0 0.0
  %239 = vmatpush2.msra.mxu0 0.0
  %240 = vmatprep.subr.mxu0 0.0
  %241 = vmatpush2.msra.mxu0 0.0
  %242 = vmatprep.subr.mxu0 0.0
  %243 = vmatpush2.msra.mxu0 0.0
  %244 = vmatprep.subr.mxu0 0.0
  %245 = vmatpush2.msra.mxu0 0.0
  %246 = vmatprep.subr.mxu0 0.0
  %247 = vmatpush2.msra.mxu0 0.0
  %248 = vmatprep.subr.mxu0 0.0
  %249 = vmatpush2.msra.mxu0 0.0
  %250 = vmatprep.subr.mxu0 0.0
  %251 = vmatpush2.msra.mxu0 0.0
  %252 = vmatprep.subr.mxu0 0.0
  %253 = vmatpush2.msra.mxu0 0.0
  %254 = vmatprep.subr.mxu0 0.0
  %255 = vmatpush2.msra.mxu0 0.0
  %256 = vmatprep.subr.mxu0 0.0
  %257 = vmatpush2.msra.mxu0 0.0
  %258 = vmatprep.subr.mxu0 0.0
  %259 = vmatpush2.msra.mxu0 0.0
  %260 = vmatprep.mubr.f32.mxu0 0.0
  %261 = vmatmul.mubr.f32.gmra.mxu0 %v96
  %v262 = vpop.f32.mrf.mxu0
  %v263 = vadd.f32 %v77, %v262
  %v264 = vpop.f32.mrf.mxu0
  %v265 = vadd.f32 %v77, %v264
  %266 = vmatprep.mubr.f32.mxu0 0.0
  %267 = vmatmul.mubr.f32.gmra.mxu0 %v99
  %v268 = vpop.f32.mrf.mxu0
  %v269 = vadd.f32 %v82, %v268
  %v270 = vpop.f32.mrf.mxu0
  %v271 = vadd.f32 %v82, %v270
  %272 = vmatprep.mubr.f32.mxu0 0.0
  %273 = vmatmul.mubr.f32.gmra.mxu0 %v102
  %v274 = vpop.f32.mrf.mxu0
  %v275 = vadd.f32 %v87, %v274
  %v276 = vpop.f32.mrf.mxu0
  %v277 = vadd.f32 %v87, %v276
  %278 = vmatprep.mubr.f32.mxu0 0.0
  %279 = vmatmul.mubr.f32.gmra.mxu0 %v105
  %v280 = vpop.f32.mrf.mxu0
  %v281 = vadd.f32 %v92, %v280
  %v282 = vpop.f32.mrf.mxu0
  %v283 = vadd.f32 %v92, %v282
  %284 = vdwg.mxu0
  %v285 = vmax.f32 %v174, 0.0
  %v286 = vmax.f32 %v176, 0.0
  %v287 = vmax.f32 %v263, 0.0
  %v288 = vmax.f32 %v265, 0.0
  %v289 = vmax.f32 %v180, 0.0
  %v290 = vmax.f32 %v182, 0.0
  %v291 = vmax.f32 %v269, 0.0
  %v292 = vmax.f32 %v271, 0.0
  %293 = vrot.lane.b32.xlu0 %v285, 17
  %v294 = vpop.permute.xlu0 %293
  %295 = vrot.lane.b32.xlu0 %v286, 17
  %v296 = vpop.permute.xlu0 %295
  %297 = vrot.lane.b32.xlu0 %v287, 17
  %v298 = vpop.permute.xlu0 %297
  %299 = vrot.lane.b32.xlu0 %v288, 17
  %v300 = vpop.permute.xlu0 %299
  %v301 = vlaneseq
  %v302 = vand.u32 %v301, 127
  %vm303 = vcmp.lt.s32.totalorder %v302, 17
  %v304 = vsel %vm303, %v298, %v300
  %v305 = vsel %vm303, %v296, %v298
  %v306 = vsel %vm303, %v294, %v296
  %v307 = vsel %vm303, %v300, %v294
  %v308 = vlaneseq
  %v309 = vshrl.u32 %v308, 7
  %v310 = vsub.s32 0, %v309
  %v311 = vrot.slane %v56, %v310
  %v312 = vlaneseq
  %v313 = vshrl.u32 %v312, 7
  %v314 = vsub.s32 0, %v313
  %v315 = vrot.slane %v57, %v314
  %v316 = vlaneseq
  %v317 = vshrl.u32 %v316, 7
  %v318 = vsub.s32 0, %v317
  %v319 = vrot.slane %v58, %v318
  %v320 = vlaneseq
  %v321 = vshrl.u32 %v320, 7
  %v322 = vsub.s32 0, %v321
  %v323 = vrot.slane %v59, %v322
  %v324 = vmul.f32 %v307, %v311
  %v325 = vmul.f32 %v306, %v315
  %v326 = vmul.f32 %v305, %v319
  %v327 = vmul.f32 %v304, %v323
  %v328 = vmax.f32 %v285, %v324
  %v329 = vmax.f32 %v286, %v325
  %v330 = vmax.f32 %v287, %v326
  %v331 = vmax.f32 %v288, %v327
  %332 = vrot.lane.b32.xlu0 %v285, 16
  %v333 = vpop.permute.xlu0 %332
  %334 = vrot.lane.b32.xlu0 %v286, 16
  %v335 = vpop.permute.xlu0 %334
  %336 = vrot.lane.b32.xlu0 %v287, 16
  %v337 = vpop.permute.xlu0 %336
  %338 = vrot.lane.b32.xlu0 %v288, 16
  %v339 = vpop.permute.xlu0 %338
  %vm340 = vcmp.lt.s32.totalorder %v302, 16
  %v341 = vsel %vm340, %v337, %v339
  %v342 = vsel %vm340, %v335, %v337
  %v343 = vsel %vm340, %v333, %v335
  %v344 = vsel %vm340, %v339, %v333
  %v345 = vlaneseq
  %v346 = vshrl.u32 %v345, 7
  %v347 = vsub.s32 1, %v346
  %v348 = vrot.slane %v56, %v347
  %v349 = vlaneseq
  %v350 = vshrl.u32 %v349, 7
  %v351 = vsub.s32 1, %v350
  %v352 = vrot.slane %v57, %v351
  %v353 = vlaneseq
  %v354 = vshrl.u32 %v353, 7
  %v355 = vsub.s32 1, %v354
  %v356 = vrot.slane %v58, %v355
  %v357 = vlaneseq
  %v358 = vshrl.u32 %v357, 7
  %v359 = vsub.s32 1, %v358
  %v360 = vrot.slane %v59, %v359
  %v361 = vmul.f32 %v344, %v348
  %v362 = vmul.f32 %v343, %v352
  %v363 = vmul.f32 %v342, %v356
  %v364 = vmul.f32 %v341, %v360
  %v365 = vmax.f32 %v328, %v361
  %v366 = vmax.f32 %v329, %v362
  %v367 = vmax.f32 %v330, %v363
  %v368 = vmax.f32 %v331, %v364
  %369 = vrot.lane.b32.xlu0 %v285, 15
  %v370 = vpop.permute.xlu0 %369
  %371 = vrot.lane.b32.xlu0 %v286, 15
  %v372 = vpop.permute.xlu0 %371
  %373 = vrot.lane.b32.xlu0 %v287, 15
  %v374 = vpop.permute.xlu0 %373
  %375 = vrot.lane.b32.xlu0 %v288, 15
  %v376 = vpop.permute.xlu0 %375
  %vm377 = vcmp.lt.s32.totalorder %v302, 15
  %v378 = vsel %vm377, %v374, %v376
  %v379 = vsel %vm377, %v372, %v374
  %v380 = vsel %vm377, %v370, %v372
  %v381 = vsel %vm377, %v376, %v370
  %v382 = vlaneseq
  %v383 = vshrl.u32 %v382, 7
  %v384 = vsub.s32 2, %v383
  %v385 = vrot.slane %v56, %v384
  %v386 = vlaneseq
  %v387 = vshrl.u32 %v386, 7
  %v388 = vsub.s32 2, %v387
  %v389 = vrot.slane %v57, %v388
  %v390 = vlaneseq
  %v391 = vshrl.u32 %v390, 7
  %v392 = vsub.s32 2, %v391
  %v393 = vrot.slane %v58, %v392
  %v394 = vlaneseq
  %v395 = vshrl.u32 %v394, 7
  %v396 = vsub.s32 2, %v395
  %v397 = vrot.slane %v59, %v396
  %v398 = vmul.f32 %v381, %v385
  %v399 = vmul.f32 %v380, %v389
  %v400 = vmul.f32 %v379, %v393
  %v401 = vmul.f32 %v378, %v397
  %v402 = vmax.f32 %v365, %v398
  %v403 = vmax.f32 %v366, %v399
  %v404 = vmax.f32 %v367, %v400
  %v405 = vmax.f32 %v368, %v401
  %406 = vrot.lane.b32.xlu0 %v285, 1
  %v407 = vpop.permute.xlu0 %406
  %408 = vrot.lane.b32.xlu0 %v286, 1
  %v409 = vpop.permute.xlu0 %408
  %410 = vrot.lane.b32.xlu0 %v287, 1
  %v411 = vpop.permute.xlu0 %410
  %412 = vrot.lane.b32.xlu0 %v288, 1
  %v413 = vpop.permute.xlu0 %412
  %vm414 = vcmp.lt.s32.totalorder %v302, 1
  %v415 = vsel %vm414, %v411, %v413
  %v416 = vsel %vm414, %v409, %v411
  %v417 = vsel %vm414, %v407, %v409
  %v418 = vsel %vm414, %v413, %v407
  %v419 = vlaneseq
  %v420 = vshrl.u32 %v419, 7
  %v421 = vsub.s32 3, %v420
  %v422 = vrot.slane %v56, %v421
  %v423 = vlaneseq
  %v424 = vshrl.u32 %v423, 7
  %v425 = vsub.s32 3, %v424
  %v426 = vrot.slane %v57, %v425
  %v427 = vlaneseq
  %v428 = vshrl.u32 %v427, 7
  %v429 = vsub.s32 3, %v428
  %v430 = vrot.slane %v58, %v429
  %v431 = vlaneseq
  %v432 = vshrl.u32 %v431, 7
  %v433 = vsub.s32 3, %v432
  %v434 = vrot.slane %v59, %v433
  %v435 = vmul.f32 %v418, %v422
  %v436 = vmul.f32 %v417, %v426
  %v437 = vmul.f32 %v416, %v430
  %v438 = vmul.f32 %v415, %v434
  %v439 = vmax.f32 %v402, %v435
  %v440 = vmax.f32 %v403, %v436
  %v441 = vmax.f32 %v404, %v437
  %v442 = vmax.f32 %v405, %v438
  %443 = vrot.lane.b32.xlu0 %v285, 127
  %v444 = vpop.permute.xlu0 %443
  %445 = vrot.lane.b32.xlu0 %v286, 127
  %v446 = vpop.permute.xlu0 %445
  %447 = vrot.lane.b32.xlu0 %v287, 127
  %v448 = vpop.permute.xlu0 %447
  %449 = vrot.lane.b32.xlu0 %v288, 127
  %v450 = vpop.permute.xlu0 %449
  %vm451 = vcmp.lt.s32.totalorder %v302, 127
  %v452 = vsel %vm451, %v448, %v450
  %v453 = vsel %vm451, %v446, %v448
  %v454 = vsel %vm451, %v444, %v446
  %v455 = vsel %vm451, %v450, %v444
  %v456 = vlaneseq
  %v457 = vshrl.u32 %v456, 7
  %v458 = vsub.s32 5, %v457
  %v459 = vrot.slane %v56, %v458
  %v460 = vlaneseq
  %v461 = vshrl.u32 %v460, 7
  %v462 = vsub.s32 5, %v461
  %v463 = vrot.slane %v57, %v462
  %v464 = vlaneseq
  %v465 = vshrl.u32 %v464, 7
  %v466 = vsub.s32 5, %v465
  %v467 = vrot.slane %v58, %v466
  %v468 = vlaneseq
  %v469 = vshrl.u32 %v468, 7
  %v470 = vsub.s32 5, %v469
  %v471 = vrot.slane %v59, %v470
  %v472 = vmul.f32 %v454, %v459
  %v473 = vmul.f32 %v453, %v463
  %v474 = vmul.f32 %v452, %v467
  %v475 = vmul.f32 %v455, %v471
  %v476 = vmax.f32 %v439, %v472
  %v477 = vmax.f32 %v440, %v473
  %v478 = vmax.f32 %v441, %v474
  %v479 = vmax.f32 %v442, %v475
  %480 = vrot.lane.b32.xlu0 %v285, 113
  %v481 = vpop.permute.xlu0 %480
  %482 = vrot.lane.b32.xlu0 %v286, 113
  %v483 = vpop.permute.xlu0 %482
  %484 = vrot.lane.b32.xlu0 %v287, 113
  %v485 = vpop.permute.xlu0 %484
  %486 = vrot.lane.b32.xlu0 %v288, 113
  %v487 = vpop.permute.xlu0 %486
  %vm488 = vcmp.lt.s32.totalorder %v302, 113
  %v489 = vsel %vm488, %v485, %v487
  %v490 = vsel %vm488, %v483, %v485
  %v491 = vsel %vm488, %v481, %v483
  %v492 = vsel %vm488, %v487, %v481
  %v493 = vlaneseq
  %v494 = vshrl.u32 %v493, 7
  %v495 = vsub.s32 6, %v494
  %v496 = vrot.slane %v56, %v495
  %v497 = vlaneseq
  %v498 = vshrl.u32 %v497, 7
  %v499 = vsub.s32 6, %v498
  %v500 = vrot.slane %v57, %v499
  %v501 = vlaneseq
  %v502 = vshrl.u32 %v501, 7
  %v503 = vsub.s32 6, %v502
  %v504 = vrot.slane %v58, %v503
  %v505 = vlaneseq
  %v506 = vshrl.u32 %v505, 7
  %v507 = vsub.s32 6, %v506
  %v508 = vrot.slane %v59, %v507
  %v509 = vmul.f32 %v491, %v496
  %v510 = vmul.f32 %v490, %v500
  %v511 = vmul.f32 %v489, %v504
  %v512 = vmul.f32 %v492, %v508
  %v513 = vmax.f32 %v476, %v509
  %v514 = vmax.f32 %v477, %v510
  %v515 = vmax.f32 %v478, %v511
  %v516 = vmax.f32 %v479, %v512
  %517 = vrot.lane.b32.xlu0 %v285, 112
  %v518 = vpop.permute.xlu0 %517
  %519 = vrot.lane.b32.xlu0 %v286, 112
  %v520 = vpop.permute.xlu0 %519
  %521 = vrot.lane.b32.xlu0 %v287, 112
  %v522 = vpop.permute.xlu0 %521
  %523 = vrot.lane.b32.xlu0 %v288, 112
  %v524 = vpop.permute.xlu0 %523
  %vm525 = vcmp.lt.s32.totalorder %v302, 112
  %v526 = vsel %vm525, %v522, %v524
  %v527 = vsel %vm525, %v520, %v522
  %v528 = vsel %vm525, %v518, %v520
  %v529 = vsel %vm525, %v524, %v518
  %v530 = vlaneseq
  %v531 = vshrl.u32 %v530, 7
  %v532 = vsub.s32 7, %v531
  %v533 = vrot.slane %v56, %v532
  %v534 = vlaneseq
  %v535 = vshrl.u32 %v534, 7
  %v536 = vsub.s32 7, %v535
  %v537 = vrot.slane %v57, %v536
  %v538 = vlaneseq
  %v539 = vshrl.u32 %v538, 7
  %v540 = vsub.s32 7, %v539
  %v541 = vrot.slane %v58, %v540
  %v542 = vlaneseq
  %v543 = vshrl.u32 %v542, 7
  %v544 = vsub.s32 7, %v543
  %v545 = vrot.slane %v59, %v544
  %v546 = vmul.f32 %v528, %v533
  %v547 = vmul.f32 %v527, %v537
  %v548 = vmul.f32 %v526, %v541
  %v549 = vmul.f32 %v529, %v545
  %v550 = vmax.f32 %v513, %v546
  %v551 = vmax.f32 %v514, %v547
  %v552 = vmax.f32 %v515, %v548
  %v553 = vmax.f32 %v516, %v549
  %554 = vrot.lane.b32.xlu0 %v285, 111
  %v555 = vpop.permute.xlu0 %554
  %556 = vrot.lane.b32.xlu0 %v286, 111
  %v557 = vpop.permute.xlu0 %556
  %558 = vrot.lane.b32.xlu0 %v287, 111
  %v559 = vpop.permute.xlu0 %558
  %560 = vrot.lane.b32.xlu0 %v288, 111
  %v561 = vpop.permute.xlu0 %560
  %vm562 = vcmp.lt.s32.totalorder %v302, 111
  %v563 = vsel %vm562, %v559, %v561
  %v564 = vsel %vm562, %v557, %v559
  %v565 = vsel %vm562, %v555, %v557
  %v566 = vsel %vm562, %v561, %v555
  %v567 = vlaneseq
  %v568 = vshrl.u32 %v567, 7
  %v569 = vsub.s32 0, %v568
  %v570 = vrot.slane %v60, %v569
  %v571 = vlaneseq
  %v572 = vshrl.u32 %v571, 7
  %v573 = vsub.s32 0, %v572
  %v574 = vrot.slane %v61, %v573
  %v575 = vlaneseq
  %v576 = vshrl.u32 %v575, 7
  %v577 = vsub.s32 0, %v576
  %v578 = vrot.slane %v62, %v577
  %v579 = vlaneseq
  %v580 = vshrl.u32 %v579, 7
  %v581 = vsub.s32 0, %v580
  %v582 = vrot.slane %v63, %v581
  %v583 = vmul.f32 %v565, %v570
  %v584 = vmul.f32 %v564, %v574
  %v585 = vmul.f32 %v563, %v578
  %v586 = vmul.f32 %v566, %v582
  %v587 = vmax.f32 %v550, %v583
  %v588 = vmax.f32 %v551, %v584
  %v589 = vmax.f32 %v552, %v585
  %v590 = vmax.f32 %v553, %v586
  %v591 = vld [vmem:[%s12] sm:$0xf]
  %v592 = vld [vmem:[%s12 + $0x4] sm:$0xf]
  %v593 = vld [vmem:[%s12 + $0x8] sm:$0xf]
  %v594 = vld [vmem:[%s12 + $0xc] sm:$0xf]
  %v595 = vld [vmem:[%s12 + $0x10] sm:$0xf]
  %v596 = vld [vmem:[%s12 + $0x14] sm:$0xf]
  %v597 = vld [vmem:[%s12 + $0x18] sm:$0xf]
  %v598 = vld [vmem:[%s12 + $0x1c] sm:$0xf]
  %v599 = vld [vmem:[%s12 + $0x20] sm:$0xf]
  %v600 = vld [vmem:[%s12 + $0x24] sm:$0xf]
  %v601 = vld [vmem:[%s12 + $0x28] sm:$0xf]
  %v602 = vld [vmem:[%s12 + $0x2c] sm:$0xf]
  %v603 = vld [vmem:[%s12 + $0x30] sm:$0xf]
  %v604 = vld [vmem:[%s12 + $0x34] sm:$0xf]
  %v605 = vld [vmem:[%s12 + $0x38] sm:$0xf]
  %v606 = vld [vmem:[%s12 + $0x3c] sm:$0xf]
  %v607 = vld [vmem:[%s12 + $0x40] sm:$0xf]
  %v608 = vld [vmem:[%s12 + $0x44] sm:$0xf]
  %v609 = vld [vmem:[%s12 + $0x48] sm:$0xf]
  %v610 = vld [vmem:[%s12 + $0x4c] sm:$0xf]
  %v611 = vld [vmem:[%s12 + $0x50] sm:$0xf]
  %v612 = vld [vmem:[%s12 + $0x54] sm:$0xf]
  %v613 = vld [vmem:[%s12 + $0x58] sm:$0xf]
  %v614 = vld [vmem:[%s12 + $0x5c] sm:$0xf]
  %v615 = vld [vmem:[%s12 + $0x60] sm:$0xf]
  %v616 = vld [vmem:[%s12 + $0x64] sm:$0xf]
  %v617 = vld [vmem:[%s12 + $0x68] sm:$0xf]
  %v618 = vld [vmem:[%s12 + $0x6c] sm:$0xf]
  %v619 = vld [vmem:[%s12 + $0x70] sm:$0xf]
  %v620 = vld [vmem:[%s12 + $0x74] sm:$0xf]
  %v621 = vld [vmem:[%s12 + $0x78] sm:$0xf]
  %v622 = vld [vmem:[%s12 + $0x7c] sm:$0xf]
  %v623 = vpack.c.bf16 %v587, %v587
  %v624 = vpack.c.bf16 %v588, %v588
  %v625 = vpack.c.bf16 %v589, %v589
  %v626 = vpack.c.bf16 %v590, %v590
  %v659 = vunpack.c.l.b16 %v591
  %v660 = vunpack.c.l.b16 %v592
  %v661 = vunpack.c.l.b16 %v593
  %v662 = vunpack.c.l.b16 %v594
  %v663 = vunpack.c.l.b16 %v595
  %v664 = vunpack.c.l.b16 %v596
  %v665 = vunpack.c.l.b16 %v597
  %v666 = vunpack.c.l.b16 %v598
  %v667 = vunpack.c.l.b16 %v599
  %v668 = vunpack.c.l.b16 %v600
  %v669 = vunpack.c.l.b16 %v601
  %v670 = vunpack.c.l.b16 %v602
  %v671 = vunpack.c.l.b16 %v603
  %v672 = vunpack.c.l.b16 %v604
  %v673 = vunpack.c.l.b16 %v605
  %v674 = vunpack.c.l.b16 %v606
  %v675 = vunpack.c.l.b16 %v607
  %v676 = vunpack.c.l.b16 %v608
  %v677 = vunpack.c.l.b16 %v609
  %v678 = vunpack.c.l.b16 %v610
  %v679 = vunpack.c.l.b16 %v611
  %v680 = vunpack.c.l.b16 %v612
  %v681 = vunpack.c.l.b16 %v613
  %v682 = vunpack.c.l.b16 %v614
  %v683 = vunpack.c.l.b16 %v615
  %v684 = vunpack.c.l.b16 %v616
  %v685 = vunpack.c.l.b16 %v617
  %v686 = vunpack.c.l.b16 %v618
  %v687 = vunpack.c.l.b16 %v619
  %v688 = vunpack.c.l.b16 %v620
  %v689 = vunpack.c.l.b16 %v621
  %v690 = vunpack.c.l.b16 %v622
  %v691 = vpack.c.b16 %v660, %v659
  %v692 = vpack.c.b16 %v662, %v661
  %v693 = vpack.c.b16 %v664, %v663
  %v694 = vpack.c.b16 %v666, %v665
  %v695 = vpack.c.b16 %v668, %v667
  %v696 = vpack.c.b16 %v670, %v669
  %v697 = vpack.c.b16 %v672, %v671
  %v698 = vpack.c.b16 %v674, %v673
  %v699 = vpack.c.b16 %v676, %v675
  %v700 = vpack.c.b16 %v678, %v677
  %v701 = vpack.c.b16 %v680, %v679
  %v702 = vpack.c.b16 %v682, %v681
  %v703 = vpack.c.b16 %v684, %v683
  %v704 = vpack.c.b16 %v686, %v685
  %v705 = vpack.c.b16 %v688, %v687
  %v706 = vpack.c.b16 %v690, %v689
  %723 = vmatprep.subr.bf16.mxu0 0
  %724 = vmatpush1.bf16.msra.mxu0 %v698
  %725 = vmatprep.subr.bf16.mxu0 0
  %726 = vmatpush1.bf16.msra.mxu0 %v697
  %727 = vmatprep.subr.bf16.mxu0 0
  %728 = vmatpush1.bf16.msra.mxu0 %v696
  %729 = vmatprep.subr.bf16.mxu0 0
  %730 = vmatpush1.bf16.msra.mxu0 %v695
  %731 = vmatprep.subr.bf16.mxu0 0
  %732 = vmatpush1.bf16.msra.mxu0 %v694
  %733 = vmatprep.subr.bf16.mxu0 0
  %734 = vmatpush1.bf16.msra.mxu0 %v693
  %735 = vmatprep.subr.bf16.mxu0 0
  %736 = vmatpush1.bf16.msra.mxu0 %v692
  %737 = vmatprep.subr.bf16.mxu0 0
  %738 = vmatpush1.bf16.msra.mxu0 %v691
  %739 = vmatprep.subr.bf16.mxu0 0
  %740 = vmatpush2.bf16.msra.mxu0 %v706
  %741 = vmatprep.subr.bf16.mxu0 0
  %742 = vmatpush2.bf16.msra.mxu0 %v705
  %743 = vmatprep.subr.bf16.mxu0 0
  %744 = vmatpush2.bf16.msra.mxu0 %v704
  %745 = vmatprep.subr.bf16.mxu0 0
  %746 = vmatpush2.bf16.msra.mxu0 %v703
  %747 = vmatprep.subr.bf16.mxu0 0
  %748 = vmatpush2.bf16.msra.mxu0 %v702
  %749 = vmatprep.subr.bf16.mxu0 0
  %750 = vmatpush2.bf16.msra.mxu0 %v701
  %751 = vmatprep.subr.bf16.mxu0 0
  %752 = vmatpush2.bf16.msra.mxu0 %v700
  %753 = vmatprep.subr.bf16.mxu0 0
  %754 = vmatpush2.bf16.msra.mxu0 %v699
  %755 = vmatprep.mubr.bf16.mxu0 %v624
  %756 = vmatmul.mubr.bf16.gmra.mxu0 %v623
  %v757 = vpop.f32.mrf.mxu0
  %v758 = vadd.f32 0.0, %v757
  %v759 = vpop.f32.mrf.mxu0
  %v760 = vpop.f32.mrf.mxu0
  %v761 = vpop.f32.mrf.mxu0
  %762 = vdwg.mxu0
  %763 = vmatprep.subr.bf16.mxu0 0
  %764 = vmatpush1.bf16.msra.mxu0 %v698
  %765 = vmatprep.subr.bf16.mxu0 0
  %766 = vmatpush1.bf16.msra.mxu0 %v697
  %767 = vmatprep.subr.bf16.mxu0 0
  %768 = vmatpush1.bf16.msra.mxu0 %v696
  %769 = vmatprep.subr.bf16.mxu0 0
  %770 = vmatpush1.bf16.msra.mxu0 %v695
  %771 = vmatprep.subr.bf16.mxu0 0
  %772 = vmatpush1.bf16.msra.mxu0 %v694
  %773 = vmatprep.subr.bf16.mxu0 0
  %774 = vmatpush1.bf16.msra.mxu0 %v693
  %775 = vmatprep.subr.bf16.mxu0 0
  %776 = vmatpush1.bf16.msra.mxu0 %v692
  %777 = vmatprep.subr.bf16.mxu0 0
  %778 = vmatpush1.bf16.msra.mxu0 %v691
  %779 = vmatprep.subr.bf16.mxu0 0
  %780 = vmatpush2.bf16.msra.mxu0 %v706
  %781 = vmatprep.subr.bf16.mxu0 0
  %782 = vmatpush2.bf16.msra.mxu0 %v705
  %783 = vmatprep.subr.bf16.mxu0 0
  %784 = vmatpush2.bf16.msra.mxu0 %v704
  %785 = vmatprep.subr.bf16.mxu0 0
  %786 = vmatpush2.bf16.msra.mxu0 %v703
  %787 = vmatprep.subr.bf16.mxu0 0
  %788 = vmatpush2.bf16.msra.mxu0 %v702
  %789 = vmatprep.subr.bf16.mxu0 0
  %790 = vmatpush2.bf16.msra.mxu0 %v701
  %791 = vmatprep.subr.bf16.mxu0 0
  %792 = vmatpush2.bf16.msra.mxu0 %v700
  %793 = vmatprep.subr.bf16.mxu0 0
  %794 = vmatpush2.bf16.msra.mxu0 %v699
  %795 = vmatprep.mubr.bf16.mxu0 %v626
  %796 = vmatmul.mubr.bf16.gmra.mxu0 %v625
  %v797 = vpop.f32.mrf.mxu0
  %v798 = vadd.f32 0.0, %v797
  %v799 = vpop.f32.mrf.mxu0
  %v800 = vpop.f32.mrf.mxu0
  %v801 = vpop.f32.mrf.mxu0
  %802 = vdwg.mxu0
  %804 = vrot.lane.b32.xlu0 %v798, 64
  %v805 = vpop.permute.xlu0 %804
  %vm807 = vcmask 523264
  %v808 = vsel %vm807, %v758, %v805
  %809 = vrot.lane.b32.xlu0 %v808, 9
  %v810 = vpop.permute.xlu0 %809
  %v811 = vlaneseq
  %v812 = vshrl.u32 %v811, 7
  %v813 = vsub.s32 0, %v812
  %v814 = vrot.slane %v64, %v813
  %v815 = vmul.f32 %v810, %v814
  %v816 = vld [vmem:[%s3] sm:$0x3]
  %817 = vrot.lane.b32.xlu0 %v808, 8
  %v818 = vpop.permute.xlu0 %817
  %v819 = vlaneseq
  %v820 = vshrl.u32 %v819, 7
  %v821 = vsub.s32 1, %v820
  %v822 = vrot.slane %v64, %v821
  %v823 = vmul.f32 %v818, %v822
  %s824 = scalar_lea.vmem %s3, 2
  %v825 = vld [vmem:[%s824] sm:$0x3]
  %vm826 = vcmask 15360
  %v828 = vsel %vm826, %v825, 0
  %vm830 = vcmask 1041408
  %v832 = vsel %vm830, %v823, 0
  %834 = vmatprep.subr.mxu0 0.0
  %835 = vmatpush1.msra.mxu0 0.0
  %836 = vmatprep.subr.mxu0 0.0
  %837 = vmatpush1.msra.mxu0 0.0
  %838 = vmatprep.subr.mxu0 0.0
  %839 = vmatpush1.msra.mxu0 0.0
  %840 = vmatprep.subr.mxu0 0.0
  %841 = vmatpush1.msra.mxu0 0.0
  %842 = vmatprep.subr.mxu0 0.0
  %843 = vmatpush1.msra.mxu0 0.0
  %844 = vmatprep.subr.mxu0 0.0
  %845 = vmatpush1.msra.mxu0 0.0
  %846 = vmatprep.subr.mxu0 0.0
  %847 = vmatpush1.msra.mxu0 0.0
  %848 = vmatprep.subr.mxu0 0.0
  %849 = vmatpush1.msra.mxu0 0.0
  %850 = vmatprep.subr.mxu0 0.0
  %851 = vmatpush1.msra.mxu0 0.0
  %852 = vmatprep.subr.mxu0 0.0
  %853 = vmatpush1.msra.mxu0 0.0
  %854 = vmatprep.subr.mxu0 0.0
  %855 = vmatpush1.msra.mxu0 0.0
  %856 = vmatprep.subr.mxu0 0.0
  %857 = vmatpush1.msra.mxu0 0.0
  %858 = vmatprep.subr.mxu0 0.0
  %859 = vmatpush1.msra.mxu0 0.0
  %860 = vmatprep.subr.mxu0 0.0
  %861 = vmatpush1.msra.mxu0 0.0
  %862 = vmatprep.subr.mxu0 0.0
  %863 = vmatpush1.msra.mxu0 0.0
  %864 = vmatprep.subr.mxu0 0.0
  %865 = vmatpush1.msra.mxu0 %v832
  %866 = vmatprep.subr.mxu0 0.0
  %867 = vmatpush2.msra.mxu0 0.0
  %868 = vmatprep.subr.mxu0 0.0
  %869 = vmatpush2.msra.mxu0 0.0
  %870 = vmatprep.subr.mxu0 0.0
  %871 = vmatpush2.msra.mxu0 0.0
  %872 = vmatprep.subr.mxu0 0.0
  %873 = vmatpush2.msra.mxu0 0.0
  %874 = vmatprep.subr.mxu0 0.0
  %875 = vmatpush2.msra.mxu0 0.0
  %876 = vmatprep.subr.mxu0 0.0
  %877 = vmatpush2.msra.mxu0 0.0
  %878 = vmatprep.subr.mxu0 0.0
  %879 = vmatpush2.msra.mxu0 0.0
  %880 = vmatprep.subr.mxu0 0.0
  %881 = vmatpush2.msra.mxu0 0.0
  %882 = vmatprep.subr.mxu0 0.0
  %883 = vmatpush2.msra.mxu0 0.0
  %884 = vmatprep.subr.mxu0 0.0
  %885 = vmatpush2.msra.mxu0 0.0
  %886 = vmatprep.subr.mxu0 0.0
  %887 = vmatpush2.msra.mxu0 0.0
  %888 = vmatprep.subr.mxu0 0.0
  %889 = vmatpush2.msra.mxu0 0.0
  %890 = vmatprep.subr.mxu0 0.0
  %891 = vmatpush2.msra.mxu0 0.0
  %892 = vmatprep.subr.mxu0 0.0
  %893 = vmatpush2.msra.mxu0 0.0
  %894 = vmatprep.subr.mxu0 0.0
  %895 = vmatpush2.msra.mxu0 0.0
  %896 = vmatprep.subr.mxu0 0.0
  %897 = vmatpush2.msra.mxu0 0.0
  %898 = vmatprep.mubr.f32.mxu0 0.0
  %899 = vmatmul.mubr.f32.gmra.mxu0 %v828
  %v900 = vpop.f32.mrf.mxu0
  %v901 = vadd.f32 0.0, %v900
  %v902 = vpop.f32.mrf.mxu0
  %903 = vdwg.mxu0
  %v905 = vsel %vm826, %v816, 0
  %v908 = vsel %vm830, %v815, 0
  %910 = vmatprep.subr.mxu0 0.0
  %911 = vmatpush1.msra.mxu0 0.0
  %912 = vmatprep.subr.mxu0 0.0
  %913 = vmatpush1.msra.mxu0 0.0
  %914 = vmatprep.subr.mxu0 0.0
  %915 = vmatpush1.msra.mxu0 0.0
  %916 = vmatprep.subr.mxu0 0.0
  %917 = vmatpush1.msra.mxu0 0.0
  %918 = vmatprep.subr.mxu0 0.0
  %919 = vmatpush1.msra.mxu0 0.0
  %920 = vmatprep.subr.mxu0 0.0
  %921 = vmatpush1.msra.mxu0 0.0
  %922 = vmatprep.subr.mxu0 0.0
  %923 = vmatpush1.msra.mxu0 0.0
  %924 = vmatprep.subr.mxu0 0.0
  %925 = vmatpush1.msra.mxu0 0.0
  %926 = vmatprep.subr.mxu0 0.0
  %927 = vmatpush1.msra.mxu0 0.0
  %928 = vmatprep.subr.mxu0 0.0
  %929 = vmatpush1.msra.mxu0 0.0
  %930 = vmatprep.subr.mxu0 0.0
  %931 = vmatpush1.msra.mxu0 0.0
  %932 = vmatprep.subr.mxu0 0.0
  %933 = vmatpush1.msra.mxu0 0.0
  %934 = vmatprep.subr.mxu0 0.0
  %935 = vmatpush1.msra.mxu0 0.0
  %936 = vmatprep.subr.mxu0 0.0
  %937 = vmatpush1.msra.mxu0 0.0
  %938 = vmatprep.subr.mxu0 0.0
  %939 = vmatpush1.msra.mxu0 0.0
  %940 = vmatprep.subr.mxu0 0.0
  %941 = vmatpush1.msra.mxu0 %v908
  %942 = vmatprep.subr.mxu0 0.0
  %943 = vmatpush2.msra.mxu0 0.0
  %944 = vmatprep.subr.mxu0 0.0
  %945 = vmatpush2.msra.mxu0 0.0
  %946 = vmatprep.subr.mxu0 0.0
  %947 = vmatpush2.msra.mxu0 0.0
  %948 = vmatprep.subr.mxu0 0.0
  %949 = vmatpush2.msra.mxu0 0.0
  %950 = vmatprep.subr.mxu0 0.0
  %951 = vmatpush2.msra.mxu0 0.0
  %952 = vmatprep.subr.mxu0 0.0
  %953 = vmatpush2.msra.mxu0 0.0
  %954 = vmatprep.subr.mxu0 0.0
  %955 = vmatpush2.msra.mxu0 0.0
  %956 = vmatprep.subr.mxu0 0.0
  %957 = vmatpush2.msra.mxu0 0.0
  %958 = vmatprep.subr.mxu0 0.0
  %959 = vmatpush2.msra.mxu0 0.0
  %960 = vmatprep.subr.mxu0 0.0
  %961 = vmatpush2.msra.mxu0 0.0
  %962 = vmatprep.subr.mxu0 0.0
  %963 = vmatpush2.msra.mxu0 0.0
  %964 = vmatprep.subr.mxu0 0.0
  %965 = vmatpush2.msra.mxu0 0.0
  %966 = vmatprep.subr.mxu0 0.0
  %967 = vmatpush2.msra.mxu0 0.0
  %968 = vmatprep.subr.mxu0 0.0
  %969 = vmatpush2.msra.mxu0 0.0
  %970 = vmatprep.subr.mxu0 0.0
  %971 = vmatpush2.msra.mxu0 0.0
  %972 = vmatprep.subr.mxu0 0.0
  %973 = vmatpush2.msra.mxu0 0.0
  %974 = vmatprep.mubr.f32.mxu0 0.0
  %975 = vmatmul.mubr.f32.gmra.mxu0 %v905
  %v976 = vpop.f32.mrf.mxu0
  %v977 = vadd.f32 %v901, %v976
  %v978 = vpop.f32.mrf.mxu0
  %979 = vdwg.mxu0
  %980 = vrot.lane.b32.xlu0 %v808, 7
  %v981 = vpop.permute.xlu0 %980
  %v982 = vlaneseq
  %v983 = vshrl.u32 %v982, 7
  %v984 = vsub.s32 2, %v983
  %v985 = vrot.slane %v64, %v984
  %v986 = vmul.f32 %v981, %v985
  %s987 = scalar_lea.vmem %s3, 4
  %v988 = vld [vmem:[%s987] sm:$0x3]
  %v990 = vsel %vm826, %v988, 0
  %v993 = vsel %vm830, %v986, 0
  %995 = vmatprep.subr.mxu0 0.0
  %996 = vmatpush1.msra.mxu0 0.0
  %997 = vmatprep.subr.mxu0 0.0
  %998 = vmatpush1.msra.mxu0 0.0
  %999 = vmatprep.subr.mxu0 0.0
  %1000 = vmatpush1.msra.mxu0 0.0
  %1001 = vmatprep.subr.mxu0 0.0
  %1002 = vmatpush1.msra.mxu0 0.0
  %1003 = vmatprep.subr.mxu0 0.0
  %1004 = vmatpush1.msra.mxu0 0.0
  %1005 = vmatprep.subr.mxu0 0.0
  %1006 = vmatpush1.msra.mxu0 0.0
  %1007 = vmatprep.subr.mxu0 0.0
  %1008 = vmatpush1.msra.mxu0 0.0
  %1009 = vmatprep.subr.mxu0 0.0
  %1010 = vmatpush1.msra.mxu0 0.0
  %1011 = vmatprep.subr.mxu0 0.0
  %1012 = vmatpush1.msra.mxu0 0.0
  %1013 = vmatprep.subr.mxu0 0.0
  %1014 = vmatpush1.msra.mxu0 0.0
  %1015 = vmatprep.subr.mxu0 0.0
  %1016 = vmatpush1.msra.mxu0 0.0
  %1017 = vmatprep.subr.mxu0 0.0
  %1018 = vmatpush1.msra.mxu0 0.0
  %1019 = vmatprep.subr.mxu0 0.0
  %1020 = vmatpush1.msra.mxu0 0.0
  %1021 = vmatprep.subr.mxu0 0.0
  %1022 = vmatpush1.msra.mxu0 0.0
  %1023 = vmatprep.subr.mxu0 0.0
  %1024 = vmatpush1.msra.mxu0 0.0
  %1025 = vmatprep.subr.mxu0 0.0
  %1026 = vmatpush1.msra.mxu0 %v993
  %1027 = vmatprep.subr.mxu0 0.0
  %1028 = vmatpush2.msra.mxu0 0.0
  %1029 = vmatprep.subr.mxu0 0.0
  %1030 = vmatpush2.msra.mxu0 0.0
  %1031 = vmatprep.subr.mxu0 0.0
  %1032 = vmatpush2.msra.mxu0 0.0
  %1033 = vmatprep.subr.mxu0 0.0
  %1034 = vmatpush2.msra.mxu0 0.0
  %1035 = vmatprep.subr.mxu0 0.0
  %1036 = vmatpush2.msra.mxu0 0.0
  %1037 = vmatprep.subr.mxu0 0.0
  %1038 = vmatpush2.msra.mxu0 0.0
  %1039 = vmatprep.subr.mxu0 0.0
  %1040 = vmatpush2.msra.mxu0 0.0
  %1041 = vmatprep.subr.mxu0 0.0
  %1042 = vmatpush2.msra.mxu0 0.0
  %1043 = vmatprep.subr.mxu0 0.0
  %1044 = vmatpush2.msra.mxu0 0.0
  %1045 = vmatprep.subr.mxu0 0.0
  %1046 = vmatpush2.msra.mxu0 0.0
  %1047 = vmatprep.subr.mxu0 0.0
  %1048 = vmatpush2.msra.mxu0 0.0
  %1049 = vmatprep.subr.mxu0 0.0
  %1050 = vmatpush2.msra.mxu0 0.0
  %1051 = vmatprep.subr.mxu0 0.0
  %1052 = vmatpush2.msra.mxu0 0.0
  %1053 = vmatprep.subr.mxu0 0.0
  %1054 = vmatpush2.msra.mxu0 0.0
  %1055 = vmatprep.subr.mxu0 0.0
  %1056 = vmatpush2.msra.mxu0 0.0
  %1057 = vmatprep.subr.mxu0 0.0
  %1058 = vmatpush2.msra.mxu0 0.0
  %1059 = vmatprep.mubr.f32.mxu0 0.0
  %1060 = vmatmul.mubr.f32.gmra.mxu0 %v990
  %v1061 = vpop.f32.mrf.mxu0
  %v1062 = vadd.f32 0.0, %v1061
  %v1063 = vpop.f32.mrf.mxu0
  %1064 = vdwg.mxu0
  %v1065 = vadd.f32 %v977, %v1062
  %1066 = vrot.lane.b32.xlu0 %v808, 1
  %v1067 = vpop.permute.xlu0 %1066
  %v1068 = vlaneseq
  %v1069 = vshrl.u32 %v1068, 7
  %v1070 = vsub.s32 3, %v1069
  %v1071 = vrot.slane %v64, %v1070
  %v1072 = vmul.f32 %v1067, %v1071
  %s1073 = scalar_lea.vmem %s3, 6
  %v1074 = vld [vmem:[%s1073] sm:$0x3]
  %v1076 = vsel %vm826, %v1074, 0
  %v1079 = vsel %vm830, %v1072, 0
  %1081 = vmatprep.subr.mxu0 0.0
  %1082 = vmatpush1.msra.mxu0 0.0
  %1083 = vmatprep.subr.mxu0 0.0
  %1084 = vmatpush1.msra.mxu0 0.0
  %1085 = vmatprep.subr.mxu0 0.0
  %1086 = vmatpush1.msra.mxu0 0.0
  %1087 = vmatprep.subr.mxu0 0.0
  %1088 = vmatpush1.msra.mxu0 0.0
  %1089 = vmatprep.subr.mxu0 0.0
  %1090 = vmatpush1.msra.mxu0 0.0
  %1091 = vmatprep.subr.mxu0 0.0
  %1092 = vmatpush1.msra.mxu0 0.0
  %1093 = vmatprep.subr.mxu0 0.0
  %1094 = vmatpush1.msra.mxu0 0.0
  %1095 = vmatprep.subr.mxu0 0.0
  %1096 = vmatpush1.msra.mxu0 0.0
  %1097 = vmatprep.subr.mxu0 0.0
  %1098 = vmatpush1.msra.mxu0 0.0
  %1099 = vmatprep.subr.mxu0 0.0
  %1100 = vmatpush1.msra.mxu0 0.0
  %1101 = vmatprep.subr.mxu0 0.0
  %1102 = vmatpush1.msra.mxu0 0.0
  %1103 = vmatprep.subr.mxu0 0.0
  %1104 = vmatpush1.msra.mxu0 0.0
  %1105 = vmatprep.subr.mxu0 0.0
  %1106 = vmatpush1.msra.mxu0 0.0
  %1107 = vmatprep.subr.mxu0 0.0
  %1108 = vmatpush1.msra.mxu0 0.0
  %1109 = vmatprep.subr.mxu0 0.0
  %1110 = vmatpush1.msra.mxu0 0.0
  %1111 = vmatprep.subr.mxu0 0.0
  %1112 = vmatpush1.msra.mxu0 %v1079
  %1113 = vmatprep.subr.mxu0 0.0
  %1114 = vmatpush2.msra.mxu0 0.0
  %1115 = vmatprep.subr.mxu0 0.0
  %1116 = vmatpush2.msra.mxu0 0.0
  %1117 = vmatprep.subr.mxu0 0.0
  %1118 = vmatpush2.msra.mxu0 0.0
  %1119 = vmatprep.subr.mxu0 0.0
  %1120 = vmatpush2.msra.mxu0 0.0
  %1121 = vmatprep.subr.mxu0 0.0
  %1122 = vmatpush2.msra.mxu0 0.0
  %1123 = vmatprep.subr.mxu0 0.0
  %1124 = vmatpush2.msra.mxu0 0.0
  %1125 = vmatprep.subr.mxu0 0.0
  %1126 = vmatpush2.msra.mxu0 0.0
  %1127 = vmatprep.subr.mxu0 0.0
  %1128 = vmatpush2.msra.mxu0 0.0
  %1129 = vmatprep.subr.mxu0 0.0
  %1130 = vmatpush2.msra.mxu0 0.0
  %1131 = vmatprep.subr.mxu0 0.0
  %1132 = vmatpush2.msra.mxu0 0.0
  %1133 = vmatprep.subr.mxu0 0.0
  %1134 = vmatpush2.msra.mxu0 0.0
  %1135 = vmatprep.subr.mxu0 0.0
  %1136 = vmatpush2.msra.mxu0 0.0
  %1137 = vmatprep.subr.mxu0 0.0
  %1138 = vmatpush2.msra.mxu0 0.0
  %1139 = vmatprep.subr.mxu0 0.0
  %1140 = vmatpush2.msra.mxu0 0.0
  %1141 = vmatprep.subr.mxu0 0.0
  %1142 = vmatpush2.msra.mxu0 0.0
  %1143 = vmatprep.subr.mxu0 0.0
  %1144 = vmatpush2.msra.mxu0 0.0
  %1145 = vmatprep.mubr.f32.mxu0 0.0
  %1146 = vmatmul.mubr.f32.gmra.mxu0 %v1076
  %v1147 = vpop.f32.mrf.mxu0
  %v1148 = vadd.f32 0.0, %v1147
  %v1149 = vpop.f32.mrf.mxu0
  %1150 = vdwg.mxu0
  %v1151 = vadd.f32 %v1065, %v1148
  %s1152 = scalar_lea.vmem %s3, 8
  %v1153 = vld [vmem:[%s1152] sm:$0x3]
  %v1155 = vsel %vm826, %v1153, 0
  %v1158 = vsel %vm830, %v808, 0
  %1160 = vmatprep.subr.mxu0 0.0
  %1161 = vmatpush1.msra.mxu0 0.0
  %1162 = vmatprep.subr.mxu0 0.0
  %1163 = vmatpush1.msra.mxu0 0.0
  %1164 = vmatprep.subr.mxu0 0.0
  %1165 = vmatpush1.msra.mxu0 0.0
  %1166 = vmatprep.subr.mxu0 0.0
  %1167 = vmatpush1.msra.mxu0 0.0
  %1168 = vmatprep.subr.mxu0 0.0
  %1169 = vmatpush1.msra.mxu0 0.0
  %1170 = vmatprep.subr.mxu0 0.0
  %1171 = vmatpush1.msra.mxu0 0.0
  %1172 = vmatprep.subr.mxu0 0.0
  %1173 = vmatpush1.msra.mxu0 0.0
  %1174 = vmatprep.subr.mxu0 0.0
  %1175 = vmatpush1.msra.mxu0 0.0
  %1176 = vmatprep.subr.mxu0 0.0
  %1177 = vmatpush1.msra.mxu0 0.0
  %1178 = vmatprep.subr.mxu0 0.0
  %1179 = vmatpush1.msra.mxu0 0.0
  %1180 = vmatprep.subr.mxu0 0.0
  %1181 = vmatpush1.msra.mxu0 0.0
  %1182 = vmatprep.subr.mxu0 0.0
  %1183 = vmatpush1.msra.mxu0 0.0
  %1184 = vmatprep.subr.mxu0 0.0
  %1185 = vmatpush1.msra.mxu0 0.0
  %1186 = vmatprep.subr.mxu0 0.0
  %1187 = vmatpush1.msra.mxu0 0.0
  %1188 = vmatprep.subr.mxu0 0.0
  %1189 = vmatpush1.msra.mxu0 0.0
  %1190 = vmatprep.subr.mxu0 0.0
  %1191 = vmatpush1.msra.mxu0 %v1158
  %1192 = vmatprep.subr.mxu0 0.0
  %1193 = vmatpush2.msra.mxu0 0.0
  %1194 = vmatprep.subr.mxu0 0.0
  %1195 = vmatpush2.msra.mxu0 0.0
  %1196 = vmatprep.subr.mxu0 0.0
  %1197 = vmatpush2.msra.mxu0 0.0
  %1198 = vmatprep.subr.mxu0 0.0
  %1199 = vmatpush2.msra.mxu0 0.0
  %1200 = vmatprep.subr.mxu0 0.0
  %1201 = vmatpush2.msra.mxu0 0.0
  %1202 = vmatprep.subr.mxu0 0.0
  %1203 = vmatpush2.msra.mxu0 0.0
  %1204 = vmatprep.subr.mxu0 0.0
  %1205 = vmatpush2.msra.mxu0 0.0
  %1206 = vmatprep.subr.mxu0 0.0
  %1207 = vmatpush2.msra.mxu0 0.0
  %1208 = vmatprep.subr.mxu0 0.0
  %1209 = vmatpush2.msra.mxu0 0.0
  %1210 = vmatprep.subr.mxu0 0.0
  %1211 = vmatpush2.msra.mxu0 0.0
  %1212 = vmatprep.subr.mxu0 0.0
  %1213 = vmatpush2.msra.mxu0 0.0
  %1214 = vmatprep.subr.mxu0 0.0
  %1215 = vmatpush2.msra.mxu0 0.0
  %1216 = vmatprep.subr.mxu0 0.0
  %1217 = vmatpush2.msra.mxu0 0.0
  %1218 = vmatprep.subr.mxu0 0.0
  %1219 = vmatpush2.msra.mxu0 0.0
  %1220 = vmatprep.subr.mxu0 0.0
  %1221 = vmatpush2.msra.mxu0 0.0
  %1222 = vmatprep.subr.mxu0 0.0
  %1223 = vmatpush2.msra.mxu0 0.0
  %1224 = vmatprep.mubr.f32.mxu0 0.0
  %1225 = vmatmul.mubr.f32.gmra.mxu0 %v1155
  %v1226 = vpop.f32.mrf.mxu0
  %v1227 = vadd.f32 0.0, %v1226
  %v1228 = vpop.f32.mrf.mxu0
  %1229 = vdwg.mxu0
  %v1230 = vadd.f32 %v1151, %v1227
  %1231 = vrot.lane.b32.xlu0 %v808, 127
  %v1232 = vpop.permute.xlu0 %1231
  %v1233 = vlaneseq
  %v1234 = vshrl.u32 %v1233, 7
  %v1235 = vsub.s32 5, %v1234
  %v1236 = vrot.slane %v64, %v1235
  %v1237 = vmul.f32 %v1232, %v1236
  %s1238 = scalar_lea.vmem %s3, 10
  %v1239 = vld [vmem:[%s1238] sm:$0x3]
  %v1241 = vsel %vm826, %v1239, 0
  %v1244 = vsel %vm830, %v1237, 0
  %1246 = vmatprep.subr.mxu0 0.0
  %1247 = vmatpush1.msra.mxu0 0.0
  %1248 = vmatprep.subr.mxu0 0.0
  %1249 = vmatpush1.msra.mxu0 0.0
  %1250 = vmatprep.subr.mxu0 0.0
  %1251 = vmatpush1.msra.mxu0 0.0
  %1252 = vmatprep.subr.mxu0 0.0
  %1253 = vmatpush1.msra.mxu0 0.0
  %1254 = vmatprep.subr.mxu0 0.0
  %1255 = vmatpush1.msra.mxu0 0.0
  %1256 = vmatprep.subr.mxu0 0.0
  %1257 = vmatpush1.msra.mxu0 0.0
  %1258 = vmatprep.subr.mxu0 0.0
  %1259 = vmatpush1.msra.mxu0 0.0
  %1260 = vmatprep.subr.mxu0 0.0
  %1261 = vmatpush1.msra.mxu0 0.0
  %1262 = vmatprep.subr.mxu0 0.0
  %1263 = vmatpush1.msra.mxu0 0.0
  %1264 = vmatprep.subr.mxu0 0.0
  %1265 = vmatpush1.msra.mxu0 0.0
  %1266 = vmatprep.subr.mxu0 0.0
  %1267 = vmatpush1.msra.mxu0 0.0
  %1268 = vmatprep.subr.mxu0 0.0
  %1269 = vmatpush1.msra.mxu0 0.0
  %1270 = vmatprep.subr.mxu0 0.0
  %1271 = vmatpush1.msra.mxu0 0.0
  %1272 = vmatprep.subr.mxu0 0.0
  %1273 = vmatpush1.msra.mxu0 0.0
  %1274 = vmatprep.subr.mxu0 0.0
  %1275 = vmatpush1.msra.mxu0 0.0
  %1276 = vmatprep.subr.mxu0 0.0
  %1277 = vmatpush1.msra.mxu0 %v1244
  %1278 = vmatprep.subr.mxu0 0.0
  %1279 = vmatpush2.msra.mxu0 0.0
  %1280 = vmatprep.subr.mxu0 0.0
  %1281 = vmatpush2.msra.mxu0 0.0
  %1282 = vmatprep.subr.mxu0 0.0
  %1283 = vmatpush2.msra.mxu0 0.0
  %1284 = vmatprep.subr.mxu0 0.0
  %1285 = vmatpush2.msra.mxu0 0.0
  %1286 = vmatprep.subr.mxu0 0.0
  %1287 = vmatpush2.msra.mxu0 0.0
  %1288 = vmatprep.subr.mxu0 0.0
  %1289 = vmatpush2.msra.mxu0 0.0
  %1290 = vmatprep.subr.mxu0 0.0
  %1291 = vmatpush2.msra.mxu0 0.0
  %1292 = vmatprep.subr.mxu0 0.0
  %1293 = vmatpush2.msra.mxu0 0.0
  %1294 = vmatprep.subr.mxu0 0.0
  %1295 = vmatpush2.msra.mxu0 0.0
  %1296 = vmatprep.subr.mxu0 0.0
  %1297 = vmatpush2.msra.mxu0 0.0
  %1298 = vmatprep.subr.mxu0 0.0
  %1299 = vmatpush2.msra.mxu0 0.0
  %1300 = vmatprep.subr.mxu0 0.0
  %1301 = vmatpush2.msra.mxu0 0.0
  %1302 = vmatprep.subr.mxu0 0.0
  %1303 = vmatpush2.msra.mxu0 0.0
  %1304 = vmatprep.subr.mxu0 0.0
  %1305 = vmatpush2.msra.mxu0 0.0
  %1306 = vmatprep.subr.mxu0 0.0
  %1307 = vmatpush2.msra.mxu0 0.0
  %1308 = vmatprep.subr.mxu0 0.0
  %1309 = vmatpush2.msra.mxu0 0.0
  %1310 = vmatprep.mubr.f32.mxu0 0.0
  %1311 = vmatmul.mubr.f32.gmra.mxu0 %v1241
  %v1312 = vpop.f32.mrf.mxu0
  %v1313 = vadd.f32 0.0, %v1312
  %v1314 = vpop.f32.mrf.mxu0
  %1315 = vdwg.mxu0
  %v1316 = vadd.f32 %v1230, %v1313
  %1317 = vrot.lane.b32.xlu0 %v808, 121
  %v1318 = vpop.permute.xlu0 %1317
  %v1319 = vlaneseq
  %v1320 = vshrl.u32 %v1319, 7
  %v1321 = vsub.s32 6, %v1320
  %v1322 = vrot.slane %v64, %v1321
  %v1323 = vmul.f32 %v1318, %v1322
  %s1324 = scalar_lea.vmem %s3, 12
  %v1325 = vld [vmem:[%s1324] sm:$0x3]
  %v1327 = vsel %vm826, %v1325, 0
  %v1330 = vsel %vm830, %v1323, 0
  %1332 = vmatprep.subr.mxu0 0.0
  %1333 = vmatpush1.msra.mxu0 0.0
  %1334 = vmatprep.subr.mxu0 0.0
  %1335 = vmatpush1.msra.mxu0 0.0
  %1336 = vmatprep.subr.mxu0 0.0
  %1337 = vmatpush1.msra.mxu0 0.0
  %1338 = vmatprep.subr.mxu0 0.0
  %1339 = vmatpush1.msra.mxu0 0.0
  %1340 = vmatprep.subr.mxu0 0.0
  %1341 = vmatpush1.msra.mxu0 0.0
  %1342 = vmatprep.subr.mxu0 0.0
  %1343 = vmatpush1.msra.mxu0 0.0
  %1344 = vmatprep.subr.mxu0 0.0
  %1345 = vmatpush1.msra.mxu0 0.0
  %1346 = vmatprep.subr.mxu0 0.0
  %1347 = vmatpush1.msra.mxu0 0.0
  %1348 = vmatprep.subr.mxu0 0.0
  %1349 = vmatpush1.msra.mxu0 0.0
  %1350 = vmatprep.subr.mxu0 0.0
  %1351 = vmatpush1.msra.mxu0 0.0
  %1352 = vmatprep.subr.mxu0 0.0
  %1353 = vmatpush1.msra.mxu0 0.0
  %1354 = vmatprep.subr.mxu0 0.0
  %1355 = vmatpush1.msra.mxu0 0.0
  %1356 = vmatprep.subr.mxu0 0.0
  %1357 = vmatpush1.msra.mxu0 0.0
  %1358 = vmatprep.subr.mxu0 0.0
  %1359 = vmatpush1.msra.mxu0 0.0
  %1360 = vmatprep.subr.mxu0 0.0
  %1361 = vmatpush1.msra.mxu0 0.0
  %1362 = vmatprep.subr.mxu0 0.0
  %1363 = vmatpush1.msra.mxu0 %v1330
  %1364 = vmatprep.subr.mxu0 0.0
  %1365 = vmatpush2.msra.mxu0 0.0
  %1366 = vmatprep.subr.mxu0 0.0
  %1367 = vmatpush2.msra.mxu0 0.0
  %1368 = vmatprep.subr.mxu0 0.0
  %1369 = vmatpush2.msra.mxu0 0.0
  %1370 = vmatprep.subr.mxu0 0.0
  %1371 = vmatpush2.msra.mxu0 0.0
  %1372 = vmatprep.subr.mxu0 0.0
  %1373 = vmatpush2.msra.mxu0 0.0
  %1374 = vmatprep.subr.mxu0 0.0
  %1375 = vmatpush2.msra.mxu0 0.0
  %1376 = vmatprep.subr.mxu0 0.0
  %1377 = vmatpush2.msra.mxu0 0.0
  %1378 = vmatprep.subr.mxu0 0.0
  %1379 = vmatpush2.msra.mxu0 0.0
  %1380 = vmatprep.subr.mxu0 0.0
  %1381 = vmatpush2.msra.mxu0 0.0
  %1382 = vmatprep.subr.mxu0 0.0
  %1383 = vmatpush2.msra.mxu0 0.0
  %1384 = vmatprep.subr.mxu0 0.0
  %1385 = vmatpush2.msra.mxu0 0.0
  %1386 = vmatprep.subr.mxu0 0.0
  %1387 = vmatpush2.msra.mxu0 0.0
  %1388 = vmatprep.subr.mxu0 0.0
  %1389 = vmatpush2.msra.mxu0 0.0
  %1390 = vmatprep.subr.mxu0 0.0
  %1391 = vmatpush2.msra.mxu0 0.0
  %1392 = vmatprep.subr.mxu0 0.0
  %1393 = vmatpush2.msra.mxu0 0.0
  %1394 = vmatprep.subr.mxu0 0.0
  %1395 = vmatpush2.msra.mxu0 0.0
  %1396 = vmatprep.mubr.f32.mxu0 0.0
  %1397 = vmatmul.mubr.f32.gmra.mxu0 %v1327
  %v1398 = vpop.f32.mrf.mxu0
  %v1399 = vadd.f32 0.0, %v1398
  %v1400 = vpop.f32.mrf.mxu0
  %1401 = vdwg.mxu0
  %v1402 = vadd.f32 %v1316, %v1399
  %1403 = vrot.lane.b32.xlu0 %v808, 120
  %v1404 = vpop.permute.xlu0 %1403
  %v1405 = vlaneseq
  %v1406 = vshrl.u32 %v1405, 7
  %v1407 = vsub.s32 7, %v1406
  %v1408 = vrot.slane %v64, %v1407
  %v1409 = vmul.f32 %v1404, %v1408
  %s1410 = scalar_lea.vmem %s3, 14
  %v1411 = vld [vmem:[%s1410] sm:$0x3]
  %v1413 = vsel %vm826, %v1411, 0
  %v1416 = vsel %vm830, %v1409, 0
  %1418 = vmatprep.subr.mxu0 0.0
  %1419 = vmatpush1.msra.mxu0 0.0
  %1420 = vmatprep.subr.mxu0 0.0
  %1421 = vmatpush1.msra.mxu0 0.0
  %1422 = vmatprep.subr.mxu0 0.0
  %1423 = vmatpush1.msra.mxu0 0.0
  %1424 = vmatprep.subr.mxu0 0.0
  %1425 = vmatpush1.msra.mxu0 0.0
  %1426 = vmatprep.subr.mxu0 0.0
  %1427 = vmatpush1.msra.mxu0 0.0
  %1428 = vmatprep.subr.mxu0 0.0
  %1429 = vmatpush1.msra.mxu0 0.0
  %1430 = vmatprep.subr.mxu0 0.0
  %1431 = vmatpush1.msra.mxu0 0.0
  %1432 = vmatprep.subr.mxu0 0.0
  %1433 = vmatpush1.msra.mxu0 0.0
  %1434 = vmatprep.subr.mxu0 0.0
  %1435 = vmatpush1.msra.mxu0 0.0
  %1436 = vmatprep.subr.mxu0 0.0
  %1437 = vmatpush1.msra.mxu0 0.0
  %1438 = vmatprep.subr.mxu0 0.0
  %1439 = vmatpush1.msra.mxu0 0.0
  %1440 = vmatprep.subr.mxu0 0.0
  %1441 = vmatpush1.msra.mxu0 0.0
  %1442 = vmatprep.subr.mxu0 0.0
  %1443 = vmatpush1.msra.mxu0 0.0
  %1444 = vmatprep.subr.mxu0 0.0
  %1445 = vmatpush1.msra.mxu0 0.0
  %1446 = vmatprep.subr.mxu0 0.0
  %1447 = vmatpush1.msra.mxu0 0.0
  %1448 = vmatprep.subr.mxu0 0.0
  %1449 = vmatpush1.msra.mxu0 %v1416
  %1450 = vmatprep.subr.mxu0 0.0
  %1451 = vmatpush2.msra.mxu0 0.0
  %1452 = vmatprep.subr.mxu0 0.0
  %1453 = vmatpush2.msra.mxu0 0.0
  %1454 = vmatprep.subr.mxu0 0.0
  %1455 = vmatpush2.msra.mxu0 0.0
  %1456 = vmatprep.subr.mxu0 0.0
  %1457 = vmatpush2.msra.mxu0 0.0
  %1458 = vmatprep.subr.mxu0 0.0
  %1459 = vmatpush2.msra.mxu0 0.0
  %1460 = vmatprep.subr.mxu0 0.0
  %1461 = vmatpush2.msra.mxu0 0.0
  %1462 = vmatprep.subr.mxu0 0.0
  %1463 = vmatpush2.msra.mxu0 0.0
  %1464 = vmatprep.subr.mxu0 0.0
  %1465 = vmatpush2.msra.mxu0 0.0
  %1466 = vmatprep.subr.mxu0 0.0
  %1467 = vmatpush2.msra.mxu0 0.0
  %1468 = vmatprep.subr.mxu0 0.0
  %1469 = vmatpush2.msra.mxu0 0.0
  %1470 = vmatprep.subr.mxu0 0.0
  %1471 = vmatpush2.msra.mxu0 0.0
  %1472 = vmatprep.subr.mxu0 0.0
  %1473 = vmatpush2.msra.mxu0 0.0
  %1474 = vmatprep.subr.mxu0 0.0
  %1475 = vmatpush2.msra.mxu0 0.0
  %1476 = vmatprep.subr.mxu0 0.0
  %1477 = vmatpush2.msra.mxu0 0.0
  %1478 = vmatprep.subr.mxu0 0.0
  %1479 = vmatpush2.msra.mxu0 0.0
  %1480 = vmatprep.subr.mxu0 0.0
  %1481 = vmatpush2.msra.mxu0 0.0
  %1482 = vmatprep.mubr.f32.mxu0 0.0
  %1483 = vmatmul.mubr.f32.gmra.mxu0 %v1413
  %v1484 = vpop.f32.mrf.mxu0
  %v1485 = vadd.f32 0.0, %v1484
  %v1486 = vpop.f32.mrf.mxu0
  %1487 = vdwg.mxu0
  %v1488 = vadd.f32 %v1402, %v1485
  %1489 = vrot.lane.b32.xlu0 %v808, 119
  %v1490 = vpop.permute.xlu0 %1489
  %v1491 = vlaneseq
  %v1492 = vshrl.u32 %v1491, 7
  %v1493 = vsub.s32 0, %v1492
  %v1494 = vrot.slane %v65, %v1493
  %v1495 = vmul.f32 %v1490, %v1494
  %s1496 = scalar_lea.vmem %s3, 16
  %v1497 = vld [vmem:[%s1496] sm:$0x3]
  %v1499 = vsel %vm826, %v1497, 0
  %v1502 = vsel %vm830, %v1495, 0
  %1504 = vmatprep.subr.mxu0 0.0
  %1505 = vmatpush1.msra.mxu0 0.0
  %1506 = vmatprep.subr.mxu0 0.0
  %1507 = vmatpush1.msra.mxu0 0.0
  %1508 = vmatprep.subr.mxu0 0.0
  %1509 = vmatpush1.msra.mxu0 0.0
  %1510 = vmatprep.subr.mxu0 0.0
  %1511 = vmatpush1.msra.mxu0 0.0
  %1512 = vmatprep.subr.mxu0 0.0
  %1513 = vmatpush1.msra.mxu0 0.0
  %1514 = vmatprep.subr.mxu0 0.0
  %1515 = vmatpush1.msra.mxu0 0.0
  %1516 = vmatprep.subr.mxu0 0.0
  %1517 = vmatpush1.msra.mxu0 0.0
  %1518 = vmatprep.subr.mxu0 0.0
  %1519 = vmatpush1.msra.mxu0 0.0
  %1520 = vmatprep.subr.mxu0 0.0
  %1521 = vmatpush1.msra.mxu0 0.0
  %1522 = vmatprep.subr.mxu0 0.0
  %1523 = vmatpush1.msra.mxu0 0.0
  %1524 = vmatprep.subr.mxu0 0.0
  %1525 = vmatpush1.msra.mxu0 0.0
  %1526 = vmatprep.subr.mxu0 0.0
  %1527 = vmatpush1.msra.mxu0 0.0
  %1528 = vmatprep.subr.mxu0 0.0
  %1529 = vmatpush1.msra.mxu0 0.0
  %1530 = vmatprep.subr.mxu0 0.0
  %1531 = vmatpush1.msra.mxu0 0.0
  %1532 = vmatprep.subr.mxu0 0.0
  %1533 = vmatpush1.msra.mxu0 0.0
  %1534 = vmatprep.subr.mxu0 0.0
  %1535 = vmatpush1.msra.mxu0 %v1502
  %1536 = vmatprep.subr.mxu0 0.0
  %1537 = vmatpush2.msra.mxu0 0.0
  %1538 = vmatprep.subr.mxu0 0.0
  %1539 = vmatpush2.msra.mxu0 0.0
  %1540 = vmatprep.subr.mxu0 0.0
  %1541 = vmatpush2.msra.mxu0 0.0
  %1542 = vmatprep.subr.mxu0 0.0
  %1543 = vmatpush2.msra.mxu0 0.0
  %1544 = vmatprep.subr.mxu0 0.0
  %1545 = vmatpush2.msra.mxu0 0.0
  %1546 = vmatprep.subr.mxu0 0.0
  %1547 = vmatpush2.msra.mxu0 0.0
  %1548 = vmatprep.subr.mxu0 0.0
  %1549 = vmatpush2.msra.mxu0 0.0
  %1550 = vmatprep.subr.mxu0 0.0
  %1551 = vmatpush2.msra.mxu0 0.0
  %1552 = vmatprep.subr.mxu0 0.0
  %1553 = vmatpush2.msra.mxu0 0.0
  %1554 = vmatprep.subr.mxu0 0.0
  %1555 = vmatpush2.msra.mxu0 0.0
  %1556 = vmatprep.subr.mxu0 0.0
  %1557 = vmatpush2.msra.mxu0 0.0
  %1558 = vmatprep.subr.mxu0 0.0
  %1559 = vmatpush2.msra.mxu0 0.0
  %1560 = vmatprep.subr.mxu0 0.0
  %1561 = vmatpush2.msra.mxu0 0.0
  %1562 = vmatprep.subr.mxu0 0.0
  %1563 = vmatpush2.msra.mxu0 0.0
  %1564 = vmatprep.subr.mxu0 0.0
  %1565 = vmatpush2.msra.mxu0 0.0
  %1566 = vmatprep.subr.mxu0 0.0
  %1567 = vmatpush2.msra.mxu0 0.0
  %1568 = vmatprep.mubr.f32.mxu0 0.0
  %1569 = vmatmul.mubr.f32.gmra.mxu0 %v1499
  %v1570 = vpop.f32.mrf.mxu0
  %v1571 = vadd.f32 0.0, %v1570
  %v1572 = vpop.f32.mrf.mxu0
  %1573 = vdwg.mxu0
  %v1574 = vadd.f32 %v1488, %v1571
  %v1575 = vld [vmem:[%s4] sm:$0x3]
  %1577 = vset.pattern.permute.xlu0 0
  %1578 = vperm.xlu0 %1577, %v1575
  %v1579 = vpop.permute.xlu0 %1578
  %v1581 = vadd.f32 %v1574, %v1579
  %v1582 = vmax.f32 %v1581, 0.0
  %v1583 = vld [vmem:[%s11] sm:$0xff]
  %v1584 = vld [vmem:[%s11 + $0x8] sm:$0xff]
  %v1585 = vld [vmem:[%s11 + $0x10] sm:$0xff]
  %v1586 = vld [vmem:[%s11 + $0x18] sm:$0xff]
  %v1587 = vld [vmem:[%s11 + $0x20] sm:$0xff]
  %v1588 = vld [vmem:[%s11 + $0x28] sm:$0xff]
  %v1589 = vld [vmem:[%s11 + $0x30] sm:$0xff]
  %v1590 = vld [vmem:[%s11 + $0x38] sm:$0xff]
  %v1591 = vpack.c.bf16 %v1582, %v1582
  %v1600 = vunpack.c.l.b16 %v1583
  %v1601 = vunpack.c.h.b16 %v1583
  %v1602 = vunpack.c.l.b16 %v1584
  %v1603 = vunpack.c.h.b16 %v1584
  %v1604 = vunpack.c.l.b16 %v1585
  %v1605 = vunpack.c.h.b16 %v1585
  %v1606 = vunpack.c.l.b16 %v1586
  %v1607 = vunpack.c.h.b16 %v1586
  %v1608 = vunpack.c.l.b16 %v1587
  %v1609 = vunpack.c.h.b16 %v1587
  %v1610 = vunpack.c.l.b16 %v1588
  %v1611 = vunpack.c.h.b16 %v1588
  %v1612 = vunpack.c.l.b16 %v1589
  %v1613 = vunpack.c.h.b16 %v1589
  %v1614 = vunpack.c.l.b16 %v1590
  %v1615 = vunpack.c.h.b16 %v1590
  %v1616 = vpack.c.b16 %v1602, %v1600
  %v1617 = vpack.c.b16 %v1603, %v1601
  %v1618 = vpack.c.b16 %v1606, %v1604
  %v1619 = vpack.c.b16 %v1607, %v1605
  %v1620 = vpack.c.b16 %v1610, %v1608
  %v1621 = vpack.c.b16 %v1611, %v1609
  %v1622 = vpack.c.b16 %v1614, %v1612
  %v1623 = vpack.c.b16 %v1615, %v1613
  %v1633 = vsel %vm807, %v1591, 0
  %1635 = vmatprep.subr.bf16.mxu0 0
  %1636 = vmatpush1.bf16.msra.mxu0 0
  %1637 = vmatprep.subr.bf16.mxu0 0
  %1638 = vmatpush1.bf16.msra.mxu0 0
  %1639 = vmatprep.subr.bf16.mxu0 0
  %1640 = vmatpush1.bf16.msra.mxu0 0
  %1641 = vmatprep.subr.bf16.mxu0 0
  %1642 = vmatpush1.bf16.msra.mxu0 0
  %1643 = vmatprep.subr.bf16.mxu0 %v1623
  %1644 = vmatpush1.bf16.msra.mxu0 %v1622
  %1645 = vmatprep.subr.bf16.mxu0 %v1621
  %1646 = vmatpush1.bf16.msra.mxu0 %v1620
  %1647 = vmatprep.subr.bf16.mxu0 %v1619
  %1648 = vmatpush1.bf16.msra.mxu0 %v1618
  %1649 = vmatprep.subr.bf16.mxu0 %v1617
  %1650 = vmatpush1.bf16.msra.mxu0 %v1616
  %1651 = vmatprep.subr.bf16.mxu0 0
  %1652 = vmatpush2.bf16.msra.mxu0 0
  %1653 = vmatprep.subr.bf16.mxu0 0
  %1654 = vmatpush2.bf16.msra.mxu0 0
  %1655 = vmatprep.subr.bf16.mxu0 0
  %1656 = vmatpush2.bf16.msra.mxu0 0
  %1657 = vmatprep.subr.bf16.mxu0 0
  %1658 = vmatpush2.bf16.msra.mxu0 0
  %1659 = vmatprep.subr.bf16.mxu0 0
  %1660 = vmatpush2.bf16.msra.mxu0 0
  %1661 = vmatprep.subr.bf16.mxu0 0
  %1662 = vmatpush2.bf16.msra.mxu0 0
  %1663 = vmatprep.subr.bf16.mxu0 0
  %1664 = vmatpush2.bf16.msra.mxu0 0
  %1665 = vmatprep.subr.bf16.mxu0 0
  %1666 = vmatpush2.bf16.msra.mxu0 0
  %1667 = vmatprep.mubr.bf16.mxu0 0
  %1668 = vmatmul.mubr.bf16.gmra.mxu0 %v1633
  %v1669 = vpop.f32.mrf.mxu0
  %v1670 = vadd.f32 0.0, %v1669
  %v1671 = vpop.f32.mrf.mxu0
  %v1672 = vadd.f32 0.0, %v1671
  %v1673 = vpop.f32.mrf.mxu0
  %v1674 = vpop.f32.mrf.mxu0
  %1675 = vdwg.mxu0
  %1677 = vrot.lane.b32.xlu0 %v1591, 64
  %v1678 = vpop.permute.xlu0 %1677
  %v1680 = vsel %vm807, %v1678, 0
  %1682 = vmatprep.subr.bf16.mxu0 0
  %1683 = vmatpush1.bf16.msra.mxu0 0
  %1684 = vmatprep.subr.bf16.mxu0 0
  %1685 = vmatpush1.bf16.msra.mxu0 0
  %1686 = vmatprep.subr.bf16.mxu0 0
  %1687 = vmatpush1.bf16.msra.mxu0 0
  %1688 = vmatprep.subr.bf16.mxu0 0
  %1689 = vmatpush1.bf16.msra.mxu0 0
  %1690 = vmatprep.subr.bf16.mxu0 %v1623
  %1691 = vmatpush1.bf16.msra.mxu0 %v1622
  %1692 = vmatprep.subr.bf16.mxu0 %v1621
  %1693 = vmatpush1.bf16.msra.mxu0 %v1620
  %1694 = vmatprep.subr.bf16.mxu0 %v1619
  %1695 = vmatpush1.bf16.msra.mxu0 %v1618
  %1696 = vmatprep.subr.bf16.mxu0 %v1617
  %1697 = vmatpush1.bf16.msra.mxu0 %v1616
  %1698 = vmatprep.subr.bf16.mxu0 0
  %1699 = vmatpush2.bf16.msra.mxu0 0
  %1700 = vmatprep.subr.bf16.mxu0 0
  %1701 = vmatpush2.bf16.msra.mxu0 0
  %1702 = vmatprep.subr.bf16.mxu0 0
  %1703 = vmatpush2.bf16.msra.mxu0 0
  %1704 = vmatprep.subr.bf16.mxu0 0
  %1705 = vmatpush2.bf16.msra.mxu0 0
  %1706 = vmatprep.subr.bf16.mxu0 0
  %1707 = vmatpush2.bf16.msra.mxu0 0
  %1708 = vmatprep.subr.bf16.mxu0 0
  %1709 = vmatpush2.bf16.msra.mxu0 0
  %1710 = vmatprep.subr.bf16.mxu0 0
  %1711 = vmatpush2.bf16.msra.mxu0 0
  %1712 = vmatprep.subr.bf16.mxu0 0
  %1713 = vmatpush2.bf16.msra.mxu0 0
  %1714 = vmatprep.mubr.bf16.mxu0 0
  %1715 = vmatmul.mubr.bf16.gmra.mxu0 %v1680
  %v1716 = vpop.f32.mrf.mxu0
  %v1717 = vadd.f32 0.0, %v1716
  %v1718 = vpop.f32.mrf.mxu0
  %v1719 = vadd.f32 0.0, %v1718
  %v1720 = vpop.f32.mrf.mxu0
  %v1721 = vpop.f32.mrf.mxu0
  %1722 = vdwg.mxu0
  %v1723 = vld [vmem:[%s5] sm:$0xf]
  %v1724 = vld [vmem:[%s6] sm:$0xf]
  %1726 = vset.pattern.permute.xlu0 0
  %1727 = vperm.xlu0 %1726, %v1724
  %v1728 = vpop.permute.xlu0 %1727
  %v1731 = vsel %vm826, %v1723, 0
  %v1734 = vsel %vm830, %v1670, 0
  %v1737 = vsel %vm830, %v1672, 0
  %v1740 = vsel %vm830, %v1717, 0
  %v1743 = vsel %vm830, %v1719, 0
  %1745 = vmatprep.subr.mxu0 0.0
  %1746 = vmatpush1.msra.mxu0 0.0
  %1747 = vmatprep.subr.mxu0 0.0
  %1748 = vmatpush1.msra.mxu0 0.0
  %1749 = vmatprep.subr.mxu0 0.0
  %1750 = vmatpush1.msra.mxu0 0.0
  %1751 = vmatprep.subr.mxu0 0.0
  %1752 = vmatpush1.msra.mxu0 0.0
  %1753 = vmatprep.subr.mxu0 0.0
  %1754 = vmatpush1.msra.mxu0 0.0
  %1755 = vmatprep.subr.mxu0 0.0
  %1756 = vmatpush1.msra.mxu0 0.0
  %1757 = vmatprep.subr.mxu0 0.0
  %1758 = vmatpush1.msra.mxu0 0.0
  %1759 = vmatprep.subr.mxu0 0.0
  %1760 = vmatpush1.msra.mxu0 0.0
  %1761 = vmatprep.subr.mxu0 0.0
  %1762 = vmatpush1.msra.mxu0 0.0
  %1763 = vmatprep.subr.mxu0 0.0
  %1764 = vmatpush1.msra.mxu0 0.0
  %1765 = vmatprep.subr.mxu0 0.0
  %1766 = vmatpush1.msra.mxu0 0.0
  %1767 = vmatprep.subr.mxu0 0.0
  %1768 = vmatpush1.msra.mxu0 0.0
  %1769 = vmatprep.subr.mxu0 0.0
  %1770 = vmatpush1.msra.mxu0 0.0
  %1771 = vmatprep.subr.mxu0 0.0
  %1772 = vmatpush1.msra.mxu0 0.0
  %1773 = vmatprep.subr.mxu0 0.0
  %1774 = vmatpush1.msra.mxu0 0.0
  %1775 = vmatprep.subr.mxu0 %v1737
  %1776 = vmatpush1.msra.mxu0 %v1734
  %1777 = vmatprep.subr.mxu0 0.0
  %1778 = vmatpush2.msra.mxu0 0.0
  %1779 = vmatprep.subr.mxu0 0.0
  %1780 = vmatpush2.msra.mxu0 0.0
  %1781 = vmatprep.subr.mxu0 0.0
  %1782 = vmatpush2.msra.mxu0 0.0
  %1783 = vmatprep.subr.mxu0 0.0
  %1784 = vmatpush2.msra.mxu0 0.0
  %1785 = vmatprep.subr.mxu0 0.0
  %1786 = vmatpush2.msra.mxu0 0.0
  %1787 = vmatprep.subr.mxu0 0.0
  %1788 = vmatpush2.msra.mxu0 0.0
  %1789 = vmatprep.subr.mxu0 0.0
  %1790 = vmatpush2.msra.mxu0 0.0
  %1791 = vmatprep.subr.mxu0 0.0
  %1792 = vmatpush2.msra.mxu0 0.0
  %1793 = vmatprep.subr.mxu0 0.0
  %1794 = vmatpush2.msra.mxu0 0.0
  %1795 = vmatprep.subr.mxu0 0.0
  %1796 = vmatpush2.msra.mxu0 0.0
  %1797 = vmatprep.subr.mxu0 0.0
  %1798 = vmatpush2.msra.mxu0 0.0
  %1799 = vmatprep.subr.mxu0 0.0
  %1800 = vmatpush2.msra.mxu0 0.0
  %1801 = vmatprep.subr.mxu0 0.0
  %1802 = vmatpush2.msra.mxu0 0.0
  %1803 = vmatprep.subr.mxu0 0.0
  %1804 = vmatpush2.msra.mxu0 0.0
  %1805 = vmatprep.subr.mxu0 0.0
  %1806 = vmatpush2.msra.mxu0 0.0
  %1807 = vmatprep.subr.mxu0 0.0
  %1808 = vmatpush2.msra.mxu0 0.0
  %1809 = vmatprep.mubr.f32.mxu0 0.0
  %1810 = vmatmul.mubr.f32.gmra.mxu0 %v1731
  %v1811 = vpop.f32.mrf.mxu0
  %v1812 = vadd.f32 %v1728, %v1811
  %v1813 = vpop.f32.mrf.mxu0
  %v1814 = vadd.f32 %v1728, %v1813
  %1815 = vdwg.mxu0
  %1816 = vmatprep.subr.mxu0 0.0
  %1817 = vmatpush1.msra.mxu0 0.0
  %1818 = vmatprep.subr.mxu0 0.0
  %1819 = vmatpush1.msra.mxu0 0.0
  %1820 = vmatprep.subr.mxu0 0.0
  %1821 = vmatpush1.msra.mxu0 0.0
  %1822 = vmatprep.subr.mxu0 0.0
  %1823 = vmatpush1.msra.mxu0 0.0
  %1824 = vmatprep.subr.mxu0 0.0
  %1825 = vmatpush1.msra.mxu0 0.0
  %1826 = vmatprep.subr.mxu0 0.0
  %1827 = vmatpush1.msra.mxu0 0.0
  %1828 = vmatprep.subr.mxu0 0.0
  %1829 = vmatpush1.msra.mxu0 0.0
  %1830 = vmatprep.subr.mxu0 0.0
  %1831 = vmatpush1.msra.mxu0 0.0
  %1832 = vmatprep.subr.mxu0 0.0
  %1833 = vmatpush1.msra.mxu0 0.0
  %1834 = vmatprep.subr.mxu0 0.0
  %1835 = vmatpush1.msra.mxu0 0.0
  %1836 = vmatprep.subr.mxu0 0.0
  %1837 = vmatpush1.msra.mxu0 0.0
  %1838 = vmatprep.subr.mxu0 0.0
  %1839 = vmatpush1.msra.mxu0 0.0
  %1840 = vmatprep.subr.mxu0 0.0
  %1841 = vmatpush1.msra.mxu0 0.0
  %1842 = vmatprep.subr.mxu0 0.0
  %1843 = vmatpush1.msra.mxu0 0.0
  %1844 = vmatprep.subr.mxu0 0.0
  %1845 = vmatpush1.msra.mxu0 0.0
  %1846 = vmatprep.subr.mxu0 %v1743
  %1847 = vmatpush1.msra.mxu0 %v1740
  %1848 = vmatprep.subr.mxu0 0.0
  %1849 = vmatpush2.msra.mxu0 0.0
  %1850 = vmatprep.subr.mxu0 0.0
  %1851 = vmatpush2.msra.mxu0 0.0
  %1852 = vmatprep.subr.mxu0 0.0
  %1853 = vmatpush2.msra.mxu0 0.0
  %1854 = vmatprep.subr.mxu0 0.0
  %1855 = vmatpush2.msra.mxu0 0.0
  %1856 = vmatprep.subr.mxu0 0.0
  %1857 = vmatpush2.msra.mxu0 0.0
  %1858 = vmatprep.subr.mxu0 0.0
  %1859 = vmatpush2.msra.mxu0 0.0
  %1860 = vmatprep.subr.mxu0 0.0
  %1861 = vmatpush2.msra.mxu0 0.0
  %1862 = vmatprep.subr.mxu0 0.0
  %1863 = vmatpush2.msra.mxu0 0.0
  %1864 = vmatprep.subr.mxu0 0.0
  %1865 = vmatpush2.msra.mxu0 0.0
  %1866 = vmatprep.subr.mxu0 0.0
  %1867 = vmatpush2.msra.mxu0 0.0
  %1868 = vmatprep.subr.mxu0 0.0
  %1869 = vmatpush2.msra.mxu0 0.0
  %1870 = vmatprep.subr.mxu0 0.0
  %1871 = vmatpush2.msra.mxu0 0.0
  %1872 = vmatprep.subr.mxu0 0.0
  %1873 = vmatpush2.msra.mxu0 0.0
  %1874 = vmatprep.subr.mxu0 0.0
  %1875 = vmatpush2.msra.mxu0 0.0
  %1876 = vmatprep.subr.mxu0 0.0
  %1877 = vmatpush2.msra.mxu0 0.0
  %1878 = vmatprep.subr.mxu0 0.0
  %1879 = vmatpush2.msra.mxu0 0.0
  %1880 = vmatprep.mubr.f32.mxu0 0.0
  %1881 = vmatmul.mubr.f32.gmra.mxu0 %v1731
  %v1882 = vpop.f32.mrf.mxu0
  %v1883 = vadd.f32 %v1728, %v1882
  %v1884 = vpop.f32.mrf.mxu0
  %v1885 = vadd.f32 %v1728, %v1884
  %1886 = vdwg.mxu0
  %v1887 = vxor.u32 %v1812, 2147483648
  %v1888 = vxor.u32 %v1814, 2147483648
  %v1889 = vxor.u32 %v1883, 2147483648
  %v1890 = vxor.u32 %v1885, 2147483648
  %v1891 = vmul.f32 %v1887, 1.442695
  %v1892 = vpow.pop %v1891
  %v1893 = vmul.f32 %v1888, 1.442695
  %v1894 = vpow.pop %v1893
  %v1895 = vmul.f32 %v1889, 1.442695
  %v1896 = vpow.pop %v1895
  %v1897 = vmul.f32 %v1890, 1.442695
  %v1898 = vpow.pop %v1897
  %v1899 = vadd.f32 %v1892, 1.0
  %v1900 = vadd.f32 %v1894, 1.0
  %v1901 = vadd.f32 %v1896, 1.0
  %v1902 = vadd.f32 %v1898, 1.0
  %v1903 = vrcp.pop %v1899
  %v1904 = vmul.f32 1.0, %v1903
  %v1905 = vrcp.pop %v1900
  %v1906 = vmul.f32 1.0, %v1905
  %v1907 = vrcp.pop %v1901
  %v1908 = vmul.f32 1.0, %v1907
  %v1909 = vrcp.pop %v1902
  %v1910 = vmul.f32 1.0, %v1909
  %1911 = vrot.lane.b32.xlu0 %v289, 17
  %v1912 = vpop.permute.xlu0 %1911
  %1913 = vrot.lane.b32.xlu0 %v290, 17
  %v1914 = vpop.permute.xlu0 %1913
  %1915 = vrot.lane.b32.xlu0 %v291, 17
  %v1916 = vpop.permute.xlu0 %1915
  %1917 = vrot.lane.b32.xlu0 %v292, 17
  %v1918 = vpop.permute.xlu0 %1917
  %v1919 = vsel %vm303, %v1916, %v1918
  %v1920 = vsel %vm303, %v1914, %v1916
  %v1921 = vsel %vm303, %v1912, %v1914
  %v1922 = vsel %vm303, %v1918, %v1912
  %v1923 = vmul.f32 %v1922, %v311
  %v1924 = vmul.f32 %v1921, %v315
  %v1925 = vmul.f32 %v1920, %v319
  %v1926 = vmul.f32 %v1919, %v323
  %v1927 = vld [vmem:[%s7] sm:$0xf]
  %1928 = vrot.lane.b32.xlu0 %v289, 16
  %v1929 = vpop.permute.xlu0 %1928
  %1930 = vrot.lane.b32.xlu0 %v290, 16
  %v1931 = vpop.permute.xlu0 %1930
  %1932 = vrot.lane.b32.xlu0 %v291, 16
  %v1933 = vpop.permute.xlu0 %1932
  %1934 = vrot.lane.b32.xlu0 %v292, 16
  %v1935 = vpop.permute.xlu0 %1934
  %v1936 = vsel %vm340, %v1933, %v1935
  %v1937 = vsel %vm340, %v1931, %v1933
  %v1938 = vsel %vm340, %v1929, %v1931
  %v1939 = vsel %vm340, %v1935, %v1929
  %v1940 = vmul.f32 %v1939, %v348
  %v1941 = vmul.f32 %v1938, %v352
  %v1942 = vmul.f32 %v1937, %v356
  %v1943 = vmul.f32 %v1936, %v360
  %s1944 = scalar_lea.vmem %s7, 4
  %v1945 = vld [vmem:[%s1944] sm:$0xf]
  %vm1946 = vcmask 31744
  %v1948 = vsel %vm1946, %v1945, 0
  %vm1950 = vcmask 1043456
  %v1952 = vsel %vm1950, %v1940, 0
  %v1955 = vsel %vm1950, %v1941, 0
  %v1958 = vsel %vm1950, %v1942, 0
  %v1961 = vsel %vm1950, %v1943, 0
  %1963 = vmatprep.subr.mxu0 0.0
  %1964 = vmatpush1.msra.mxu0 0.0
  %1965 = vmatprep.subr.mxu0 0.0
  %1966 = vmatpush1.msra.mxu0 0.0
  %1967 = vmatprep.subr.mxu0 0.0
  %1968 = vmatpush1.msra.mxu0 0.0
  %1969 = vmatprep.subr.mxu0 0.0
  %1970 = vmatpush1.msra.mxu0 0.0
  %1971 = vmatprep.subr.mxu0 0.0
  %1972 = vmatpush1.msra.mxu0 0.0
  %1973 = vmatprep.subr.mxu0 0.0
  %1974 = vmatpush1.msra.mxu0 0.0
  %1975 = vmatprep.subr.mxu0 0.0
  %1976 = vmatpush1.msra.mxu0 0.0
  %1977 = vmatprep.subr.mxu0 0.0
  %1978 = vmatpush1.msra.mxu0 0.0
  %1979 = vmatprep.subr.mxu0 0.0
  %1980 = vmatpush1.msra.mxu0 0.0
  %1981 = vmatprep.subr.mxu0 0.0
  %1982 = vmatpush1.msra.mxu0 0.0
  %1983 = vmatprep.subr.mxu0 0.0
  %1984 = vmatpush1.msra.mxu0 0.0
  %1985 = vmatprep.subr.mxu0 0.0
  %1986 = vmatpush1.msra.mxu0 0.0
  %1987 = vmatprep.subr.mxu0 0.0
  %1988 = vmatpush1.msra.mxu0 0.0
  %1989 = vmatprep.subr.mxu0 0.0
  %1990 = vmatpush1.msra.mxu0 0.0
  %1991 = vmatprep.subr.mxu0 0.0
  %1992 = vmatpush1.msra.mxu0 0.0
  %1993 = vmatprep.subr.mxu0 %v1955
  %1994 = vmatpush1.msra.mxu0 %v1952
  %1995 = vmatprep.subr.mxu0 0.0
  %1996 = vmatpush2.msra.mxu0 0.0
  %1997 = vmatprep.subr.mxu0 0.0
  %1998 = vmatpush2.msra.mxu0 0.0
  %1999 = vmatprep.subr.mxu0 0.0
  %2000 = vmatpush2.msra.mxu0 0.0
  %2001 = vmatprep.subr.mxu0 0.0
  %2002 = vmatpush2.msra.mxu0 0.0
  %2003 = vmatprep.subr.mxu0 0.0
  %2004 = vmatpush2.msra.mxu0 0.0
  %2005 = vmatprep.subr.mxu0 0.0
  %2006 = vmatpush2.msra.mxu0 0.0
  %2007 = vmatprep.subr.mxu0 0.0
  %2008 = vmatpush2.msra.mxu0 0.0
  %2009 = vmatprep.subr.mxu0 0.0
  %2010 = vmatpush2.msra.mxu0 0.0
  %2011 = vmatprep.subr.mxu0 0.0
  %2012 = vmatpush2.msra.mxu0 0.0
  %2013 = vmatprep.subr.mxu0 0.0
  %2014 = vmatpush2.msra.mxu0 0.0
  %2015 = vmatprep.subr.mxu0 0.0
  %2016 = vmatpush2.msra.mxu0 0.0
  %2017 = vmatprep.subr.mxu0 0.0
  %2018 = vmatpush2.msra.mxu0 0.0
  %2019 = vmatprep.subr.mxu0 0.0
  %2020 = vmatpush2.msra.mxu0 0.0
  %2021 = vmatprep.subr.mxu0 0.0
  %2022 = vmatpush2.msra.mxu0 0.0
  %2023 = vmatprep.subr.mxu0 0.0
  %2024 = vmatpush2.msra.mxu0 0.0
  %2025 = vmatprep.subr.mxu0 0.0
  %2026 = vmatpush2.msra.mxu0 0.0
  %2027 = vmatprep.mubr.f32.mxu0 0.0
  %2028 = vmatmul.mubr.f32.gmra.mxu0 %v1948
  %v2029 = vpop.f32.mrf.mxu0
  %v2030 = vadd.f32 0.0, %v2029
  %v2031 = vpop.f32.mrf.mxu0
  %v2032 = vadd.f32 0.0, %v2031
  %2033 = vdwg.mxu0
  %2034 = vmatprep.subr.mxu0 0.0
  %2035 = vmatpush1.msra.mxu0 0.0
  %2036 = vmatprep.subr.mxu0 0.0
  %2037 = vmatpush1.msra.mxu0 0.0
  %2038 = vmatprep.subr.mxu0 0.0
  %2039 = vmatpush1.msra.mxu0 0.0
  %2040 = vmatprep.subr.mxu0 0.0
  %2041 = vmatpush1.msra.mxu0 0.0
  %2042 = vmatprep.subr.mxu0 0.0
  %2043 = vmatpush1.msra.mxu0 0.0
  %2044 = vmatprep.subr.mxu0 0.0
  %2045 = vmatpush1.msra.mxu0 0.0
  %2046 = vmatprep.subr.mxu0 0.0
  %2047 = vmatpush1.msra.mxu0 0.0
  %2048 = vmatprep.subr.mxu0 0.0
  %2049 = vmatpush1.msra.mxu0 0.0
  %2050 = vmatprep.subr.mxu0 0.0
  %2051 = vmatpush1.msra.mxu0 0.0
  %2052 = vmatprep.subr.mxu0 0.0
  %2053 = vmatpush1.msra.mxu0 0.0
  %2054 = vmatprep.subr.mxu0 0.0
  %2055 = vmatpush1.msra.mxu0 0.0
  %2056 = vmatprep.subr.mxu0 0.0
  %2057 = vmatpush1.msra.mxu0 0.0
  %2058 = vmatprep.subr.mxu0 0.0
  %2059 = vmatpush1.msra.mxu0 0.0
  %2060 = vmatprep.subr.mxu0 0.0
  %2061 = vmatpush1.msra.mxu0 0.0
  %2062 = vmatprep.subr.mxu0 0.0
  %2063 = vmatpush1.msra.mxu0 0.0
  %2064 = vmatprep.subr.mxu0 %v1961
  %2065 = vmatpush1.msra.mxu0 %v1958
  %2066 = vmatprep.subr.mxu0 0.0
  %2067 = vmatpush2.msra.mxu0 0.0
  %2068 = vmatprep.subr.mxu0 0.0
  %2069 = vmatpush2.msra.mxu0 0.0
  %2070 = vmatprep.subr.mxu0 0.0
  %2071 = vmatpush2.msra.mxu0 0.0
  %2072 = vmatprep.subr.mxu0 0.0
  %2073 = vmatpush2.msra.mxu0 0.0
  %2074 = vmatprep.subr.mxu0 0.0
  %2075 = vmatpush2.msra.mxu0 0.0
  %2076 = vmatprep.subr.mxu0 0.0
  %2077 = vmatpush2.msra.mxu0 0.0
  %2078 = vmatprep.subr.mxu0 0.0
  %2079 = vmatpush2.msra.mxu0 0.0
  %2080 = vmatprep.subr.mxu0 0.0
  %2081 = vmatpush2.msra.mxu0 0.0
  %2082 = vmatprep.subr.mxu0 0.0
  %2083 = vmatpush2.msra.mxu0 0.0
  %2084 = vmatprep.subr.mxu0 0.0
  %2085 = vmatpush2.msra.mxu0 0.0
  %2086 = vmatprep.subr.mxu0 0.0
  %2087 = vmatpush2.msra.mxu0 0.0
  %2088 = vmatprep.subr.mxu0 0.0
  %2089 = vmatpush2.msra.mxu0 0.0
  %2090 = vmatprep.subr.mxu0 0.0
  %2091 = vmatpush2.msra.mxu0 0.0
  %2092 = vmatprep.subr.mxu0 0.0
  %2093 = vmatpush2.msra.mxu0 0.0
  %2094 = vmatprep.subr.mxu0 0.0
  %2095 = vmatpush2.msra.mxu0 0.0
  %2096 = vmatprep.subr.mxu0 0.0
  %2097 = vmatpush2.msra.mxu0 0.0
  %2098 = vmatprep.mubr.f32.mxu0 0.0
  %2099 = vmatmul.mubr.f32.gmra.mxu0 %v1948
  %v2100 = vpop.f32.mrf.mxu0
  %v2101 = vadd.f32 0.0, %v2100
  %v2102 = vpop.f32.mrf.mxu0
  %v2103 = vadd.f32 0.0, %v2102
  %2104 = vdwg.mxu0
  %v2106 = vsel %vm1946, %v1927, 0
  %v2109 = vsel %vm1950, %v1923, 0
  %v2112 = vsel %vm1950, %v1924, 0
  %v2115 = vsel %vm1950, %v1925, 0
  %v2118 = vsel %vm1950, %v1926, 0
  %2120 = vmatprep.subr.mxu0 0.0
  %2121 = vmatpush1.msra.mxu0 0.0
  %2122 = vmatprep.subr.mxu0 0.0
  %2123 = vmatpush1.msra.mxu0 0.0
  %2124 = vmatprep.subr.mxu0 0.0
  %2125 = vmatpush1.msra.mxu0 0.0
  %2126 = vmatprep.subr.mxu0 0.0
  %2127 = vmatpush1.msra.mxu0 0.0
  %2128 = vmatprep.subr.mxu0 0.0
  %2129 = vmatpush1.msra.mxu0 0.0
  %2130 = vmatprep.subr.mxu0 0.0
  %2131 = vmatpush1.msra.mxu0 0.0
  %2132 = vmatprep.subr.mxu0 0.0
  %2133 = vmatpush1.msra.mxu0 0.0
  %2134 = vmatprep.subr.mxu0 0.0
  %2135 = vmatpush1.msra.mxu0 0.0
  %2136 = vmatprep.subr.mxu0 0.0
  %2137 = vmatpush1.msra.mxu0 0.0
  %2138 = vmatprep.subr.mxu0 0.0
  %2139 = vmatpush1.msra.mxu0 0.0
  %2140 = vmatprep.subr.mxu0 0.0
  %2141 = vmatpush1.msra.mxu0 0.0
  %2142 = vmatprep.subr.mxu0 0.0
  %2143 = vmatpush1.msra.mxu0 0.0
  %2144 = vmatprep.subr.mxu0 0.0
  %2145 = vmatpush1.msra.mxu0 0.0
  %2146 = vmatprep.subr.mxu0 0.0
  %2147 = vmatpush1.msra.mxu0 0.0
  %2148 = vmatprep.subr.mxu0 0.0
  %2149 = vmatpush1.msra.mxu0 0.0
  %2150 = vmatprep.subr.mxu0 %v2112
  %2151 = vmatpush1.msra.mxu0 %v2109
  %2152 = vmatprep.subr.mxu0 0.0
  %2153 = vmatpush2.msra.mxu0 0.0
  %2154 = vmatprep.subr.mxu0 0.0
  %2155 = vmatpush2.msra.mxu0 0.0
  %2156 = vmatprep.subr.mxu0 0.0
  %2157 = vmatpush2.msra.mxu0 0.0
  %2158 = vmatprep.subr.mxu0 0.0
  %2159 = vmatpush2.msra.mxu0 0.0
  %2160 = vmatprep.subr.mxu0 0.0
  %2161 = vmatpush2.msra.mxu0 0.0
  %2162 = vmatprep.subr.mxu0 0.0
  %2163 = vmatpush2.msra.mxu0 0.0
  %2164 = vmatprep.subr.mxu0 0.0
  %2165 = vmatpush2.msra.mxu0 0.0
  %2166 = vmatprep.subr.mxu0 0.0
  %2167 = vmatpush2.msra.mxu0 0.0
  %2168 = vmatprep.subr.mxu0 0.0
  %2169 = vmatpush2.msra.mxu0 0.0
  %2170 = vmatprep.subr.mxu0 0.0
  %2171 = vmatpush2.msra.mxu0 0.0
  %2172 = vmatprep.subr.mxu0 0.0
  %2173 = vmatpush2.msra.mxu0 0.0
  %2174 = vmatprep.subr.mxu0 0.0
  %2175 = vmatpush2.msra.mxu0 0.0
  %2176 = vmatprep.subr.mxu0 0.0
  %2177 = vmatpush2.msra.mxu0 0.0
  %2178 = vmatprep.subr.mxu0 0.0
  %2179 = vmatpush2.msra.mxu0 0.0
  %2180 = vmatprep.subr.mxu0 0.0
  %2181 = vmatpush2.msra.mxu0 0.0
  %2182 = vmatprep.subr.mxu0 0.0
  %2183 = vmatpush2.msra.mxu0 0.0
  %2184 = vmatprep.mubr.f32.mxu0 0.0
  %2185 = vmatmul.mubr.f32.gmra.mxu0 %v2106
  %v2186 = vpop.f32.mrf.mxu0
  %v2187 = vadd.f32 %v2030, %v2186
  %v2188 = vpop.f32.mrf.mxu0
  %v2189 = vadd.f32 %v2032, %v2188
  %2190 = vdwg.mxu0
  %2191 = vmatprep.subr.mxu0 0.0
  %2192 = vmatpush1.msra.mxu0 0.0
  %2193 = vmatprep.subr.mxu0 0.0
  %2194 = vmatpush1.msra.mxu0 0.0
  %2195 = vmatprep.subr.mxu0 0.0
  %2196 = vmatpush1.msra.mxu0 0.0
  %2197 = vmatprep.subr.mxu0 0.0
  %2198 = vmatpush1.msra.mxu0 0.0
  %2199 = vmatprep.subr.mxu0 0.0
  %2200 = vmatpush1.msra.mxu0 0.0
  %2201 = vmatprep.subr.mxu0 0.0
  %2202 = vmatpush1.msra.mxu0 0.0
  %2203 = vmatprep.subr.mxu0 0.0
  %2204 = vmatpush1.msra.mxu0 0.0
  %2205 = vmatprep.subr.mxu0 0.0
  %2206 = vmatpush1.msra.mxu0 0.0
  %2207 = vmatprep.subr.mxu0 0.0
  %2208 = vmatpush1.msra.mxu0 0.0
  %2209 = vmatprep.subr.mxu0 0.0
  %2210 = vmatpush1.msra.mxu0 0.0
  %2211 = vmatprep.subr.mxu0 0.0
  %2212 = vmatpush1.msra.mxu0 0.0
  %2213 = vmatprep.subr.mxu0 0.0
  %2214 = vmatpush1.msra.mxu0 0.0
  %2215 = vmatprep.subr.mxu0 0.0
  %2216 = vmatpush1.msra.mxu0 0.0
  %2217 = vmatprep.subr.mxu0 0.0
  %2218 = vmatpush1.msra.mxu0 0.0
  %2219 = vmatprep.subr.mxu0 0.0
  %2220 = vmatpush1.msra.mxu0 0.0
  %2221 = vmatprep.subr.mxu0 %v2118
  %2222 = vmatpush1.msra.mxu0 %v2115
  %2223 = vmatprep.subr.mxu0 0.0
  %2224 = vmatpush2.msra.mxu0 0.0
  %2225 = vmatprep.subr.mxu0 0.0
  %2226 = vmatpush2.msra.mxu0 0.0
  %2227 = vmatprep.subr.mxu0 0.0
  %2228 = vmatpush2.msra.mxu0 0.0
  %2229 = vmatprep.subr.mxu0 0.0
  %2230 = vmatpush2.msra.mxu0 0.0
  %2231 = vmatprep.subr.mxu0 0.0
  %2232 = vmatpush2.msra.mxu0 0.0
  %2233 = vmatprep.subr.mxu0 0.0
  %2234 = vmatpush2.msra.mxu0 0.0
  %2235 = vmatprep.subr.mxu0 0.0
  %2236 = vmatpush2.msra.mxu0 0.0
  %2237 = vmatprep.subr.mxu0 0.0
  %2238 = vmatpush2.msra.mxu0 0.0
  %2239 = vmatprep.subr.mxu0 0.0
  %2240 = vmatpush2.msra.mxu0 0.0
  %2241 = vmatprep.subr.mxu0 0.0
  %2242 = vmatpush2.msra.mxu0 0.0
  %2243 = vmatprep.subr.mxu0 0.0
  %2244 = vmatpush2.msra.mxu0 0.0
  %2245 = vmatprep.subr.mxu0 0.0
  %2246 = vmatpush2.msra.mxu0 0.0
  %2247 = vmatprep.subr.mxu0 0.0
  %2248 = vmatpush2.msra.mxu0 0.0
  %2249 = vmatprep.subr.mxu0 0.0
  %2250 = vmatpush2.msra.mxu0 0.0
  %2251 = vmatprep.subr.mxu0 0.0
  %2252 = vmatpush2.msra.mxu0 0.0
  %2253 = vmatprep.subr.mxu0 0.0
  %2254 = vmatpush2.msra.mxu0 0.0
  %2255 = vmatprep.mubr.f32.mxu0 0.0
  %2256 = vmatmul.mubr.f32.gmra.mxu0 %v2106
  %v2257 = vpop.f32.mrf.mxu0
  %v2258 = vadd.f32 %v2101, %v2257
  %v2259 = vpop.f32.mrf.mxu0
  %v2260 = vadd.f32 %v2103, %v2259
  %2261 = vdwg.mxu0
  %2262 = vrot.lane.b32.xlu0 %v289, 15
  %v2263 = vpop.permute.xlu0 %2262
  %2264 = vrot.lane.b32.xlu0 %v290, 15
  %v2265 = vpop.permute.xlu0 %2264
  %2266 = vrot.lane.b32.xlu0 %v291, 15
  %v2267 = vpop.permute.xlu0 %2266
  %2268 = vrot.lane.b32.xlu0 %v292, 15
  %v2269 = vpop.permute.xlu0 %2268
  %v2270 = vsel %vm377, %v2267, %v2269
  %v2271 = vsel %vm377, %v2265, %v2267
  %v2272 = vsel %vm377, %v2263, %v2265
  %v2273 = vsel %vm377, %v2269, %v2263
  %v2274 = vmul.f32 %v2273, %v385
  %v2275 = vmul.f32 %v2272, %v389
  %v2276 = vmul.f32 %v2271, %v393
  %v2277 = vmul.f32 %v2270, %v397
  %s2278 = scalar_lea.vmem %s7, 8
  %v2279 = vld [vmem:[%s2278] sm:$0xf]
  %v2281 = vsel %vm1946, %v2279, 0
  %v2284 = vsel %vm1950, %v2274, 0
  %v2287 = vsel %vm1950, %v2275, 0
  %v2290 = vsel %vm1950, %v2276, 0
  %v2293 = vsel %vm1950, %v2277, 0
  %2295 = vmatprep.subr.mxu0 0.0
  %2296 = vmatpush1.msra.mxu0 0.0
  %2297 = vmatprep.subr.mxu0 0.0
  %2298 = vmatpush1.msra.mxu0 0.0
  %2299 = vmatprep.subr.mxu0 0.0
  %2300 = vmatpush1.msra.mxu0 0.0
  %2301 = vmatprep.subr.mxu0 0.0
  %2302 = vmatpush1.msra.mxu0 0.0
  %2303 = vmatprep.subr.mxu0 0.0
  %2304 = vmatpush1.msra.mxu0 0.0
  %2305 = vmatprep.subr.mxu0 0.0
  %2306 = vmatpush1.msra.mxu0 0.0
  %2307 = vmatprep.subr.mxu0 0.0
  %2308 = vmatpush1.msra.mxu0 0.0
  %2309 = vmatprep.subr.mxu0 0.0
  %2310 = vmatpush1.msra.mxu0 0.0
  %2311 = vmatprep.subr.mxu0 0.0
  %2312 = vmatpush1.msra.mxu0 0.0
  %2313 = vmatprep.subr.mxu0 0.0
  %2314 = vmatpush1.msra.mxu0 0.0
  %2315 = vmatprep.subr.mxu0 0.0
  %2316 = vmatpush1.msra.mxu0 0.0
  %2317 = vmatprep.subr.mxu0 0.0
  %2318 = vmatpush1.msra.mxu0 0.0
  %2319 = vmatprep.subr.mxu0 0.0
  %2320 = vmatpush1.msra.mxu0 0.0
  %2321 = vmatprep.subr.mxu0 0.0
  %2322 = vmatpush1.msra.mxu0 0.0
  %2323 = vmatprep.subr.mxu0 0.0
  %2324 = vmatpush1.msra.mxu0 0.0
  %2325 = vmatprep.subr.mxu0 %v2287
  %2326 = vmatpush1.msra.mxu0 %v2284
  %2327 = vmatprep.subr.mxu0 0.0
  %2328 = vmatpush2.msra.mxu0 0.0
  %2329 = vmatprep.subr.mxu0 0.0
  %2330 = vmatpush2.msra.mxu0 0.0
  %2331 = vmatprep.subr.mxu0 0.0
  %2332 = vmatpush2.msra.mxu0 0.0
  %2333 = vmatprep.subr.mxu0 0.0
  %2334 = vmatpush2.msra.mxu0 0.0
  %2335 = vmatprep.subr.mxu0 0.0
  %2336 = vmatpush2.msra.mxu0 0.0
  %2337 = vmatprep.subr.mxu0 0.0
  %2338 = vmatpush2.msra.mxu0 0.0
  %2339 = vmatprep.subr.mxu0 0.0
  %2340 = vmatpush2.msra.mxu0 0.0
  %2341 = vmatprep.subr.mxu0 0.0
  %2342 = vmatpush2.msra.mxu0 0.0
  %2343 = vmatprep.subr.mxu0 0.0
  %2344 = vmatpush2.msra.mxu0 0.0
  %2345 = vmatprep.subr.mxu0 0.0
  %2346 = vmatpush2.msra.mxu0 0.0
  %2347 = vmatprep.subr.mxu0 0.0
  %2348 = vmatpush2.msra.mxu0 0.0
  %2349 = vmatprep.subr.mxu0 0.0
  %2350 = vmatpush2.msra.mxu0 0.0
  %2351 = vmatprep.subr.mxu0 0.0
  %2352 = vmatpush2.msra.mxu0 0.0
  %2353 = vmatprep.subr.mxu0 0.0
  %2354 = vmatpush2.msra.mxu0 0.0
  %2355 = vmatprep.subr.mxu0 0.0
  %2356 = vmatpush2.msra.mxu0 0.0
  %2357 = vmatprep.subr.mxu0 0.0
  %2358 = vmatpush2.msra.mxu0 0.0
  %2359 = vmatprep.mubr.f32.mxu0 0.0
  %2360 = vmatmul.mubr.f32.gmra.mxu0 %v2281
  %v2361 = vpop.f32.mrf.mxu0
  %v2362 = vadd.f32 0.0, %v2361
  %v2363 = vpop.f32.mrf.mxu0
  %v2364 = vadd.f32 0.0, %v2363
  %2365 = vdwg.mxu0
  %2366 = vmatprep.subr.mxu0 0.0
  %2367 = vmatpush1.msra.mxu0 0.0
  %2368 = vmatprep.subr.mxu0 0.0
  %2369 = vmatpush1.msra.mxu0 0.0
  %2370 = vmatprep.subr.mxu0 0.0
  %2371 = vmatpush1.msra.mxu0 0.0
  %2372 = vmatprep.subr.mxu0 0.0
  %2373 = vmatpush1.msra.mxu0 0.0
  %2374 = vmatprep.subr.mxu0 0.0
  %2375 = vmatpush1.msra.mxu0 0.0
  %2376 = vmatprep.subr.mxu0 0.0
  %2377 = vmatpush1.msra.mxu0 0.0
  %2378 = vmatprep.subr.mxu0 0.0
  %2379 = vmatpush1.msra.mxu0 0.0
  %2380 = vmatprep.subr.mxu0 0.0
  %2381 = vmatpush1.msra.mxu0 0.0
  %2382 = vmatprep.subr.mxu0 0.0
  %2383 = vmatpush1.msra.mxu0 0.0
  %2384 = vmatprep.subr.mxu0 0.0
  %2385 = vmatpush1.msra.mxu0 0.0
  %2386 = vmatprep.subr.mxu0 0.0
  %2387 = vmatpush1.msra.mxu0 0.0
  %2388 = vmatprep.subr.mxu0 0.0
  %2389 = vmatpush1.msra.mxu0 0.0
  %2390 = vmatprep.subr.mxu0 0.0
  %2391 = vmatpush1.msra.mxu0 0.0
  %2392 = vmatprep.subr.mxu0 0.0
  %2393 = vmatpush1.msra.mxu0 0.0
  %2394 = vmatprep.subr.mxu0 0.0
  %2395 = vmatpush1.msra.mxu0 0.0
  %2396 = vmatprep.subr.mxu0 %v2293
  %2397 = vmatpush1.msra.mxu0 %v2290
  %2398 = vmatprep.subr.mxu0 0.0
  %2399 = vmatpush2.msra.mxu0 0.0
  %2400 = vmatprep.subr.mxu0 0.0
  %2401 = vmatpush2.msra.mxu0 0.0
  %2402 = vmatprep.subr.mxu0 0.0
  %2403 = vmatpush2.msra.mxu0 0.0
  %2404 = vmatprep.subr.mxu0 0.0
  %2405 = vmatpush2.msra.mxu0 0.0
  %2406 = vmatprep.subr.mxu0 0.0
  %2407 = vmatpush2.msra.mxu0 0.0
  %2408 = vmatprep.subr.mxu0 0.0
  %2409 = vmatpush2.msra.mxu0 0.0
  %2410 = vmatprep.subr.mxu0 0.0
  %2411 = vmatpush2.msra.mxu0 0.0
  %2412 = vmatprep.subr.mxu0 0.0
  %2413 = vmatpush2.msra.mxu0 0.0
  %2414 = vmatprep.subr.mxu0 0.0
  %2415 = vmatpush2.msra.mxu0 0.0
  %2416 = vmatprep.subr.mxu0 0.0
  %2417 = vmatpush2.msra.mxu0 0.0
  %2418 = vmatprep.subr.mxu0 0.0
  %2419 = vmatpush2.msra.mxu0 0.0
  %2420 = vmatprep.subr.mxu0 0.0
  %2421 = vmatpush2.msra.mxu0 0.0
  %2422 = vmatprep.subr.mxu0 0.0
  %2423 = vmatpush2.msra.mxu0 0.0
  %2424 = vmatprep.subr.mxu0 0.0
  %2425 = vmatpush2.msra.mxu0 0.0
  %2426 = vmatprep.subr.mxu0 0.0
  %2427 = vmatpush2.msra.mxu0 0.0
  %2428 = vmatprep.subr.mxu0 0.0
  %2429 = vmatpush2.msra.mxu0 0.0
  %2430 = vmatprep.mubr.f32.mxu0 0.0
  %2431 = vmatmul.mubr.f32.gmra.mxu0 %v2281
  %v2432 = vpop.f32.mrf.mxu0
  %v2433 = vadd.f32 0.0, %v2432
  %v2434 = vpop.f32.mrf.mxu0
  %v2435 = vadd.f32 0.0, %v2434
  %2436 = vdwg.mxu0
  %v2437 = vadd.f32 %v2187, %v2362
  %v2438 = vadd.f32 %v2189, %v2364
  %v2439 = vadd.f32 %v2258, %v2433
  %v2440 = vadd.f32 %v2260, %v2435
  %2441 = vrot.lane.b32.xlu0 %v289, 1
  %v2442 = vpop.permute.xlu0 %2441
  %2443 = vrot.lane.b32.xlu0 %v290, 1
  %v2444 = vpop.permute.xlu0 %2443
  %2445 = vrot.lane.b32.xlu0 %v291, 1
  %v2446 = vpop.permute.xlu0 %2445
  %2447 = vrot.lane.b32.xlu0 %v292, 1
  %v2448 = vpop.permute.xlu0 %2447
  %v2449 = vsel %vm414, %v2446, %v2448
  %v2450 = vsel %vm414, %v2444, %v2446
  %v2451 = vsel %vm414, %v2442, %v2444
  %v2452 = vsel %vm414, %v2448, %v2442
  %v2453 = vmul.f32 %v2452, %v422
  %v2454 = vmul.f32 %v2451, %v426
  %v2455 = vmul.f32 %v2450, %v430
  %v2456 = vmul.f32 %v2449, %v434
  %s2457 = scalar_lea.vmem %s7, 12
  %v2458 = vld [vmem:[%s2457] sm:$0xf]
  %v2460 = vsel %vm1946, %v2458, 0
  %v2463 = vsel %vm1950, %v2453, 0
  %v2466 = vsel %vm1950, %v2454, 0
  %v2469 = vsel %vm1950, %v2455, 0
  %v2472 = vsel %vm1950, %v2456, 0
  %2474 = vmatprep.subr.mxu0 0.0
  %2475 = vmatpush1.msra.mxu0 0.0
  %2476 = vmatprep.subr.mxu0 0.0
  %2477 = vmatpush1.msra.mxu0 0.0
  %2478 = vmatprep.subr.mxu0 0.0
  %2479 = vmatpush1.msra.mxu0 0.0
  %2480 = vmatprep.subr.mxu0 0.0
  %2481 = vmatpush1.msra.mxu0 0.0
  %2482 = vmatprep.subr.mxu0 0.0
  %2483 = vmatpush1.msra.mxu0 0.0
  %2484 = vmatprep.subr.mxu0 0.0
  %2485 = vmatpush1.msra.mxu0 0.0
  %2486 = vmatprep.subr.mxu0 0.0
  %2487 = vmatpush1.msra.mxu0 0.0
  %2488 = vmatprep.subr.mxu0 0.0
  %2489 = vmatpush1.msra.mxu0 0.0
  %2490 = vmatprep.subr.mxu0 0.0
  %2491 = vmatpush1.msra.mxu0 0.0
  %2492 = vmatprep.subr.mxu0 0.0
  %2493 = vmatpush1.msra.mxu0 0.0
  %2494 = vmatprep.subr.mxu0 0.0
  %2495 = vmatpush1.msra.mxu0 0.0
  %2496 = vmatprep.subr.mxu0 0.0
  %2497 = vmatpush1.msra.mxu0 0.0
  %2498 = vmatprep.subr.mxu0 0.0
  %2499 = vmatpush1.msra.mxu0 0.0
  %2500 = vmatprep.subr.mxu0 0.0
  %2501 = vmatpush1.msra.mxu0 0.0
  %2502 = vmatprep.subr.mxu0 0.0
  %2503 = vmatpush1.msra.mxu0 0.0
  %2504 = vmatprep.subr.mxu0 %v2466
  %2505 = vmatpush1.msra.mxu0 %v2463
  %2506 = vmatprep.subr.mxu0 0.0
  %2507 = vmatpush2.msra.mxu0 0.0
  %2508 = vmatprep.subr.mxu0 0.0
  %2509 = vmatpush2.msra.mxu0 0.0
  %2510 = vmatprep.subr.mxu0 0.0
  %2511 = vmatpush2.msra.mxu0 0.0
  %2512 = vmatprep.subr.mxu0 0.0
  %2513 = vmatpush2.msra.mxu0 0.0
  %2514 = vmatprep.subr.mxu0 0.0
  %2515 = vmatpush2.msra.mxu0 0.0
  %2516 = vmatprep.subr.mxu0 0.0
  %2517 = vmatpush2.msra.mxu0 0.0
  %2518 = vmatprep.subr.mxu0 0.0
  %2519 = vmatpush2.msra.mxu0 0.0
  %2520 = vmatprep.subr.mxu0 0.0
  %2521 = vmatpush2.msra.mxu0 0.0
  %2522 = vmatprep.subr.mxu0 0.0
  %2523 = vmatpush2.msra.mxu0 0.0
  %2524 = vmatprep.subr.mxu0 0.0
  %2525 = vmatpush2.msra.mxu0 0.0
  %2526 = vmatprep.subr.mxu0 0.0
  %2527 = vmatpush2.msra.mxu0 0.0
  %2528 = vmatprep.subr.mxu0 0.0
  %2529 = vmatpush2.msra.mxu0 0.0
  %2530 = vmatprep.subr.mxu0 0.0
  %2531 = vmatpush2.msra.mxu0 0.0
  %2532 = vmatprep.subr.mxu0 0.0
  %2533 = vmatpush2.msra.mxu0 0.0
  %2534 = vmatprep.subr.mxu0 0.0
  %2535 = vmatpush2.msra.mxu0 0.0
  %2536 = vmatprep.subr.mxu0 0.0
  %2537 = vmatpush2.msra.mxu0 0.0
  %2538 = vmatprep.mubr.f32.mxu0 0.0
  %2539 = vmatmul.mubr.f32.gmra.mxu0 %v2460
  %v2540 = vpop.f32.mrf.mxu0
  %v2541 = vadd.f32 0.0, %v2540
  %v2542 = vpop.f32.mrf.mxu0
  %v2543 = vadd.f32 0.0, %v2542
  %2544 = vdwg.mxu0
  %2545 = vmatprep.subr.mxu0 0.0
  %2546 = vmatpush1.msra.mxu0 0.0
  %2547 = vmatprep.subr.mxu0 0.0
  %2548 = vmatpush1.msra.mxu0 0.0
  %2549 = vmatprep.subr.mxu0 0.0
  %2550 = vmatpush1.msra.mxu0 0.0
  %2551 = vmatprep.subr.mxu0 0.0
  %2552 = vmatpush1.msra.mxu0 0.0
  %2553 = vmatprep.subr.mxu0 0.0
  %2554 = vmatpush1.msra.mxu0 0.0
  %2555 = vmatprep.subr.mxu0 0.0
  %2556 = vmatpush1.msra.mxu0 0.0
  %2557 = vmatprep.subr.mxu0 0.0
  %2558 = vmatpush1.msra.mxu0 0.0
  %2559 = vmatprep.subr.mxu0 0.0
  %2560 = vmatpush1.msra.mxu0 0.0
  %2561 = vmatprep.subr.mxu0 0.0
  %2562 = vmatpush1.msra.mxu0 0.0
  %2563 = vmatprep.subr.mxu0 0.0
  %2564 = vmatpush1.msra.mxu0 0.0
  %2565 = vmatprep.subr.mxu0 0.0
  %2566 = vmatpush1.msra.mxu0 0.0
  %2567 = vmatprep.subr.mxu0 0.0
  %2568 = vmatpush1.msra.mxu0 0.0
  %2569 = vmatprep.subr.mxu0 0.0
  %2570 = vmatpush1.msra.mxu0 0.0
  %2571 = vmatprep.subr.mxu0 0.0
  %2572 = vmatpush1.msra.mxu0 0.0
  %2573 = vmatprep.subr.mxu0 0.0
  %2574 = vmatpush1.msra.mxu0 0.0
  %2575 = vmatprep.subr.mxu0 %v2472
  %2576 = vmatpush1.msra.mxu0 %v2469
  %2577 = vmatprep.subr.mxu0 0.0
  %2578 = vmatpush2.msra.mxu0 0.0
  %2579 = vmatprep.subr.mxu0 0.0
  %2580 = vmatpush2.msra.mxu0 0.0
  %2581 = vmatprep.subr.mxu0 0.0
  %2582 = vmatpush2.msra.mxu0 0.0
  %2583 = vmatprep.subr.mxu0 0.0
  %2584 = vmatpush2.msra.mxu0 0.0
  %2585 = vmatprep.subr.mxu0 0.0
  %2586 = vmatpush2.msra.mxu0 0.0
  %2587 = vmatprep.subr.mxu0 0.0
  %2588 = vmatpush2.msra.mxu0 0.0
  %2589 = vmatprep.subr.mxu0 0.0
  %2590 = vmatpush2.msra.mxu0 0.0
  %2591 = vmatprep.subr.mxu0 0.0
  %2592 = vmatpush2.msra.mxu0 0.0
  %2593 = vmatprep.subr.mxu0 0.0
  %2594 = vmatpush2.msra.mxu0 0.0
  %2595 = vmatprep.subr.mxu0 0.0
  %2596 = vmatpush2.msra.mxu0 0.0
  %2597 = vmatprep.subr.mxu0 0.0
  %2598 = vmatpush2.msra.mxu0 0.0
  %2599 = vmatprep.subr.mxu0 0.0
  %2600 = vmatpush2.msra.mxu0 0.0
  %2601 = vmatprep.subr.mxu0 0.0
  %2602 = vmatpush2.msra.mxu0 0.0
  %2603 = vmatprep.subr.mxu0 0.0
  %2604 = vmatpush2.msra.mxu0 0.0
  %2605 = vmatprep.subr.mxu0 0.0
  %2606 = vmatpush2.msra.mxu0 0.0
  %2607 = vmatprep.subr.mxu0 0.0
  %2608 = vmatpush2.msra.mxu0 0.0
  %2609 = vmatprep.mubr.f32.mxu0 0.0
  %2610 = vmatmul.mubr.f32.gmra.mxu0 %v2460
  %v2611 = vpop.f32.mrf.mxu0
  %v2612 = vadd.f32 0.0, %v2611
  %v2613 = vpop.f32.mrf.mxu0
  %v2614 = vadd.f32 0.0, %v2613
  %2615 = vdwg.mxu0
  %v2616 = vadd.f32 %v2437, %v2541
  %v2617 = vadd.f32 %v2438, %v2543
  %v2618 = vadd.f32 %v2439, %v2612
  %v2619 = vadd.f32 %v2440, %v2614
  %s2620 = scalar_lea.vmem %s7, 16
  %v2621 = vld [vmem:[%s2620] sm:$0xf]
  %v2623 = vsel %vm1946, %v2621, 0
  %v2626 = vsel %vm1950, %v289, 0
  %v2629 = vsel %vm1950, %v290, 0
  %v2632 = vsel %vm1950, %v291, 0
  %v2635 = vsel %vm1950, %v292, 0
  %2637 = vmatprep.subr.mxu0 0.0
  %2638 = vmatpush1.msra.mxu0 0.0
  %2639 = vmatprep.subr.mxu0 0.0
  %2640 = vmatpush1.msra.mxu0 0.0
  %2641 = vmatprep.subr.mxu0 0.0
  %2642 = vmatpush1.msra.mxu0 0.0
  %2643 = vmatprep.subr.mxu0 0.0
  %2644 = vmatpush1.msra.mxu0 0.0
  %2645 = vmatprep.subr.mxu0 0.0
  %2646 = vmatpush1.msra.mxu0 0.0
  %2647 = vmatprep.subr.mxu0 0.0
  %2648 = vmatpush1.msra.mxu0 0.0
  %2649 = vmatprep.subr.mxu0 0.0
  %2650 = vmatpush1.msra.mxu0 0.0
  %2651 = vmatprep.subr.mxu0 0.0
  %2652 = vmatpush1.msra.mxu0 0.0
  %2653 = vmatprep.subr.mxu0 0.0
  %2654 = vmatpush1.msra.mxu0 0.0
  %2655 = vmatprep.subr.mxu0 0.0
  %2656 = vmatpush1.msra.mxu0 0.0
  %2657 = vmatprep.subr.mxu0 0.0
  %2658 = vmatpush1.msra.mxu0 0.0
  %2659 = vmatprep.subr.mxu0 0.0
  %2660 = vmatpush1.msra.mxu0 0.0
  %2661 = vmatprep.subr.mxu0 0.0
  %2662 = vmatpush1.msra.mxu0 0.0
  %2663 = vmatprep.subr.mxu0 0.0
  %2664 = vmatpush1.msra.mxu0 0.0
  %2665 = vmatprep.subr.mxu0 0.0
  %2666 = vmatpush1.msra.mxu0 0.0
  %2667 = vmatprep.subr.mxu0 %v2629
  %2668 = vmatpush1.msra.mxu0 %v2626
  %2669 = vmatprep.subr.mxu0 0.0
  %2670 = vmatpush2.msra.mxu0 0.0
  %2671 = vmatprep.subr.mxu0 0.0
  %2672 = vmatpush2.msra.mxu0 0.0
  %2673 = vmatprep.subr.mxu0 0.0
  %2674 = vmatpush2.msra.mxu0 0.0
  %2675 = vmatprep.subr.mxu0 0.0
  %2676 = vmatpush2.msra.mxu0 0.0
  %2677 = vmatprep.subr.mxu0 0.0
  %2678 = vmatpush2.msra.mxu0 0.0
  %2679 = vmatprep.subr.mxu0 0.0
  %2680 = vmatpush2.msra.mxu0 0.0
  %2681 = vmatprep.subr.mxu0 0.0
  %2682 = vmatpush2.msra.mxu0 0.0
  %2683 = vmatprep.subr.mxu0 0.0
  %2684 = vmatpush2.msra.mxu0 0.0
  %2685 = vmatprep.subr.mxu0 0.0
  %2686 = vmatpush2.msra.mxu0 0.0
  %2687 = vmatprep.subr.mxu0 0.0
  %2688 = vmatpush2.msra.mxu0 0.0
  %2689 = vmatprep.subr.mxu0 0.0
  %2690 = vmatpush2.msra.mxu0 0.0
  %2691 = vmatprep.subr.mxu0 0.0
  %2692 = vmatpush2.msra.mxu0 0.0
  %2693 = vmatprep.subr.mxu0 0.0
  %2694 = vmatpush2.msra.mxu0 0.0
  %2695 = vmatprep.subr.mxu0 0.0
  %2696 = vmatpush2.msra.mxu0 0.0
  %2697 = vmatprep.subr.mxu0 0.0
  %2698 = vmatpush2.msra.mxu0 0.0
  %2699 = vmatprep.subr.mxu0 0.0
  %2700 = vmatpush2.msra.mxu0 0.0
  %2701 = vmatprep.mubr.f32.mxu0 0.0
  %2702 = vmatmul.mubr.f32.gmra.mxu0 %v2623
  %v2703 = vpop.f32.mrf.mxu0
  %v2704 = vadd.f32 0.0, %v2703
  %v2705 = vpop.f32.mrf.mxu0
  %v2706 = vadd.f32 0.0, %v2705
  %2707 = vdwg.mxu0
  %2708 = vmatprep.subr.mxu0 0.0
  %2709 = vmatpush1.msra.mxu0 0.0
  %2710 = vmatprep.subr.mxu0 0.0
  %2711 = vmatpush1.msra.mxu0 0.0
  %2712 = vmatprep.subr.mxu0 0.0
  %2713 = vmatpush1.msra.mxu0 0.0
  %2714 = vmatprep.subr.mxu0 0.0
  %2715 = vmatpush1.msra.mxu0 0.0
  %2716 = vmatprep.subr.mxu0 0.0
  %2717 = vmatpush1.msra.mxu0 0.0
  %2718 = vmatprep.subr.mxu0 0.0
  %2719 = vmatpush1.msra.mxu0 0.0
  %2720 = vmatprep.subr.mxu0 0.0
  %2721 = vmatpush1.msra.mxu0 0.0
  %2722 = vmatprep.subr.mxu0 0.0
  %2723 = vmatpush1.msra.mxu0 0.0
  %2724 = vmatprep.subr.mxu0 0.0
  %2725 = vmatpush1.msra.mxu0 0.0
  %2726 = vmatprep.subr.mxu0 0.0
  %2727 = vmatpush1.msra.mxu0 0.0
  %2728 = vmatprep.subr.mxu0 0.0
  %2729 = vmatpush1.msra.mxu0 0.0
  %2730 = vmatprep.subr.mxu0 0.0
  %2731 = vmatpush1.msra.mxu0 0.0
  %2732 = vmatprep.subr.mxu0 0.0
  %2733 = vmatpush1.msra.mxu0 0.0
  %2734 = vmatprep.subr.mxu0 0.0
  %2735 = vmatpush1.msra.mxu0 0.0
  %2736 = vmatprep.subr.mxu0 0.0
  %2737 = vmatpush1.msra.mxu0 0.0
  %2738 = vmatprep.subr.mxu0 %v2635
  %2739 = vmatpush1.msra.mxu0 %v2632
  %2740 = vmatprep.subr.mxu0 0.0
  %2741 = vmatpush2.msra.mxu0 0.0
  %2742 = vmatprep.subr.mxu0 0.0
  %2743 = vmatpush2.msra.mxu0 0.0
  %2744 = vmatprep.subr.mxu0 0.0
  %2745 = vmatpush2.msra.mxu0 0.0
  %2746 = vmatprep.subr.mxu0 0.0
  %2747 = vmatpush2.msra.mxu0 0.0
  %2748 = vmatprep.subr.mxu0 0.0
  %2749 = vmatpush2.msra.mxu0 0.0
  %2750 = vmatprep.subr.mxu0 0.0
  %2751 = vmatpush2.msra.mxu0 0.0
  %2752 = vmatprep.subr.mxu0 0.0
  %2753 = vmatpush2.msra.mxu0 0.0
  %2754 = vmatprep.subr.mxu0 0.0
  %2755 = vmatpush2.msra.mxu0 0.0
  %2756 = vmatprep.subr.mxu0 0.0
  %2757 = vmatpush2.msra.mxu0 0.0
  %2758 = vmatprep.subr.mxu0 0.0
  %2759 = vmatpush2.msra.mxu0 0.0
  %2760 = vmatprep.subr.mxu0 0.0
  %2761 = vmatpush2.msra.mxu0 0.0
  %2762 = vmatprep.subr.mxu0 0.0
  %2763 = vmatpush2.msra.mxu0 0.0
  %2764 = vmatprep.subr.mxu0 0.0
  %2765 = vmatpush2.msra.mxu0 0.0
  %2766 = vmatprep.subr.mxu0 0.0
  %2767 = vmatpush2.msra.mxu0 0.0
  %2768 = vmatprep.subr.mxu0 0.0
  %2769 = vmatpush2.msra.mxu0 0.0
  %2770 = vmatprep.subr.mxu0 0.0
  %2771 = vmatpush2.msra.mxu0 0.0
  %2772 = vmatprep.mubr.f32.mxu0 0.0
  %2773 = vmatmul.mubr.f32.gmra.mxu0 %v2623
  %v2774 = vpop.f32.mrf.mxu0
  %v2775 = vadd.f32 0.0, %v2774
  %v2776 = vpop.f32.mrf.mxu0
  %v2777 = vadd.f32 0.0, %v2776
  %2778 = vdwg.mxu0
  %v2779 = vadd.f32 %v2616, %v2704
  %v2780 = vadd.f32 %v2617, %v2706
  %v2781 = vadd.f32 %v2618, %v2775
  %v2782 = vadd.f32 %v2619, %v2777
  %2783 = vrot.lane.b32.xlu0 %v289, 127
  %v2784 = vpop.permute.xlu0 %2783
  %2785 = vrot.lane.b32.xlu0 %v290, 127
  %v2786 = vpop.permute.xlu0 %2785
  %2787 = vrot.lane.b32.xlu0 %v291, 127
  %v2788 = vpop.permute.xlu0 %2787
  %2789 = vrot.lane.b32.xlu0 %v292, 127
  %v2790 = vpop.permute.xlu0 %2789
  %v2791 = vsel %vm451, %v2788, %v2790
  %v2792 = vsel %vm451, %v2786, %v2788
  %v2793 = vsel %vm451, %v2784, %v2786
  %v2794 = vsel %vm451, %v2790, %v2784
  %v2795 = vmul.f32 %v2793, %v459
  %v2796 = vmul.f32 %v2792, %v463
  %v2797 = vmul.f32 %v2791, %v467
  %v2798 = vmul.f32 %v2794, %v471
  %s2799 = scalar_lea.vmem %s7, 20
  %v2800 = vld [vmem:[%s2799] sm:$0xf]
  %v2802 = vsel %vm1946, %v2800, 0
  %v2805 = vsel %vm1950, %v2795, 0
  %v2808 = vsel %vm1950, %v2796, 0
  %v2811 = vsel %vm1950, %v2797, 0
  %v2814 = vsel %vm1950, %v2798, 0
  %2816 = vmatprep.subr.mxu0 0.0
  %2817 = vmatpush1.msra.mxu0 0.0
  %2818 = vmatprep.subr.mxu0 0.0
  %2819 = vmatpush1.msra.mxu0 0.0
  %2820 = vmatprep.subr.mxu0 0.0
  %2821 = vmatpush1.msra.mxu0 0.0
  %2822 = vmatprep.subr.mxu0 0.0
  %2823 = vmatpush1.msra.mxu0 0.0
  %2824 = vmatprep.subr.mxu0 0.0
  %2825 = vmatpush1.msra.mxu0 0.0
  %2826 = vmatprep.subr.mxu0 0.0
  %2827 = vmatpush1.msra.mxu0 0.0
  %2828 = vmatprep.subr.mxu0 0.0
  %2829 = vmatpush1.msra.mxu0 0.0
  %2830 = vmatprep.subr.mxu0 0.0
  %2831 = vmatpush1.msra.mxu0 0.0
  %2832 = vmatprep.subr.mxu0 0.0
  %2833 = vmatpush1.msra.mxu0 0.0
  %2834 = vmatprep.subr.mxu0 0.0
  %2835 = vmatpush1.msra.mxu0 0.0
  %2836 = vmatprep.subr.mxu0 0.0
  %2837 = vmatpush1.msra.mxu0 0.0
  %2838 = vmatprep.subr.mxu0 0.0
  %2839 = vmatpush1.msra.mxu0 0.0
  %2840 = vmatprep.subr.mxu0 0.0
  %2841 = vmatpush1.msra.mxu0 0.0
  %2842 = vmatprep.subr.mxu0 0.0
  %2843 = vmatpush1.msra.mxu0 0.0
  %2844 = vmatprep.subr.mxu0 0.0
  %2845 = vmatpush1.msra.mxu0 0.0
  %2846 = vmatprep.subr.mxu0 %v2808
  %2847 = vmatpush1.msra.mxu0 %v2805
  %2848 = vmatprep.subr.mxu0 0.0
  %2849 = vmatpush2.msra.mxu0 0.0
  %2850 = vmatprep.subr.mxu0 0.0
  %2851 = vmatpush2.msra.mxu0 0.0
  %2852 = vmatprep.subr.mxu0 0.0
  %2853 = vmatpush2.msra.mxu0 0.0
  %2854 = vmatprep.subr.mxu0 0.0
  %2855 = vmatpush2.msra.mxu0 0.0
  %2856 = vmatprep.subr.mxu0 0.0
  %2857 = vmatpush2.msra.mxu0 0.0
  %2858 = vmatprep.subr.mxu0 0.0
  %2859 = vmatpush2.msra.mxu0 0.0
  %2860 = vmatprep.subr.mxu0 0.0
  %2861 = vmatpush2.msra.mxu0 0.0
  %2862 = vmatprep.subr.mxu0 0.0
  %2863 = vmatpush2.msra.mxu0 0.0
  %2864 = vmatprep.subr.mxu0 0.0
  %2865 = vmatpush2.msra.mxu0 0.0
  %2866 = vmatprep.subr.mxu0 0.0
  %2867 = vmatpush2.msra.mxu0 0.0
  %2868 = vmatprep.subr.mxu0 0.0
  %2869 = vmatpush2.msra.mxu0 0.0
  %2870 = vmatprep.subr.mxu0 0.0
  %2871 = vmatpush2.msra.mxu0 0.0
  %2872 = vmatprep.subr.mxu0 0.0
  %2873 = vmatpush2.msra.mxu0 0.0
  %2874 = vmatprep.subr.mxu0 0.0
  %2875 = vmatpush2.msra.mxu0 0.0
  %2876 = vmatprep.subr.mxu0 0.0
  %2877 = vmatpush2.msra.mxu0 0.0
  %2878 = vmatprep.subr.mxu0 0.0
  %2879 = vmatpush2.msra.mxu0 0.0
  %2880 = vmatprep.mubr.f32.mxu0 0.0
  %2881 = vmatmul.mubr.f32.gmra.mxu0 %v2802
  %v2882 = vpop.f32.mrf.mxu0
  %v2883 = vadd.f32 0.0, %v2882
  %v2884 = vpop.f32.mrf.mxu0
  %v2885 = vadd.f32 0.0, %v2884
  %2886 = vdwg.mxu0
  %2887 = vmatprep.subr.mxu0 0.0
  %2888 = vmatpush1.msra.mxu0 0.0
  %2889 = vmatprep.subr.mxu0 0.0
  %2890 = vmatpush1.msra.mxu0 0.0
  %2891 = vmatprep.subr.mxu0 0.0
  %2892 = vmatpush1.msra.mxu0 0.0
  %2893 = vmatprep.subr.mxu0 0.0
  %2894 = vmatpush1.msra.mxu0 0.0
  %2895 = vmatprep.subr.mxu0 0.0
  %2896 = vmatpush1.msra.mxu0 0.0
  %2897 = vmatprep.subr.mxu0 0.0
  %2898 = vmatpush1.msra.mxu0 0.0
  %2899 = vmatprep.subr.mxu0 0.0
  %2900 = vmatpush1.msra.mxu0 0.0
  %2901 = vmatprep.subr.mxu0 0.0
  %2902 = vmatpush1.msra.mxu0 0.0
  %2903 = vmatprep.subr.mxu0 0.0
  %2904 = vmatpush1.msra.mxu0 0.0
  %2905 = vmatprep.subr.mxu0 0.0
  %2906 = vmatpush1.msra.mxu0 0.0
  %2907 = vmatprep.subr.mxu0 0.0
  %2908 = vmatpush1.msra.mxu0 0.0
  %2909 = vmatprep.subr.mxu0 0.0
  %2910 = vmatpush1.msra.mxu0 0.0
  %2911 = vmatprep.subr.mxu0 0.0
  %2912 = vmatpush1.msra.mxu0 0.0
  %2913 = vmatprep.subr.mxu0 0.0
  %2914 = vmatpush1.msra.mxu0 0.0
  %2915 = vmatprep.subr.mxu0 0.0
  %2916 = vmatpush1.msra.mxu0 0.0
  %2917 = vmatprep.subr.mxu0 %v2814
  %2918 = vmatpush1.msra.mxu0 %v2811
  %2919 = vmatprep.subr.mxu0 0.0
  %2920 = vmatpush2.msra.mxu0 0.0
  %2921 = vmatprep.subr.mxu0 0.0
  %2922 = vmatpush2.msra.mxu0 0.0
  %2923 = vmatprep.subr.mxu0 0.0
  %2924 = vmatpush2.msra.mxu0 0.0
  %2925 = vmatprep.subr.mxu0 0.0
  %2926 = vmatpush2.msra.mxu0 0.0
  %2927 = vmatprep.subr.mxu0 0.0
  %2928 = vmatpush2.msra.mxu0 0.0
  %2929 = vmatprep.subr.mxu0 0.0
  %2930 = vmatpush2.msra.mxu0 0.0
  %2931 = vmatprep.subr.mxu0 0.0
  %2932 = vmatpush2.msra.mxu0 0.0
  %2933 = vmatprep.subr.mxu0 0.0
  %2934 = vmatpush2.msra.mxu0 0.0
  %2935 = vmatprep.subr.mxu0 0.0
  %2936 = vmatpush2.msra.mxu0 0.0
  %2937 = vmatprep.subr.mxu0 0.0
  %2938 = vmatpush2.msra.mxu0 0.0
  %2939 = vmatprep.subr.mxu0 0.0
  %2940 = vmatpush2.msra.mxu0 0.0
  %2941 = vmatprep.subr.mxu0 0.0
  %2942 = vmatpush2.msra.mxu0 0.0
  %2943 = vmatprep.subr.mxu0 0.0
  %2944 = vmatpush2.msra.mxu0 0.0
  %2945 = vmatprep.subr.mxu0 0.0
  %2946 = vmatpush2.msra.mxu0 0.0
  %2947 = vmatprep.subr.mxu0 0.0
  %2948 = vmatpush2.msra.mxu0 0.0
  %2949 = vmatprep.subr.mxu0 0.0
  %2950 = vmatpush2.msra.mxu0 0.0
  %2951 = vmatprep.mubr.f32.mxu0 0.0
  %2952 = vmatmul.mubr.f32.gmra.mxu0 %v2802
  %v2953 = vpop.f32.mrf.mxu0
  %v2954 = vadd.f32 0.0, %v2953
  %v2955 = vpop.f32.mrf.mxu0
  %v2956 = vadd.f32 0.0, %v2955
  %2957 = vdwg.mxu0
  %v2958 = vadd.f32 %v2779, %v2883
  %v2959 = vadd.f32 %v2780, %v2885
  %v2960 = vadd.f32 %v2781, %v2954
  %v2961 = vadd.f32 %v2782, %v2956
  %2962 = vrot.lane.b32.xlu0 %v289, 113
  %v2963 = vpop.permute.xlu0 %2962
  %2964 = vrot.lane.b32.xlu0 %v290, 113
  %v2965 = vpop.permute.xlu0 %2964
  %2966 = vrot.lane.b32.xlu0 %v291, 113
  %v2967 = vpop.permute.xlu0 %2966
  %2968 = vrot.lane.b32.xlu0 %v292, 113
  %v2969 = vpop.permute.xlu0 %2968
  %v2970 = vsel %vm488, %v2967, %v2969
  %v2971 = vsel %vm488, %v2965, %v2967
  %v2972 = vsel %vm488, %v2963, %v2965
  %v2973 = vsel %vm488, %v2969, %v2963
  %v2974 = vmul.f32 %v2972, %v496
  %v2975 = vmul.f32 %v2971, %v500
  %v2976 = vmul.f32 %v2970, %v504
  %v2977 = vmul.f32 %v2973, %v508
  %s2978 = scalar_lea.vmem %s7, 24
  %v2979 = vld [vmem:[%s2978] sm:$0xf]
  %v2981 = vsel %vm1946, %v2979, 0
  %v2984 = vsel %vm1950, %v2974, 0
  %v2987 = vsel %vm1950, %v2975, 0
  %v2990 = vsel %vm1950, %v2976, 0
  %v2993 = vsel %vm1950, %v2977, 0
  %2995 = vmatprep.subr.mxu0 0.0
  %2996 = vmatpush1.msra.mxu0 0.0
  %2997 = vmatprep.subr.mxu0 0.0
  %2998 = vmatpush1.msra.mxu0 0.0
  %2999 = vmatprep.subr.mxu0 0.0
  %3000 = vmatpush1.msra.mxu0 0.0
  %3001 = vmatprep.subr.mxu0 0.0
  %3002 = vmatpush1.msra.mxu0 0.0
  %3003 = vmatprep.subr.mxu0 0.0
  %3004 = vmatpush1.msra.mxu0 0.0
  %3005 = vmatprep.subr.mxu0 0.0
  %3006 = vmatpush1.msra.mxu0 0.0
  %3007 = vmatprep.subr.mxu0 0.0
  %3008 = vmatpush1.msra.mxu0 0.0
  %3009 = vmatprep.subr.mxu0 0.0
  %3010 = vmatpush1.msra.mxu0 0.0
  %3011 = vmatprep.subr.mxu0 0.0
  %3012 = vmatpush1.msra.mxu0 0.0
  %3013 = vmatprep.subr.mxu0 0.0
  %3014 = vmatpush1.msra.mxu0 0.0
  %3015 = vmatprep.subr.mxu0 0.0
  %3016 = vmatpush1.msra.mxu0 0.0
  %3017 = vmatprep.subr.mxu0 0.0
  %3018 = vmatpush1.msra.mxu0 0.0
  %3019 = vmatprep.subr.mxu0 0.0
  %3020 = vmatpush1.msra.mxu0 0.0
  %3021 = vmatprep.subr.mxu0 0.0
  %3022 = vmatpush1.msra.mxu0 0.0
  %3023 = vmatprep.subr.mxu0 0.0
  %3024 = vmatpush1.msra.mxu0 0.0
  %3025 = vmatprep.subr.mxu0 %v2987
  %3026 = vmatpush1.msra.mxu0 %v2984
  %3027 = vmatprep.subr.mxu0 0.0
  %3028 = vmatpush2.msra.mxu0 0.0
  %3029 = vmatprep.subr.mxu0 0.0
  %3030 = vmatpush2.msra.mxu0 0.0
  %3031 = vmatprep.subr.mxu0 0.0
  %3032 = vmatpush2.msra.mxu0 0.0
  %3033 = vmatprep.subr.mxu0 0.0
  %3034 = vmatpush2.msra.mxu0 0.0
  %3035 = vmatprep.subr.mxu0 0.0
  %3036 = vmatpush2.msra.mxu0 0.0
  %3037 = vmatprep.subr.mxu0 0.0
  %3038 = vmatpush2.msra.mxu0 0.0
  %3039 = vmatprep.subr.mxu0 0.0
  %3040 = vmatpush2.msra.mxu0 0.0
  %3041 = vmatprep.subr.mxu0 0.0
  %3042 = vmatpush2.msra.mxu0 0.0
  %3043 = vmatprep.subr.mxu0 0.0
  %3044 = vmatpush2.msra.mxu0 0.0
  %3045 = vmatprep.subr.mxu0 0.0
  %3046 = vmatpush2.msra.mxu0 0.0
  %3047 = vmatprep.subr.mxu0 0.0
  %3048 = vmatpush2.msra.mxu0 0.0
  %3049 = vmatprep.subr.mxu0 0.0
  %3050 = vmatpush2.msra.mxu0 0.0
  %3051 = vmatprep.subr.mxu0 0.0
  %3052 = vmatpush2.msra.mxu0 0.0
  %3053 = vmatprep.subr.mxu0 0.0
  %3054 = vmatpush2.msra.mxu0 0.0
  %3055 = vmatprep.subr.mxu0 0.0
  %3056 = vmatpush2.msra.mxu0 0.0
  %3057 = vmatprep.subr.mxu0 0.0
  %3058 = vmatpush2.msra.mxu0 0.0
  %3059 = vmatprep.mubr.f32.mxu0 0.0
  %3060 = vmatmul.mubr.f32.gmra.mxu0 %v2981
  %v3061 = vpop.f32.mrf.mxu0
  %v3062 = vadd.f32 0.0, %v3061
  %v3063 = vpop.f32.mrf.mxu0
  %v3064 = vadd.f32 0.0, %v3063
  %3065 = vdwg.mxu0
  %3066 = vmatprep.subr.mxu0 0.0
  %3067 = vmatpush1.msra.mxu0 0.0
  %3068 = vmatprep.subr.mxu0 0.0
  %3069 = vmatpush1.msra.mxu0 0.0
  %3070 = vmatprep.subr.mxu0 0.0
  %3071 = vmatpush1.msra.mxu0 0.0
  %3072 = vmatprep.subr.mxu0 0.0
  %3073 = vmatpush1.msra.mxu0 0.0
  %3074 = vmatprep.subr.mxu0 0.0
  %3075 = vmatpush1.msra.mxu0 0.0
  %3076 = vmatprep.subr.mxu0 0.0
  %3077 = vmatpush1.msra.mxu0 0.0
  %3078 = vmatprep.subr.mxu0 0.0
  %3079 = vmatpush1.msra.mxu0 0.0
  %3080 = vmatprep.subr.mxu0 0.0
  %3081 = vmatpush1.msra.mxu0 0.0
  %3082 = vmatprep.subr.mxu0 0.0
  %3083 = vmatpush1.msra.mxu0 0.0
  %3084 = vmatprep.subr.mxu0 0.0
  %3085 = vmatpush1.msra.mxu0 0.0
  %3086 = vmatprep.subr.mxu0 0.0
  %3087 = vmatpush1.msra.mxu0 0.0
  %3088 = vmatprep.subr.mxu0 0.0
  %3089 = vmatpush1.msra.mxu0 0.0
  %3090 = vmatprep.subr.mxu0 0.0
  %3091 = vmatpush1.msra.mxu0 0.0
  %3092 = vmatprep.subr.mxu0 0.0
  %3093 = vmatpush1.msra.mxu0 0.0
  %3094 = vmatprep.subr.mxu0 0.0
  %3095 = vmatpush1.msra.mxu0 0.0
  %3096 = vmatprep.subr.mxu0 %v2993
  %3097 = vmatpush1.msra.mxu0 %v2990
  %3098 = vmatprep.subr.mxu0 0.0
  %3099 = vmatpush2.msra.mxu0 0.0
  %3100 = vmatprep.subr.mxu0 0.0
  %3101 = vmatpush2.msra.mxu0 0.0
  %3102 = vmatprep.subr.mxu0 0.0
  %3103 = vmatpush2.msra.mxu0 0.0
  %3104 = vmatprep.subr.mxu0 0.0
  %3105 = vmatpush2.msra.mxu0 0.0
  %3106 = vmatprep.subr.mxu0 0.0
  %3107 = vmatpush2.msra.mxu0 0.0
  %3108 = vmatprep.subr.mxu0 0.0
  %3109 = vmatpush2.msra.mxu0 0.0
  %3110 = vmatprep.subr.mxu0 0.0
  %3111 = vmatpush2.msra.mxu0 0.0
  %3112 = vmatprep.subr.mxu0 0.0
  %3113 = vmatpush2.msra.mxu0 0.0
  %3114 = vmatprep.subr.mxu0 0.0
  %3115 = vmatpush2.msra.mxu0 0.0
  %3116 = vmatprep.subr.mxu0 0.0
  %3117 = vmatpush2.msra.mxu0 0.0
  %3118 = vmatprep.subr.mxu0 0.0
  %3119 = vmatpush2.msra.mxu0 0.0
  %3120 = vmatprep.subr.mxu0 0.0
  %3121 = vmatpush2.msra.mxu0 0.0
  %3122 = vmatprep.subr.mxu0 0.0
  %3123 = vmatpush2.msra.mxu0 0.0
  %3124 = vmatprep.subr.mxu0 0.0
  %3125 = vmatpush2.msra.mxu0 0.0
  %3126 = vmatprep.subr.mxu0 0.0
  %3127 = vmatpush2.msra.mxu0 0.0
  %3128 = vmatprep.subr.mxu0 0.0
  %3129 = vmatpush2.msra.mxu0 0.0
  %3130 = vmatprep.mubr.f32.mxu0 0.0
  %3131 = vmatmul.mubr.f32.gmra.mxu0 %v2981
  %v3132 = vpop.f32.mrf.mxu0
  %v3133 = vadd.f32 0.0, %v3132
  %v3134 = vpop.f32.mrf.mxu0
  %v3135 = vadd.f32 0.0, %v3134
  %3136 = vdwg.mxu0
  %v3137 = vadd.f32 %v2958, %v3062
  %v3138 = vadd.f32 %v2959, %v3064
  %v3139 = vadd.f32 %v2960, %v3133
  %v3140 = vadd.f32 %v2961, %v3135
  %3141 = vrot.lane.b32.xlu0 %v289, 112
  %v3142 = vpop.permute.xlu0 %3141
  %3143 = vrot.lane.b32.xlu0 %v290, 112
  %v3144 = vpop.permute.xlu0 %3143
  %3145 = vrot.lane.b32.xlu0 %v291, 112
  %v3146 = vpop.permute.xlu0 %3145
  %3147 = vrot.lane.b32.xlu0 %v292, 112
  %v3148 = vpop.permute.xlu0 %3147
  %v3149 = vsel %vm525, %v3146, %v3148
  %v3150 = vsel %vm525, %v3144, %v3146
  %v3151 = vsel %vm525, %v3142, %v3144
  %v3152 = vsel %vm525, %v3148, %v3142
  %v3153 = vmul.f32 %v3151, %v533
  %v3154 = vmul.f32 %v3150, %v537
  %v3155 = vmul.f32 %v3149, %v541
  %v3156 = vmul.f32 %v3152, %v545
  %s3157 = scalar_lea.vmem %s7, 28
  %v3158 = vld [vmem:[%s3157] sm:$0xf]
  %v3160 = vsel %vm1946, %v3158, 0
  %v3163 = vsel %vm1950, %v3153, 0
  %v3166 = vsel %vm1950, %v3154, 0
  %v3169 = vsel %vm1950, %v3155, 0
  %v3172 = vsel %vm1950, %v3156, 0
  %3174 = vmatprep.subr.mxu0 0.0
  %3175 = vmatpush1.msra.mxu0 0.0
  %3176 = vmatprep.subr.mxu0 0.0
  %3177 = vmatpush1.msra.mxu0 0.0
  %3178 = vmatprep.subr.mxu0 0.0
  %3179 = vmatpush1.msra.mxu0 0.0
  %3180 = vmatprep.subr.mxu0 0.0
  %3181 = vmatpush1.msra.mxu0 0.0
  %3182 = vmatprep.subr.mxu0 0.0
  %3183 = vmatpush1.msra.mxu0 0.0
  %3184 = vmatprep.subr.mxu0 0.0
  %3185 = vmatpush1.msra.mxu0 0.0
  %3186 = vmatprep.subr.mxu0 0.0
  %3187 = vmatpush1.msra.mxu0 0.0
  %3188 = vmatprep.subr.mxu0 0.0
  %3189 = vmatpush1.msra.mxu0 0.0
  %3190 = vmatprep.subr.mxu0 0.0
  %3191 = vmatpush1.msra.mxu0 0.0
  %3192 = vmatprep.subr.mxu0 0.0
  %3193 = vmatpush1.msra.mxu0 0.0
  %3194 = vmatprep.subr.mxu0 0.0
  %3195 = vmatpush1.msra.mxu0 0.0
  %3196 = vmatprep.subr.mxu0 0.0
  %3197 = vmatpush1.msra.mxu0 0.0
  %3198 = vmatprep.subr.mxu0 0.0
  %3199 = vmatpush1.msra.mxu0 0.0
  %3200 = vmatprep.subr.mxu0 0.0
  %3201 = vmatpush1.msra.mxu0 0.0
  %3202 = vmatprep.subr.mxu0 0.0
  %3203 = vmatpush1.msra.mxu0 0.0
  %3204 = vmatprep.subr.mxu0 %v3166
  %3205 = vmatpush1.msra.mxu0 %v3163
  %3206 = vmatprep.subr.mxu0 0.0
  %3207 = vmatpush2.msra.mxu0 0.0
  %3208 = vmatprep.subr.mxu0 0.0
  %3209 = vmatpush2.msra.mxu0 0.0
  %3210 = vmatprep.subr.mxu0 0.0
  %3211 = vmatpush2.msra.mxu0 0.0
  %3212 = vmatprep.subr.mxu0 0.0
  %3213 = vmatpush2.msra.mxu0 0.0
  %3214 = vmatprep.subr.mxu0 0.0
  %3215 = vmatpush2.msra.mxu0 0.0
  %3216 = vmatprep.subr.mxu0 0.0
  %3217 = vmatpush2.msra.mxu0 0.0
  %3218 = vmatprep.subr.mxu0 0.0
  %3219 = vmatpush2.msra.mxu0 0.0
  %3220 = vmatprep.subr.mxu0 0.0
  %3221 = vmatpush2.msra.mxu0 0.0
  %3222 = vmatprep.subr.mxu0 0.0
  %3223 = vmatpush2.msra.mxu0 0.0
  %3224 = vmatprep.subr.mxu0 0.0
  %3225 = vmatpush2.msra.mxu0 0.0
  %3226 = vmatprep.subr.mxu0 0.0
  %3227 = vmatpush2.msra.mxu0 0.0
  %3228 = vmatprep.subr.mxu0 0.0
  %3229 = vmatpush2.msra.mxu0 0.0
  %3230 = vmatprep.subr.mxu0 0.0
  %3231 = vmatpush2.msra.mxu0 0.0
  %3232 = vmatprep.subr.mxu0 0.0
  %3233 = vmatpush2.msra.mxu0 0.0
  %3234 = vmatprep.subr.mxu0 0.0
  %3235 = vmatpush2.msra.mxu0 0.0
  %3236 = vmatprep.subr.mxu0 0.0
  %3237 = vmatpush2.msra.mxu0 0.0
  %3238 = vmatprep.mubr.f32.mxu0 0.0
  %3239 = vmatmul.mubr.f32.gmra.mxu0 %v3160
  %v3240 = vpop.f32.mrf.mxu0
  %v3241 = vadd.f32 0.0, %v3240
  %v3242 = vpop.f32.mrf.mxu0
  %v3243 = vadd.f32 0.0, %v3242
  %3244 = vdwg.mxu0
  %3245 = vmatprep.subr.mxu0 0.0
  %3246 = vmatpush1.msra.mxu0 0.0
  %3247 = vmatprep.subr.mxu0 0.0
  %3248 = vmatpush1.msra.mxu0 0.0
  %3249 = vmatprep.subr.mxu0 0.0
  %3250 = vmatpush1.msra.mxu0 0.0
  %3251 = vmatprep.subr.mxu0 0.0
  %3252 = vmatpush1.msra.mxu0 0.0
  %3253 = vmatprep.subr.mxu0 0.0
  %3254 = vmatpush1.msra.mxu0 0.0
  %3255 = vmatprep.subr.mxu0 0.0
  %3256 = vmatpush1.msra.mxu0 0.0
  %3257 = vmatprep.subr.mxu0 0.0
  %3258 = vmatpush1.msra.mxu0 0.0
  %3259 = vmatprep.subr.mxu0 0.0
  %3260 = vmatpush1.msra.mxu0 0.0
  %3261 = vmatprep.subr.mxu0 0.0
  %3262 = vmatpush1.msra.mxu0 0.0
  %3263 = vmatprep.subr.mxu0 0.0
  %3264 = vmatpush1.msra.mxu0 0.0
  %3265 = vmatprep.subr.mxu0 0.0
  %3266 = vmatpush1.msra.mxu0 0.0
  %3267 = vmatprep.subr.mxu0 0.0
  %3268 = vmatpush1.msra.mxu0 0.0
  %3269 = vmatprep.subr.mxu0 0.0
  %3270 = vmatpush1.msra.mxu0 0.0
  %3271 = vmatprep.subr.mxu0 0.0
  %3272 = vmatpush1.msra.mxu0 0.0
  %3273 = vmatprep.subr.mxu0 0.0
  %3274 = vmatpush1.msra.mxu0 0.0
  %3275 = vmatprep.subr.mxu0 %v3172
  %3276 = vmatpush1.msra.mxu0 %v3169
  %3277 = vmatprep.subr.mxu0 0.0
  %3278 = vmatpush2.msra.mxu0 0.0
  %3279 = vmatprep.subr.mxu0 0.0
  %3280 = vmatpush2.msra.mxu0 0.0
  %3281 = vmatprep.subr.mxu0 0.0
  %3282 = vmatpush2.msra.mxu0 0.0
  %3283 = vmatprep.subr.mxu0 0.0
  %3284 = vmatpush2.msra.mxu0 0.0
  %3285 = vmatprep.subr.mxu0 0.0
  %3286 = vmatpush2.msra.mxu0 0.0
  %3287 = vmatprep.subr.mxu0 0.0
  %3288 = vmatpush2.msra.mxu0 0.0
  %3289 = vmatprep.subr.mxu0 0.0
  %3290 = vmatpush2.msra.mxu0 0.0
  %3291 = vmatprep.subr.mxu0 0.0
  %3292 = vmatpush2.msra.mxu0 0.0
  %3293 = vmatprep.subr.mxu0 0.0
  %3294 = vmatpush2.msra.mxu0 0.0
  %3295 = vmatprep.subr.mxu0 0.0
  %3296 = vmatpush2.msra.mxu0 0.0
  %3297 = vmatprep.subr.mxu0 0.0
  %3298 = vmatpush2.msra.mxu0 0.0
  %3299 = vmatprep.subr.mxu0 0.0
  %3300 = vmatpush2.msra.mxu0 0.0
  %3301 = vmatprep.subr.mxu0 0.0
  %3302 = vmatpush2.msra.mxu0 0.0
  %3303 = vmatprep.subr.mxu0 0.0
  %3304 = vmatpush2.msra.mxu0 0.0
  %3305 = vmatprep.subr.mxu0 0.0
  %3306 = vmatpush2.msra.mxu0 0.0
  %3307 = vmatprep.subr.mxu0 0.0
  %3308 = vmatpush2.msra.mxu0 0.0
  %3309 = vmatprep.mubr.f32.mxu0 0.0
  %3310 = vmatmul.mubr.f32.gmra.mxu0 %v3160
  %v3311 = vpop.f32.mrf.mxu0
  %v3312 = vadd.f32 0.0, %v3311
  %v3313 = vpop.f32.mrf.mxu0
  %v3314 = vadd.f32 0.0, %v3313
  %3315 = vdwg.mxu0
  %v3316 = vadd.f32 %v3137, %v3241
  %v3317 = vadd.f32 %v3138, %v3243
  %v3318 = vadd.f32 %v3139, %v3312
  %v3319 = vadd.f32 %v3140, %v3314
  %3320 = vrot.lane.b32.xlu0 %v289, 111
  %v3321 = vpop.permute.xlu0 %3320
  %3322 = vrot.lane.b32.xlu0 %v290, 111
  %v3323 = vpop.permute.xlu0 %3322
  %3324 = vrot.lane.b32.xlu0 %v291, 111
  %v3325 = vpop.permute.xlu0 %3324
  %3326 = vrot.lane.b32.xlu0 %v292, 111
  %v3327 = vpop.permute.xlu0 %3326
  %v3328 = vsel %vm562, %v3325, %v3327
  %v3329 = vsel %vm562, %v3323, %v3325
  %v3330 = vsel %vm562, %v3321, %v3323
  %v3331 = vsel %vm562, %v3327, %v3321
  %v3332 = vmul.f32 %v3330, %v570
  %v3333 = vmul.f32 %v3329, %v574
  %v3334 = vmul.f32 %v3328, %v578
  %v3335 = vmul.f32 %v3331, %v582
  %s3336 = scalar_lea.vmem %s7, 32
  %v3337 = vld [vmem:[%s3336] sm:$0xf]
  %v3339 = vsel %vm1946, %v3337, 0
  %v3342 = vsel %vm1950, %v3332, 0
  %v3345 = vsel %vm1950, %v3333, 0
  %v3348 = vsel %vm1950, %v3334, 0
  %v3351 = vsel %vm1950, %v3335, 0
  %3353 = vmatprep.subr.mxu0 0.0
  %3354 = vmatpush1.msra.mxu0 0.0
  %3355 = vmatprep.subr.mxu0 0.0
  %3356 = vmatpush1.msra.mxu0 0.0
  %3357 = vmatprep.subr.mxu0 0.0
  %3358 = vmatpush1.msra.mxu0 0.0
  %3359 = vmatprep.subr.mxu0 0.0
  %3360 = vmatpush1.msra.mxu0 0.0
  %3361 = vmatprep.subr.mxu0 0.0
  %3362 = vmatpush1.msra.mxu0 0.0
  %3363 = vmatprep.subr.mxu0 0.0
  %3364 = vmatpush1.msra.mxu0 0.0
  %3365 = vmatprep.subr.mxu0 0.0
  %3366 = vmatpush1.msra.mxu0 0.0
  %3367 = vmatprep.subr.mxu0 0.0
  %3368 = vmatpush1.msra.mxu0 0.0
  %3369 = vmatprep.subr.mxu0 0.0
  %3370 = vmatpush1.msra.mxu0 0.0
  %3371 = vmatprep.subr.mxu0 0.0
  %3372 = vmatpush1.msra.mxu0 0.0
  %3373 = vmatprep.subr.mxu0 0.0
  %3374 = vmatpush1.msra.mxu0 0.0
  %3375 = vmatprep.subr.mxu0 0.0
  %3376 = vmatpush1.msra.mxu0 0.0
  %3377 = vmatprep.subr.mxu0 0.0
  %3378 = vmatpush1.msra.mxu0 0.0
  %3379 = vmatprep.subr.mxu0 0.0
  %3380 = vmatpush1.msra.mxu0 0.0
  %3381 = vmatprep.subr.mxu0 0.0
  %3382 = vmatpush1.msra.mxu0 0.0
  %3383 = vmatprep.subr.mxu0 %v3345
  %3384 = vmatpush1.msra.mxu0 %v3342
  %3385 = vmatprep.subr.mxu0 0.0
  %3386 = vmatpush2.msra.mxu0 0.0
  %3387 = vmatprep.subr.mxu0 0.0
  %3388 = vmatpush2.msra.mxu0 0.0
  %3389 = vmatprep.subr.mxu0 0.0
  %3390 = vmatpush2.msra.mxu0 0.0
  %3391 = vmatprep.subr.mxu0 0.0
  %3392 = vmatpush2.msra.mxu0 0.0
  %3393 = vmatprep.subr.mxu0 0.0
  %3394 = vmatpush2.msra.mxu0 0.0
  %3395 = vmatprep.subr.mxu0 0.0
  %3396 = vmatpush2.msra.mxu0 0.0
  %3397 = vmatprep.subr.mxu0 0.0
  %3398 = vmatpush2.msra.mxu0 0.0
  %3399 = vmatprep.subr.mxu0 0.0
  %3400 = vmatpush2.msra.mxu0 0.0
  %3401 = vmatprep.subr.mxu0 0.0
  %3402 = vmatpush2.msra.mxu0 0.0
  %3403 = vmatprep.subr.mxu0 0.0
  %3404 = vmatpush2.msra.mxu0 0.0
  %3405 = vmatprep.subr.mxu0 0.0
  %3406 = vmatpush2.msra.mxu0 0.0
  %3407 = vmatprep.subr.mxu0 0.0
  %3408 = vmatpush2.msra.mxu0 0.0
  %3409 = vmatprep.subr.mxu0 0.0
  %3410 = vmatpush2.msra.mxu0 0.0
  %3411 = vmatprep.subr.mxu0 0.0
  %3412 = vmatpush2.msra.mxu0 0.0
  %3413 = vmatprep.subr.mxu0 0.0
  %3414 = vmatpush2.msra.mxu0 0.0
  %3415 = vmatprep.subr.mxu0 0.0
  %3416 = vmatpush2.msra.mxu0 0.0
  %3417 = vmatprep.mubr.f32.mxu0 0.0
  %3418 = vmatmul.mubr.f32.gmra.mxu0 %v3339
  %v3419 = vpop.f32.mrf.mxu0
  %v3420 = vadd.f32 0.0, %v3419
  %v3421 = vpop.f32.mrf.mxu0
  %v3422 = vadd.f32 0.0, %v3421
  %3423 = vdwg.mxu0
  %3424 = vmatprep.subr.mxu0 0.0
  %3425 = vmatpush1.msra.mxu0 0.0
  %3426 = vmatprep.subr.mxu0 0.0
  %3427 = vmatpush1.msra.mxu0 0.0
  %3428 = vmatprep.subr.mxu0 0.0
  %3429 = vmatpush1.msra.mxu0 0.0
  %3430 = vmatprep.subr.mxu0 0.0
  %3431 = vmatpush1.msra.mxu0 0.0
  %3432 = vmatprep.subr.mxu0 0.0
  %3433 = vmatpush1.msra.mxu0 0.0
  %3434 = vmatprep.subr.mxu0 0.0
  %3435 = vmatpush1.msra.mxu0 0.0
  %3436 = vmatprep.subr.mxu0 0.0
  %3437 = vmatpush1.msra.mxu0 0.0
  %3438 = vmatprep.subr.mxu0 0.0
  %3439 = vmatpush1.msra.mxu0 0.0
  %3440 = vmatprep.subr.mxu0 0.0
  %3441 = vmatpush1.msra.mxu0 0.0
  %3442 = vmatprep.subr.mxu0 0.0
  %3443 = vmatpush1.msra.mxu0 0.0
  %3444 = vmatprep.subr.mxu0 0.0
  %3445 = vmatpush1.msra.mxu0 0.0
  %3446 = vmatprep.subr.mxu0 0.0
  %3447 = vmatpush1.msra.mxu0 0.0
  %3448 = vmatprep.subr.mxu0 0.0
  %3449 = vmatpush1.msra.mxu0 0.0
  %3450 = vmatprep.subr.mxu0 0.0
  %3451 = vmatpush1.msra.mxu0 0.0
  %3452 = vmatprep.subr.mxu0 0.0
  %3453 = vmatpush1.msra.mxu0 0.0
  %3454 = vmatprep.subr.mxu0 %v3351
  %3455 = vmatpush1.msra.mxu0 %v3348
  %3456 = vmatprep.subr.mxu0 0.0
  %3457 = vmatpush2.msra.mxu0 0.0
  %3458 = vmatprep.subr.mxu0 0.0
  %3459 = vmatpush2.msra.mxu0 0.0
  %3460 = vmatprep.subr.mxu0 0.0
  %3461 = vmatpush2.msra.mxu0 0.0
  %3462 = vmatprep.subr.mxu0 0.0
  %3463 = vmatpush2.msra.mxu0 0.0
  %3464 = vmatprep.subr.mxu0 0.0
  %3465 = vmatpush2.msra.mxu0 0.0
  %3466 = vmatprep.subr.mxu0 0.0
  %3467 = vmatpush2.msra.mxu0 0.0
  %3468 = vmatprep.subr.mxu0 0.0
  %3469 = vmatpush2.msra.mxu0 0.0
  %3470 = vmatprep.subr.mxu0 0.0
  %3471 = vmatpush2.msra.mxu0 0.0
  %3472 = vmatprep.subr.mxu0 0.0
  %3473 = vmatpush2.msra.mxu0 0.0
  %3474 = vmatprep.subr.mxu0 0.0
  %3475 = vmatpush2.msra.mxu0 0.0
  %3476 = vmatprep.subr.mxu0 0.0
  %3477 = vmatpush2.msra.mxu0 0.0
  %3478 = vmatprep.subr.mxu0 0.0
  %3479 = vmatpush2.msra.mxu0 0.0
  %3480 = vmatprep.subr.mxu0 0.0
  %3481 = vmatpush2.msra.mxu0 0.0
  %3482 = vmatprep.subr.mxu0 0.0
  %3483 = vmatpush2.msra.mxu0 0.0
  %3484 = vmatprep.subr.mxu0 0.0
  %3485 = vmatpush2.msra.mxu0 0.0
  %3486 = vmatprep.subr.mxu0 0.0
  %3487 = vmatpush2.msra.mxu0 0.0
  %3488 = vmatprep.mubr.f32.mxu0 0.0
  %3489 = vmatmul.mubr.f32.gmra.mxu0 %v3339
  %v3490 = vpop.f32.mrf.mxu0
  %v3491 = vadd.f32 0.0, %v3490
  %v3492 = vpop.f32.mrf.mxu0
  %v3493 = vadd.f32 0.0, %v3492
  %3494 = vdwg.mxu0
  %v3495 = vadd.f32 %v3316, %v3420
  %v3496 = vadd.f32 %v3317, %v3422
  %v3497 = vadd.f32 %v3318, %v3491
  %v3498 = vadd.f32 %v3319, %v3493
  %v3499 = vld [vmem:[%s8] sm:$0xf]
  %3501 = vset.pattern.permute.xlu0 0
  %3502 = vperm.xlu0 %3501, %v3499
  %v3503 = vpop.permute.xlu0 %3502
  %v3505 = vadd.f32 %v3495, %v3503
  %v3506 = vadd.f32 %v3496, %v3503
  %v3507 = vadd.f32 %v3497, %v3503
  %v3508 = vadd.f32 %v3498, %v3503
  %v3509 = vmax.f32 %v3505, 0.0
  %v3510 = vmax.f32 %v3506, 0.0
  %v3511 = vmax.f32 %v3507, 0.0
  %v3512 = vmax.f32 %v3508, 0.0
  %v3513 = vld [vmem:[%s9] sm:$0xff]
  %v3514 = vld [vmem:[%s9 + $0x8] sm:$0xff]
  %v3515 = vmul.f32 %v3509, %v1904
  %v3516 = vmul.f32 %v3510, %v1906
  %v3517 = vmul.f32 %v3511, %v1908
  %v3518 = vmul.f32 %v3512, %v1910
  %v3519 = vld [vmem:[%s10] sm:$0xff]
  %v3520 = vld [vmem:[%s10 + $0x8] sm:$0xff]
  %3522 = vset.pattern.permute.xlu0 0
  %3523 = vperm.xlu0 %3522, %v3519
  %v3524 = vpop.permute.xlu0 %3523
  %3527 = vset.pattern.permute.xlu0 0
  %3528 = vperm.xlu0 %3527, %v3520
  %v3529 = vpop.permute.xlu0 %3528
  %v3532 = vsel %vm1946, %v3513, 0
  %v3535 = vsel %vm1946, %v3514, 0
  %v3538 = vsel %vm1950, %v3515, 0
  %v3541 = vsel %vm1950, %v3516, 0
  %v3544 = vsel %vm1950, %v3517, 0
  %v3547 = vsel %vm1950, %v3518, 0
  %3549 = vmatprep.subr.mxu0 0.0
  %3550 = vmatpush1.msra.mxu0 0.0
  %3551 = vmatprep.subr.mxu0 0.0
  %3552 = vmatpush1.msra.mxu0 0.0
  %3553 = vmatprep.subr.mxu0 0.0
  %3554 = vmatpush1.msra.mxu0 0.0
  %3555 = vmatprep.subr.mxu0 0.0
  %3556 = vmatpush1.msra.mxu0 0.0
  %3557 = vmatprep.subr.mxu0 0.0
  %3558 = vmatpush1.msra.mxu0 0.0
  %3559 = vmatprep.subr.mxu0 0.0
  %3560 = vmatpush1.msra.mxu0 0.0
  %3561 = vmatprep.subr.mxu0 0.0
  %3562 = vmatpush1.msra.mxu0 0.0
  %3563 = vmatprep.subr.mxu0 0.0
  %3564 = vmatpush1.msra.mxu0 0.0
  %3565 = vmatprep.subr.mxu0 0.0
  %3566 = vmatpush1.msra.mxu0 0.0
  %3567 = vmatprep.subr.mxu0 0.0
  %3568 = vmatpush1.msra.mxu0 0.0
  %3569 = vmatprep.subr.mxu0 0.0
  %3570 = vmatpush1.msra.mxu0 0.0
  %3571 = vmatprep.subr.mxu0 0.0
  %3572 = vmatpush1.msra.mxu0 0.0
  %3573 = vmatprep.subr.mxu0 0.0
  %3574 = vmatpush1.msra.mxu0 0.0
  %3575 = vmatprep.subr.mxu0 0.0
  %3576 = vmatpush1.msra.mxu0 0.0
  %3577 = vmatprep.subr.mxu0 0.0
  %3578 = vmatpush1.msra.mxu0 0.0
  %3579 = vmatprep.subr.mxu0 %v3541
  %3580 = vmatpush1.msra.mxu0 %v3538
  %3581 = vmatprep.subr.mxu0 0.0
  %3582 = vmatpush2.msra.mxu0 0.0
  %3583 = vmatprep.subr.mxu0 0.0
  %3584 = vmatpush2.msra.mxu0 0.0
  %3585 = vmatprep.subr.mxu0 0.0
  %3586 = vmatpush2.msra.mxu0 0.0
  %3587 = vmatprep.subr.mxu0 0.0
  %3588 = vmatpush2.msra.mxu0 0.0
  %3589 = vmatprep.subr.mxu0 0.0
  %3590 = vmatpush2.msra.mxu0 0.0
  %3591 = vmatprep.subr.mxu0 0.0
  %3592 = vmatpush2.msra.mxu0 0.0
  %3593 = vmatprep.subr.mxu0 0.0
  %3594 = vmatpush2.msra.mxu0 0.0
  %3595 = vmatprep.subr.mxu0 0.0
  %3596 = vmatpush2.msra.mxu0 0.0
  %3597 = vmatprep.subr.mxu0 0.0
  %3598 = vmatpush2.msra.mxu0 0.0
  %3599 = vmatprep.subr.mxu0 0.0
  %3600 = vmatpush2.msra.mxu0 0.0
  %3601 = vmatprep.subr.mxu0 0.0
  %3602 = vmatpush2.msra.mxu0 0.0
  %3603 = vmatprep.subr.mxu0 0.0
  %3604 = vmatpush2.msra.mxu0 0.0
  %3605 = vmatprep.subr.mxu0 0.0
  %3606 = vmatpush2.msra.mxu0 0.0
  %3607 = vmatprep.subr.mxu0 0.0
  %3608 = vmatpush2.msra.mxu0 0.0
  %3609 = vmatprep.subr.mxu0 0.0
  %3610 = vmatpush2.msra.mxu0 0.0
  %3611 = vmatprep.subr.mxu0 0.0
  %3612 = vmatpush2.msra.mxu0 0.0
  %3613 = vmatprep.mubr.f32.mxu0 0.0
  %3614 = vmatmul.mubr.f32.gmra.mxu0 %v3532
  %v3615 = vpop.f32.mrf.mxu0
  %v3616 = vadd.f32 %v3524, %v3615
  %v3617 = vpop.f32.mrf.mxu0
  %v3618 = vadd.f32 %v3524, %v3617
  %3619 = vmatprep.mubr.f32.mxu0 0.0
  %3620 = vmatmul.mubr.f32.gmra.mxu0 %v3535
  %v3621 = vpop.f32.mrf.mxu0
  %v3622 = vadd.f32 %v3529, %v3621
  %v3623 = vpop.f32.mrf.mxu0
  %v3624 = vadd.f32 %v3529, %v3623
  %3625 = vdwg.mxu0
  %3626 = vmatprep.subr.mxu0 0.0
  %3627 = vmatpush1.msra.mxu0 0.0
  %3628 = vmatprep.subr.mxu0 0.0
  %3629 = vmatpush1.msra.mxu0 0.0
  %3630 = vmatprep.subr.mxu0 0.0
  %3631 = vmatpush1.msra.mxu0 0.0
  %3632 = vmatprep.subr.mxu0 0.0
  %3633 = vmatpush1.msra.mxu0 0.0
  %3634 = vmatprep.subr.mxu0 0.0
  %3635 = vmatpush1.msra.mxu0 0.0
  %3636 = vmatprep.subr.mxu0 0.0
  %3637 = vmatpush1.msra.mxu0 0.0
  %3638 = vmatprep.subr.mxu0 0.0
  %3639 = vmatpush1.msra.mxu0 0.0
  %3640 = vmatprep.subr.mxu0 0.0
  %3641 = vmatpush1.msra.mxu0 0.0
  %3642 = vmatprep.subr.mxu0 0.0
  %3643 = vmatpush1.msra.mxu0 0.0
  %3644 = vmatprep.subr.mxu0 0.0
  %3645 = vmatpush1.msra.mxu0 0.0
  %3646 = vmatprep.subr.mxu0 0.0
  %3647 = vmatpush1.msra.mxu0 0.0
  %3648 = vmatprep.subr.mxu0 0.0
  %3649 = vmatpush1.msra.mxu0 0.0
  %3650 = vmatprep.subr.mxu0 0.0
  %3651 = vmatpush1.msra.mxu0 0.0
  %3652 = vmatprep.subr.mxu0 0.0
  %3653 = vmatpush1.msra.mxu0 0.0
  %3654 = vmatprep.subr.mxu0 0.0
  %3655 = vmatpush1.msra.mxu0 0.0
  %3656 = vmatprep.subr.mxu0 %v3547
  %3657 = vmatpush1.msra.mxu0 %v3544
  %3658 = vmatprep.subr.mxu0 0.0
  %3659 = vmatpush2.msra.mxu0 0.0
  %3660 = vmatprep.subr.mxu0 0.0
  %3661 = vmatpush2.msra.mxu0 0.0
  %3662 = vmatprep.subr.mxu0 0.0
  %3663 = vmatpush2.msra.mxu0 0.0
  %3664 = vmatprep.subr.mxu0 0.0
  %3665 = vmatpush2.msra.mxu0 0.0
  %3666 = vmatprep.subr.mxu0 0.0
  %3667 = vmatpush2.msra.mxu0 0.0
  %3668 = vmatprep.subr.mxu0 0.0
  %3669 = vmatpush2.msra.mxu0 0.0
  %3670 = vmatprep.subr.mxu0 0.0
  %3671 = vmatpush2.msra.mxu0 0.0
  %3672 = vmatprep.subr.mxu0 0.0
  %3673 = vmatpush2.msra.mxu0 0.0
  %3674 = vmatprep.subr.mxu0 0.0
  %3675 = vmatpush2.msra.mxu0 0.0
  %3676 = vmatprep.subr.mxu0 0.0
  %3677 = vmatpush2.msra.mxu0 0.0
  %3678 = vmatprep.subr.mxu0 0.0
  %3679 = vmatpush2.msra.mxu0 0.0
  %3680 = vmatprep.subr.mxu0 0.0
  %3681 = vmatpush2.msra.mxu0 0.0
  %3682 = vmatprep.subr.mxu0 0.0
  %3683 = vmatpush2.msra.mxu0 0.0
  %3684 = vmatprep.subr.mxu0 0.0
  %3685 = vmatpush2.msra.mxu0 0.0
  %3686 = vmatprep.subr.mxu0 0.0
  %3687 = vmatpush2.msra.mxu0 0.0
  %3688 = vmatprep.subr.mxu0 0.0
  %3689 = vmatpush2.msra.mxu0 0.0
  %3690 = vmatprep.mubr.f32.mxu0 0.0
  %3691 = vmatmul.mubr.f32.gmra.mxu0 %v3532
  %v3692 = vpop.f32.mrf.mxu0
  %v3693 = vadd.f32 %v3524, %v3692
  %v3694 = vpop.f32.mrf.mxu0
  %v3695 = vadd.f32 %v3524, %v3694
  %3696 = vmatprep.mubr.f32.mxu0 0.0
  %3697 = vmatmul.mubr.f32.gmra.mxu0 %v3535
  %v3698 = vpop.f32.mrf.mxu0
  %v3699 = vadd.f32 %v3529, %v3698
  %v3700 = vpop.f32.mrf.mxu0
  %v3701 = vadd.f32 %v3529, %v3700
  %3702 = vdwg.mxu0
  %v3703 = vadd.f32 %v3616, %v186
  %v3704 = vadd.f32 %v3618, %v188
  %v3705 = vadd.f32 %v3693, %v275
  %v3706 = vadd.f32 %v3695, %v277
  %v3707 = vadd.f32 %v3622, %v192
  %v3708 = vadd.f32 %v3624, %v194
  %v3709 = vadd.f32 %v3699, %v281
  %v3710 = vadd.f32 %v3701, %v283
  %v3711 = vmax.f32 %v3703, 0.0
  %v3712 = vmax.f32 %v3704, 0.0
  %v3713 = vmax.f32 %v3705, 0.0
  %v3714 = vmax.f32 %v3706, 0.0
  %v3715 = vmax.f32 %v3707, 0.0
  %v3716 = vmax.f32 %v3708, 0.0
  %v3717 = vmax.f32 %v3709, 0.0
  %v3718 = vmax.f32 %v3710, 0.0
  %3719 = vst [vmem:[%s15] sm:$0xff] %v3711
  %3720 = vst [vmem:[%s15 + $0x8] sm:$0xff] %v3712
  %3721 = vst [vmem:[%s15 + $0x10] sm:$0xff] %v3715
  %3722 = vst [vmem:[%s15 + $0x18] sm:$0xff] %v3716
  %s3723 = scalar_lea.vmem %s15, 32
  %3724 = vst [vmem:[%s3723] sm:$0xff] %v3713
  %3725 = vst [vmem:[%s3723 + $0x8] sm:$0xff] %v3714
  %3726 = vst [vmem:[%s3723 + $0x10] sm:$0xff] %v3717
  %3727 = vst [vmem:[%s3723 + $0x18] sm:$0xff] %v3718
  // Predicated region
  $region62: #{air_unit_forward.1} parent=0 // pred_check
    _
  $region63: #{air_unit_forward.1} parent=0 // pred_check_branch
    %3729 = sbr.rel (0) target = $region65
  $region64: #{air_unit_forward.1} parent=0 // pred_region
    _
  $region65: #{air_unit_forward.1} parent=0 // pred_fallthru
    _
  // Predicated region
  $region66: #{air_unit_forward.1} parent=0 // pred_check
    _
  $region67: #{air_unit_forward.1} parent=0 // pred_check_branch
    %3731 = sbr.rel (0) target = $region69
  $region68: #{air_unit_forward.1} parent=0 // pred_region
    _
  $region69: #{air_unit_forward.1} parent=0 // pred_fallthru
    _

</llo_original>
